<compile_context>
chip_gen: v7x
topology: tpu7x:2x2x1
jax: 0.10.0
libtpu: 0.0.40
codegen_flags: <defaults>
</compile_context>

<pallas_src>
import functools

import jax
import jax.numpy as jnp
import numpy as np
from jax import lax
from jax.experimental import pallas as pl
from jax.experimental.pallas import tpu as pltpu

EPS = 1e-5  # nn.InstanceNorm2d default epsilon


def _instance_norm(s, relu):
    # s: (C, H*W) float32 -- per-channel normalization over the lane (spatial) axis.
    # Single sweep: sum and sum-of-squares, var = E[x^2] - mean^2 (clamped >= 0).
    inv_n = 1.0 / s.shape[1]
    mean = jnp.sum(s, axis=1, keepdims=True) * inv_n
    ex2 = jnp.sum(s * s, axis=1, keepdims=True) * inv_n
    var = jnp.maximum(ex2 - mean * mean, 0.0)
    y = (s - mean) * lax.rsqrt(var + EPS)
    return jnp.maximum(y, 0.0) if relu else y


def _msfm_kernel(in1_ref, in2_ref, w1_ref, w3_ref, wc_ref, out_ref,
                 p1_ref, p2_ref, stack_ref, *, H, W, compute_dtype):
    f32 = jnp.float32
    cd = compute_dtype
    HW = H * W
    bs, half, _ = in1_ref.shape
    dim = 2 * half

    # Hoisted column-index masks for the column-reflection fix-ups (shared by all stages).
    col = lax.broadcasted_iota(jnp.int32, (1, HW), 1) % W
    is_c0, is_c1 = col == 0, col == 1
    is_cl1, is_cl2 = col == W - 1, col == W - 2

    # Stacked 3x3 weights (already in compute dtype), sliced once.
    w21s = w3_ref[:, 0:9 * half]              # taps of in2 (dilation 2)
    w22s = w3_ref[:, 9 * half:27 * half]      # [o21 taps | o1 taps]
    w23s = w3_ref[:, 27 * half:45 * half]     # [o1 taps  | o22 taps]

    def rowpad1(o):
        # o (half, H*W) f32 -> p1_ref as a reflect-ROW-padded (pad=1) flat buffer.
        # Boundary rows come straight from the in-register value (no store->load RAW).
        p1_ref[:, W:W + HW] = o                                              # interior
        p1_ref[:, 0:W] = o[:, W:2 * W]                                       # row -1 = 1
        p1_ref[:, (H + 1) * W:(H + 2) * W] = o[:, (H - 2) * W:(H - 1) * W]   # row H = H-2

    def build_taps(pref, dil, row0):
        # im2col: scatter the 9 (half, HW) taps of the row-padded buffer `pref` into
        # stack_ref rows [row0, row0 + 9*half).  Each row band is loaded ONCE; the
        # +/-dil column shifts are XLU rolls whose wrapped lanes land exactly on the
        # columns that the reflection select overrides, so no garbage reaches the MXU.
        for kh in range(3):
            base = kh * dil * W
            s0 = pref[:, base:base + HW]
            sm = pltpu.roll(s0, dil % HW, 1)           # column offset -dil
            sp = pltpu.roll(s0, (HW - dil) % HW, 1)    # column offset +dil
            if dil == 1:
                left = jnp.where(is_c0, sp, sm)
                right = jnp.where(is_cl1, sm, sp)
            else:  # dil == 2
                left = jnp.where(is_c0, sp, jnp.where(is_c1, s0, sm))
                right = jnp.where(is_cl1, sm, jnp.where(is_cl2, s0, sp))
            t = 3 * kh
            stack_ref[row0 + t * half:row0 + (t + 1) * half, :] = left
            stack_ref[row0 + (t + 1) * half:row0 + (t + 2) * half, :] = s0
            stack_ref[row0 + (t + 2) * half:row0 + (t + 3) * half, :] = right

    def conv_stacked(w, lo, hi, relu):
        # ONE MXU dot per stage: (half, K) @ (K, HW), K = 9*half or 18*half.
        s = jnp.dot(w, stack_ref[lo:hi, :].astype(cd), preferred_element_type=f32)
        return _instance_norm(s, relu)

    for b in range(bs):  # static loop; all samples in this grid step share the scratch
        # ---- conv_block_1: 1x1 conv + IN + ReLU -----------------------------------
        o1 = _instance_norm(
            jnp.dot(w1_ref[...], in1_ref[b].astype(cd), preferred_element_type=f32),
            relu=True)
        rowpad1(o1)
        build_taps(p1_ref, 1, 9 * half)          # o1 taps -> stack[9h:18h) (reused 2x)

        # ---- conv_block_2_1: in-kernel reflect-pad 2 + 3x3 dil-2 conv + IN + ReLU --
        x2 = in2_ref[b].astype(f32)
        p2_ref[:, 2 * W:2 * W + HW] = x2
        p2_ref[:, 0:W] = x2[:, 2 * W:3 * W]                                   # row -2 = 2
        p2_ref[:, W:2 * W] = x2[:, W:2 * W]                                   # row -1 = 1
        p2_ref[:, (H + 2) * W:(H + 3) * W] = x2[:, (H - 2) * W:(H - 1) * W]   # row H
        p2_ref[:, (H + 3) * W:(H + 4) * W] = x2[:, (H - 3) * W:(H - 2) * W]   # row H+1
        build_taps(p2_ref, 2, 0)                 # in2 taps -> stack[0:9h) (transient)
        o21 = conv_stacked(w21s, 0, 9 * half, relu=True)

        # ---- conv_block_2_2: 3x3 conv on cat([o21, o1]) -> one K=18*half dot --------
        rowpad1(o21)
        build_taps(p1_ref, 1, 0)                 # o21 taps -> stack[0:9h)
        o22 = conv_stacked(w22s, 0, 18 * half, relu=True)

        # ---- conv_block_2_3: 3x3 conv on cat([o22, o1]) -> one K=18*half dot --------
        rowpad1(o22)
        build_taps(p1_ref, 1, 18 * half)         # o22 taps -> stack[18h:27h)
        o23 = conv_stacked(w23s, 9 * half, 27 * half, relu=True)

        # ---- confusion: 1x1 conv on cat([o23, o1]) + IN (no ReLU), single dot -------
        stack_ref[0:half, :] = o23               # rows no longer needed; reuse as concat
        stack_ref[half:dim, :] = o1
        out = _instance_norm(
            jnp.dot(wc_ref[...], stack_ref[0:dim, :].astype(cd),
                    preferred_element_type=f32), relu=False)
        out_ref[b] = out.astype(out_ref.dtype)


def _stack_taps(w_oihw):
    # (Cout, Cin, 3, 3) -> (Cout, 9*Cin), column = (kh*3 + kw)*Cin + ci,
    # matching the im2col stack row order built by build_taps().
    co, ci, kh, kw = w_oihw.shape
    return jnp.transpose(w_oihw, (0, 2, 3, 1)).reshape(co, kh * kw * ci)


def msfm_forward(x, params, *, compute_dtype=jnp.bfloat16):
    """Fused MSFM forward (single pallas_call). x: (N, dim, H, W) NCHW."""
    N, dim, H, W = x.shape
    half = dim // 2
    HW = H * W

    in1 = x[:, :half].reshape(N, half, HW)
    in2 = x[:, half:].reshape(N, half, HW)      # reflect padding happens in-kernel

    # Split-weight, tap-stacked form:
    #   conv(cat(a, b), W) == [taps(W_a) | taps(W_b)] @ [im2col(a) ; im2col(b)].
    # Conv biases are dropped: InstanceNorm2d(affine=False) cancels them exactly.
    w1 = params["w1"].astype(compute_dtype)                              # (half, half)
    w21s = _stack_taps(params["w21"])                                    # (half, 9h)
    w22s = jnp.concatenate([_stack_taps(params["w22"][:, :half]),        # o21 taps
                            _stack_taps(params["w22"][:, half:])],       # o1 taps
                           axis=1)
    w23s = jnp.concatenate([_stack_taps(params["w23"][:, half:]),        # o1 taps
                            _stack_taps(params["w23"][:, :half])],       # o22 taps
                           axis=1)
    w3 = jnp.concatenate([w21s, w22s, w23s], axis=1).astype(compute_dtype)  # (half, 45h)
    wc = params["wc"].astype(compute_dtype)                              # (dim, dim)

    # Samples per grid step: a single step for small problems (avoids ~0.35us/step
    # overhead), more steps once the per-step activation footprint grows.
    per_sample = (2 * half * HW + dim * HW) * x.dtype.itemsize * 2   # double-buffered
    bs = int(max(1, min(N, (8 * 1024 * 1024) // max(per_sample, 1))))
    while N % bs:
        bs -= 1

    kernel = functools.partial(_msfm_kernel, H=H, W=W, compute_dtype=compute_dtype)

    flops = 2 * N * HW * (half * half * (1 + 9 + 18 + 18) + dim * dim)
    cost = pl.CostEstimate(
        flops=flops,
        transcendentals=N * (4 * half + dim),
        bytes_accessed=(in1.size + in2.size + N * dim * HW) * x.dtype.itemsize
        + (w1.size + w3.size + wc.size) * jnp.dtype(compute_dtype).itemsize)

    out_flat = pl.pallas_call(
        kernel,
        out_shape=jax.ShapeDtypeStruct((N, dim, HW), x.dtype),
        grid=(N // bs,),
        in_specs=[
            pl.BlockSpec((bs, half, HW), lambda g: (g, 0, 0)),      # in1 (lane-dense)
            pl.BlockSpec((bs, half, HW), lambda g: (g, 0, 0)),      # in2 (lane-dense)
            pl.BlockSpec((half, half), lambda g: (0, 0)),           # w1
            pl.BlockSpec((half, 45 * half), lambda g: (0, 0)),      # stacked 3x3 weights
            pl.BlockSpec((dim, dim), lambda g: (0, 0)),             # wc
        ],
        out_specs=pl.BlockSpec((bs, dim, HW), lambda g: (g, 0, 0)),
        scratch_shapes=[
            pltpu.VMEM((half, (H + 2) * W), jnp.float32),   # pad-1 row buffer (o1/o21/o22)
            pltpu.VMEM((half, (H + 4) * W), jnp.float32),   # pad-2 row buffer (in2)
            pltpu.VMEM((27 * half, HW), jnp.float32),       # im2col stack [o21 | o1 | o22]
        ],
        compiler_params=pltpu.CompilerParams(dimension_semantics=("parallel",)),
        cost_estimate=cost,
    )(in1, in2, w1, w3, wc)

    return out_flat.reshape(N, dim, H, W)


# -------------------------------------------------------------------------------------
# Pure-JAX reference (NCHW, bias kept -- it cancels in InstanceNorm).  compute_dtype
# lets us build a matching bf16-operand reference for the performance configuration.
# -------------------------------------------------------------------------------------
def _conv_in_ref(x, w_oihw, b, *, dil, pad, relu, compute_dtype):
    if pad > 0:
        x = jnp.pad(x, ((0, 0), (0, 0), (pad, pad), (pad, pad)), mode="reflect")
    prec = (lax.Precision.HIGHEST if compute_dtype == jnp.float32
            else lax.Precision.DEFAULT)
    y = lax.conv_general_dilated(
        x.astype(compute_dtype), w_oihw.astype(compute_dtype),
        window_strides=(1, 1), padding="VALID", rhs_dilation=(dil, dil),
        dimension_numbers=("NCHW", "OIHW", "NCHW"),
        preferred_element_type=jnp.float32, precision=prec)
    y = y + b[None, :, None, None]
    mean = jnp.mean(y, axis=(2, 3), keepdims=True)
    var = jnp.mean((y - mean) ** 2, axis=(2, 3), keepdims=True)
    y = (y - mean) / jnp.sqrt(var + EPS)
    return jnp.maximum(y, 0.0) if relu else y


def msfm_ref(x, p, compute_dtype=jnp.float32):
    dim = x.shape[1]
    half = dim // 2
    cd = compute_dtype
    in1, in2 = x[:, :half], x[:, half:]
    o1 = _conv_in_ref(in1, p["w1"].reshape(half, half, 1, 1), p["b1"],
                      dil=1, pad=0, relu=True, compute_dtype=cd)
    o21 = _conv_in_ref(in2, p["w21"], p["b21"], dil=2, pad=2, relu=True,
                       compute_dtype=cd)
    o22 = _conv_in_ref(jnp.concatenate([o21, o1], 1), p["w22"], p["b22"],
                       dil=1, pad=1, relu=True, compute_dtype=cd)
    o23 = _conv_in_ref(jnp.concatenate([o22, o1], 1), p["w23"], p["b23"],
                       dil=1, pad=1, relu=True, compute_dtype=cd)
    return _conv_in_ref(jnp.concatenate([o23, o1], 1),
                        p["wc"].reshape(dim, dim, 1, 1), p["bc"],
                        dil=1, pad=0, relu=False, compute_dtype=cd)


# -------------------------------------------------------------------------------------
# Deterministic parameter init (shapes follow MSFM.__init__, use_spectral_norm=False).
# -------------------------------------------------------------------------------------
def init_params(dim, key):
    half = dim // 2
    ks = jax.random.split(key, 10)

    def wconv(k, cout, cin, ksz):
        return (jax.random.normal(k, (cout, cin, ksz, ksz), jnp.float32)
                / np.sqrt(cin * ksz * ksz))

    def w1x1(k, cout, cin):
        return jax.random.normal(k, (cout, cin), jnp.float32) / np.sqrt(cin)

    def bias(k, cout):
        return 0.1 * jax.random.normal(k, (cout,), jnp.float32)

    return {
        "w1": w1x1(ks[0], half, half), "b1": bias(ks[1], half),
        "w21": wconv(ks[2], half, half, 3), "b21": bias(ks[3], half),
        "w22": wconv(ks[4], half, dim, 3), "b22": bias(ks[5], half),
        "w23": wconv(ks[6], half, dim, 3), "b23": bias(ks[7], half),
        "wc": w1x1(ks[8], dim, dim), "bc": bias(ks[9], dim),
    }


if __name__ == "__main__":
    N, DIM, H, W = 2, 4, 16, 16
    key = jax.random.PRNGKey(0)
    kx, kp = jax.random.split(key)

    x = jax.random.normal(kx, (N, DIM, H, W), jnp.float32)   # NCHW like the module
    params = init_params(DIM, kp)

    # 1) Exact-semantics check: f32 MXU operands vs f32 reference (tight tolerance).
    out_f32 = jax.block_until_ready(
        jax.jit(functools.partial(msfm_forward, compute_dtype=jnp.float32))(x, params))
    assert out_f32.shape == (N, DIM, H, W), out_f32.shape
    ref_f32 = jax.block_until_ready(msfm_ref(x, params, compute_dtype=jnp.float32))
    np.testing.assert_allclose(np.asarray(out_f32), np.asarray(ref_f32),
                               rtol=5e-3, atol=5e-3)

    # 2) Performance configuration: bf16 MXU operands (f32 accumulate, f32 InstanceNorm),
    #    checked against a matching bf16-operand reference.
    out = jax.block_until_ready(jax.jit(msfm_forward)(x, params))
    assert out.shape == (N, DIM, H, W), out.shape
    ref_bf16 = jax.block_until_ready(msfm_ref(x, params, compute_dtype=jnp.bfloat16))
    np.testing.assert_allclose(np.asarray(out), np.asarray(ref_bf16),
                               rtol=5e-2, atol=5e-2)

    print("KERNEL_OK")
</pallas_src>

<mosaic_0001>
module attributes {stable_mosaic.version = 11 : i64} {
  func.func @_msfm_kernel(%arg0: i32, %arg1: memref<2x2x256xf32, #tpu.memory_space<vmem>>, %arg2: memref<2x2x256xf32, #tpu.memory_space<vmem>>, %arg3: memref<2x2xf32, #tpu.memory_space<vmem>>, %arg4: memref<2x90xf32, #tpu.memory_space<vmem>>, %arg5: memref<4x4xf32, #tpu.memory_space<vmem>>, %arg6: memref<2x4x256xf32, #tpu.memory_space<vmem>>, %arg7: memref<2x288xf32, #tpu.memory_space<vmem>>, %arg8: memref<2x320xf32, #tpu.memory_space<vmem>>, %arg9: memref<54x256xf32, #tpu.memory_space<vmem>>) attributes {dimension_semantics = [#tpu.dimension_semantics<parallel>], iteration_bounds = array<i64: 1>, scalar_prefetch = 0 : i64, scratch_operands = 3 : i64, tpu.core_type = #tpu.core_type<tc>, window_params = [{transform_indices = @transform_0, window_bounds = array<i64: 2, 2, 256>}, {transform_indices = @transform_1, window_bounds = array<i64: 2, 2, 256>}, {pipeline_mode = #tpu.pipeline_mode<synchronous>, transform_indices = @transform_2, window_bounds = array<i64: 2, 2>}, {pipeline_mode = #tpu.pipeline_mode<synchronous>, transform_indices = @transform_3, window_bounds = array<i64: 2, 90>}, {pipeline_mode = #tpu.pipeline_mode<synchronous>, transform_indices = @transform_4, window_bounds = array<i64: 4, 4>}, {transform_indices = @transform_5, window_bounds = array<i64: 2, 4, 256>}]} {
    %0 = tpu.iota {dimensions = array<i32: 1>} : vector<1x256xi32>
    %c16_i32 = arith.constant 16 : i32
    %c0_i32 = arith.constant 0 : i32
    %1 = arith.cmpi eq, %c16_i32, %c0_i32 : i32
    %c1_i32 = arith.constant 1 : i32
    %2 = arith.select %1, %c1_i32, %c16_i32 : i32
    %3 = vector.broadcast %2 : i32 to vector<1x256xi32>
    %4 = arith.remsi %0, %3 : vector<1x256xi32>
    %c0_i32_0 = arith.constant 0 : i32
    %5 = vector.broadcast %c0_i32_0 : i32 to vector<1x256xi32>
    %6 = arith.cmpi ne, %4, %5 : vector<1x256xi32>
    %c0_i32_1 = arith.constant 0 : i32
    %7 = vector.broadcast %c0_i32_1 : i32 to vector<1x256xi32>
    %8 = arith.cmpi slt, %4, %7 : vector<1x256xi32>
    %c0_i32_2 = arith.constant 0 : i32
    %9 = arith.cmpi slt, %2, %c0_i32_2 : i32
    %10 = vector.broadcast %9 : i1 to vector<1x256xi1>
    %11 = vector.broadcast %10 : vector<1x256xi1> to vector<1x256xi1>
    %12 = arith.xori %8, %11 : vector<1x256xi1>
    %13 = arith.andi %12, %6 : vector<1x256xi1>
    %14 = vector.broadcast %2 : i32 to vector<1x256xi32>
    %15 = arith.addi %4, %14 : vector<1x256xi32>
    %16 = arith.select %13, %15, %4 : vector<1x256xi1>, vector<1x256xi32>
    %c0_i32_3 = arith.constant 0 : i32
    %17 = vector.broadcast %c0_i32_3 : i32 to vector<1x256xi32>
    %18 = arith.cmpi eq, %16, %17 : vector<1x256xi32>
    %c1_i32_4 = arith.constant 1 : i32
    %19 = vector.broadcast %c1_i32_4 : i32 to vector<1x256xi32>
    %20 = arith.cmpi eq, %16, %19 : vector<1x256xi32>
    %c15_i32 = arith.constant 15 : i32
    %21 = vector.broadcast %c15_i32 : i32 to vector<1x256xi32>
    %22 = arith.cmpi eq, %16, %21 : vector<1x256xi32>
    %c14_i32 = arith.constant 14 : i32
    %23 = vector.broadcast %c14_i32 : i32 to vector<1x256xi32>
    %24 = arith.cmpi eq, %16, %23 : vector<1x256xi32>
    %c0 = arith.constant 0 : index
    %c0_5 = arith.constant 0 : index
    %25 = vector.load %arg4[%c0, %c0_5] : memref<2x90xf32, #tpu.memory_space<vmem>>, vector<2x18xf32>
    %c0_6 = arith.constant 0 : index
    %c18 = arith.constant 18 : index
    %26 = vector.load %arg4[%c0_6, %c18] : memref<2x90xf32, #tpu.memory_space<vmem>>, vector<2x36xf32>
    %c0_7 = arith.constant 0 : index
    %c54 = arith.constant 54 : index
    %27 = vector.load %arg4[%c0_7, %c54] : memref<2x90xf32, #tpu.memory_space<vmem>>, vector<2x36xf32>
    %c0_8 = arith.constant 0 : index
    %c0_9 = arith.constant 0 : index
    %28 = vector.load %arg3[%c0_8, %c0_9] : memref<2x2xf32, #tpu.memory_space<vmem>>, vector<2x2xf32>
    %c0_10 = arith.constant 0 : index
    %c0_11 = arith.constant 0 : index
    %c0_12 = arith.constant 0 : index
    %29 = vector.load %arg1[%c0_10, %c0_11, %c0_12] : memref<2x2x256xf32, #tpu.memory_space<vmem>>, vector<1x2x256xf32>
    %30 = vector.shape_cast %29 : vector<1x2x256xf32> to vector<2x256xf32>
    %cst = arith.constant dense<0.000000e+00> : vector<2x256xf32>
    %31 = tpu.matmul %28, %30, %cst {dimension_numbers = #tpu.dot_dimension_numbers<[1], [0], [0], [1], [0, 0, 1, 1], [], []>} : vector<2x2xf32>, vector<2x256xf32>, vector<2x256xf32> -> vector<2x256xf32>
    %cst_13 = arith.constant dense<0.000000e+00> : vector<2xf32>
    %32 = vector.multi_reduction <add>, %31, %cst_13 [1] : vector<2x256xf32> to vector<2xf32>
    %33 = vector.shape_cast %32 : vector<2xf32> to vector<2x1xf32>
    %cst_14 = arith.constant 3.906250e-03 : f32
    %34 = vector.broadcast %cst_14 : f32 to vector<2x1xf32>
    %35 = arith.mulf %33, %34 : vector<2x1xf32>
    %36 = arith.mulf %31, %31 : vector<2x256xf32>
    %cst_15 = arith.constant dense<0.000000e+00> : vector<2xf32>
    %37 = vector.multi_reduction <add>, %36, %cst_15 [1] : vector<2x256xf32> to vector<2xf32>
    %38 = vector.shape_cast %37 : vector<2xf32> to vector<2x1xf32>
    %cst_16 = arith.constant 3.906250e-03 : f32
    %39 = vector.broadcast %cst_16 : f32 to vector<2x1xf32>
    %40 = arith.mulf %38, %39 : vector<2x1xf32>
    %41 = arith.mulf %35, %35 : vector<2x1xf32>
    %42 = arith.subf %40, %41 : vector<2x1xf32>
    %cst_17 = arith.constant 0.000000e+00 : f32
    %43 = vector.broadcast %cst_17 : f32 to vector<2x1xf32>
    %44 = arith.maximumf %42, %43 : vector<2x1xf32>
    %45 = vector.broadcast %35 : vector<2x1xf32> to vector<2x256xf32>
    %46 = arith.subf %31, %45 : vector<2x256xf32>
    %cst_18 = arith.constant 9.99999974E-6 : f32
    %47 = vector.broadcast %cst_18 : f32 to vector<2x1xf32>
    %48 = arith.addf %44, %47 : vector<2x1xf32>
    %49 = math.rsqrt %48 : vector<2x1xf32>
    %50 = vector.broadcast %49 : vector<2x1xf32> to vector<2x256xf32>
    %51 = arith.mulf %46, %50 : vector<2x256xf32>
    %cst_19 = arith.constant 0.000000e+00 : f32
    %52 = vector.broadcast %cst_19 : f32 to vector<2x256xf32>
    %53 = arith.maximumf %51, %52 : vector<2x256xf32>
    %c0_20 = arith.constant 0 : index
    %c16 = arith.constant 16 : index
    %54 = vector.load %arg7[%c0_20, %c16] : memref<2x288xf32, #tpu.memory_space<vmem>>, vector<2x256xf32>
    tpu.vector_store %arg7[%c0_20, %c16], %53 {strides = array<i32>} : memref<2x288xf32, #tpu.memory_space<vmem>>, vector<2x256xf32>,
    %55 = vector.extract_strided_slice %53 {offsets = [0, 16], sizes = [2, 16], strides = [1, 1]} : vector<2x256xf32> to vector<2x16xf32>
    %c0_21 = arith.constant 0 : index
    %c0_22 = arith.constant 0 : index
    %56 = vector.load %arg7[%c0_21, %c0_22] : memref<2x288xf32, #tpu.memory_space<vmem>>, vector<2x16xf32>
    tpu.vector_store %arg7[%c0_21, %c0_22], %55 {strides = array<i32>} : memref<2x288xf32, #tpu.memory_space<vmem>>, vector<2x16xf32>,
    %57 = vector.extract_strided_slice %53 {offsets = [0, 224], sizes = [2, 16], strides = [1, 1]} : vector<2x256xf32> to vector<2x16xf32>
    %c0_23 = arith.constant 0 : index
    %c272 = arith.constant 272 : index
    %58 = vector.load %arg7[%c0_23, %c272] : memref<2x288xf32, #tpu.memory_space<vmem>>, vector<2x16xf32>
    tpu.vector_store %arg7[%c0_23, %c272], %57 {strides = array<i32>} : memref<2x288xf32, #tpu.memory_space<vmem>>, vector<2x16xf32>,
    %c0_24 = arith.constant 0 : index
    %c0_25 = arith.constant 0 : index
    %59 = vector.load %arg7[%c0_24, %c0_25] : memref<2x288xf32, #tpu.memory_space<vmem>>, vector<2x256xf32>
    %c1_i32_26 = arith.constant 1 : i32
    %60 = tpu.dynamic_rotate %59 by %c1_i32_26 dim 1 : vector<2x256xf32>, i32 -> vector<2x256xf32>
    %c255_i32 = arith.constant 255 : i32
    %61 = tpu.dynamic_rotate %59 by %c255_i32 dim 1 : vector<2x256xf32>, i32 -> vector<2x256xf32>
    %62 = vector.shape_cast %18 : vector<1x256xi1> to vector<1x256xi1>
    %63 = vector.broadcast %62 : vector<1x256xi1> to vector<2x256xi1>
    %64 = arith.select %63, %61, %60 : vector<2x256xi1>, vector<2x256xf32>
    %65 = vector.shape_cast %22 : vector<1x256xi1> to vector<1x256xi1>
    %66 = vector.broadcast %65 : vector<1x256xi1> to vector<2x256xi1>
    %67 = arith.select %66, %60, %61 : vector<2x256xi1>, vector<2x256xf32>
    %c18_27 = arith.constant 18 : index
    %c0_28 = arith.constant 0 : index
    %68 = vector.load %arg9[%c18_27, %c0_28] : memref<54x256xf32, #tpu.memory_space<vmem>>, vector<2x256xf32>
    tpu.vector_store %arg9[%c18_27, %c0_28], %64 {strides = array<i32>} : memref<54x256xf32, #tpu.memory_space<vmem>>, vector<2x256xf32>,
    %c20 = arith.constant 20 : index
    %c0_29 = arith.constant 0 : index
    %69 = vector.load %arg9[%c20, %c0_29] : memref<54x256xf32, #tpu.memory_space<vmem>>, vector<2x256xf32>
    tpu.vector_store %arg9[%c20, %c0_29], %59 {strides = array<i32>} : memref<54x256xf32, #tpu.memory_space<vmem>>, vector<2x256xf32>,
    %c22 = arith.constant 22 : index
    %c0_30 = arith.constant 0 : index
    %70 = vector.load %arg9[%c22, %c0_30] : memref<54x256xf32, #tpu.memory_space<vmem>>, vector<2x256xf32>
    tpu.vector_store %arg9[%c22, %c0_30], %67 {strides = array<i32>} : memref<54x256xf32, #tpu.memory_space<vmem>>, vector<2x256xf32>,
    %c0_31 = arith.constant 0 : index
    %c16_32 = arith.constant 16 : index
    %71 = vector.load %arg7[%c0_31, %c16_32] : memref<2x288xf32, #tpu.memory_space<vmem>>, vector<2x256xf32>
    %c1_i32_33 = arith.constant 1 : i32
    %72 = tpu.dynamic_rotate %71 by %c1_i32_33 dim 1 : vector<2x256xf32>, i32 -> vector<2x256xf32>
    %c255_i32_34 = arith.constant 255 : i32
    %73 = tpu.dynamic_rotate %71 by %c255_i32_34 dim 1 : vector<2x256xf32>, i32 -> vector<2x256xf32>
    %74 = vector.shape_cast %18 : vector<1x256xi1> to vector<1x256xi1>
    %75 = vector.broadcast %74 : vector<1x256xi1> to vector<2x256xi1>
    %76 = arith.select %75, %73, %72 : vector<2x256xi1>, vector<2x256xf32>
    %77 = vector.shape_cast %22 : vector<1x256xi1> to vector<1x256xi1>
    %78 = vector.broadcast %77 : vector<1x256xi1> to vector<2x256xi1>
    %79 = arith.select %78, %72, %73 : vector<2x256xi1>, vector<2x256xf32>
    %c24 = arith.constant 24 : index
    %c0_35 = arith.constant 0 : index
    %80 = vector.load %arg9[%c24, %c0_35] : memref<54x256xf32, #tpu.memory_space<vmem>>, vector<2x256xf32>
    tpu.vector_store %arg9[%c24, %c0_35], %76 {strides = array<i32>} : memref<54x256xf32, #tpu.memory_space<vmem>>, vector<2x256xf32>,
    %c26 = arith.constant 26 : index
    %c0_36 = arith.constant 0 : index
    %81 = vector.load %arg9[%c26, %c0_36] : memref<54x256xf32, #tpu.memory_space<vmem>>, vector<2x256xf32>
    tpu.vector_store %arg9[%c26, %c0_36], %71 {strides = array<i32>} : memref<54x256xf32, #tpu.memory_space<vmem>>, vector<2x256xf32>,
    %c28 = arith.constant 28 : index
    %c0_37 = arith.constant 0 : index
    %82 = vector.load %arg9[%c28, %c0_37] : memref<54x256xf32, #tpu.memory_space<vmem>>, vector<2x256xf32>
    tpu.vector_store %arg9[%c28, %c0_37], %79 {strides = array<i32>} : memref<54x256xf32, #tpu.memory_space<vmem>>, vector<2x256xf32>,
    %c0_38 = arith.constant 0 : index
    %c32 = arith.constant 32 : index
    %83 = vector.load %arg7[%c0_38, %c32] : memref<2x288xf32, #tpu.memory_space<vmem>>, vector<2x256xf32>
    %c1_i32_39 = arith.constant 1 : i32
    %84 = tpu.dynamic_rotate %83 by %c1_i32_39 dim 1 : vector<2x256xf32>, i32 -> vector<2x256xf32>
    %c255_i32_40 = arith.constant 255 : i32
    %85 = tpu.dynamic_rotate %83 by %c255_i32_40 dim 1 : vector<2x256xf32>, i32 -> vector<2x256xf32>
    %86 = vector.shape_cast %18 : vector<1x256xi1> to vector<1x256xi1>
    %87 = vector.broadcast %86 : vector<1x256xi1> to vector<2x256xi1>
    %88 = arith.select %87, %85, %84 : vector<2x256xi1>, vector<2x256xf32>
    %89 = vector.shape_cast %22 : vector<1x256xi1> to vector<1x256xi1>
    %90 = vector.broadcast %89 : vector<1x256xi1> to vector<2x256xi1>
    %91 = arith.select %90, %84, %85 : vector<2x256xi1>, vector<2x256xf32>
    %c30 = arith.constant 30 : index
    %c0_41 = arith.constant 0 : index
    %92 = vector.load %arg9[%c30, %c0_41] : memref<54x256xf32, #tpu.memory_space<vmem>>, vector<2x256xf32>
    tpu.vector_store %arg9[%c30, %c0_41], %88 {strides = array<i32>} : memref<54x256xf32, #tpu.memory_space<vmem>>, vector<2x256xf32>,
    %c32_42 = arith.constant 32 : index
    %c0_43 = arith.constant 0 : index
    %93 = vector.load %arg9[%c32_42, %c0_43] : memref<54x256xf32, #tpu.memory_space<vmem>>, vector<2x256xf32>
    tpu.vector_store %arg9[%c32_42, %c0_43], %83 {strides = array<i32>} : memref<54x256xf32, #tpu.memory_space<vmem>>, vector<2x256xf32>,
    %c34 = arith.constant 34 : index
    %c0_44 = arith.constant 0 : index
    %94 = vector.load %arg9[%c34, %c0_44] : memref<54x256xf32, #tpu.memory_space<vmem>>, vector<2x256xf32>
    tpu.vector_store %arg9[%c34, %c0_44], %91 {strides = array<i32>} : memref<54x256xf32, #tpu.memory_space<vmem>>, vector<2x256xf32>,
    %c0_45 = arith.constant 0 : index
    %c0_46 = arith.constant 0 : index
    %c0_47 = arith.constant 0 : index
    %95 = vector.load %arg2[%c0_45, %c0_46, %c0_47] : memref<2x2x256xf32, #tpu.memory_space<vmem>>, vector<1x2x256xf32>
    %96 = vector.shape_cast %95 : vector<1x2x256xf32> to vector<2x256xf32>
    %c0_48 = arith.constant 0 : index
    %c32_49 = arith.constant 32 : index
    %97 = vector.load %arg8[%c0_48, %c32_49] : memref<2x320xf32, #tpu.memory_space<vmem>>, vector<2x256xf32>
    tpu.vector_store %arg8[%c0_48, %c32_49], %96 {strides = array<i32>} : memref<2x320xf32, #tpu.memory_space<vmem>>, vector<2x256xf32>,
    %98 = vector.extract_strided_slice %96 {offsets = [0, 32], sizes = [2, 16], strides = [1, 1]} : vector<2x256xf32> to vector<2x16xf32>
    %c0_50 = arith.constant 0 : index
    %c0_51 = arith.constant 0 : index
    %99 = vector.load %arg8[%c0_50, %c0_51] : memref<2x320xf32, #tpu.memory_space<vmem>>, vector<2x16xf32>
    tpu.vector_store %arg8[%c0_50, %c0_51], %98 {strides = array<i32>} : memref<2x320xf32, #tpu.memory_space<vmem>>, vector<2x16xf32>,
    %100 = vector.extract_strided_slice %96 {offsets = [0, 16], sizes = [2, 16], strides = [1, 1]} : vector<2x256xf32> to vector<2x16xf32>
    %c0_52 = arith.constant 0 : index
    %c16_53 = arith.constant 16 : index
    %101 = vector.load %arg8[%c0_52, %c16_53] : memref<2x320xf32, #tpu.memory_space<vmem>>, vector<2x16xf32>
    tpu.vector_store %arg8[%c0_52, %c16_53], %100 {strides = array<i32>} : memref<2x320xf32, #tpu.memory_space<vmem>>, vector<2x16xf32>,
    %102 = vector.extract_strided_slice %96 {offsets = [0, 224], sizes = [2, 16], strides = [1, 1]} : vector<2x256xf32> to vector<2x16xf32>
    %c0_54 = arith.constant 0 : index
    %c288 = arith.constant 288 : index
    %103 = vector.load %arg8[%c0_54, %c288] : memref<2x320xf32, #tpu.memory_space<vmem>>, vector<2x16xf32>
    tpu.vector_store %arg8[%c0_54, %c288], %102 {strides = array<i32>} : memref<2x320xf32, #tpu.memory_space<vmem>>, vector<2x16xf32>,
    %104 = vector.extract_strided_slice %96 {offsets = [0, 208], sizes = [2, 16], strides = [1, 1]} : vector<2x256xf32> to vector<2x16xf32>
    %c0_55 = arith.constant 0 : index
    %c304 = arith.constant 304 : index
    %105 = vector.load %arg8[%c0_55, %c304] : memref<2x320xf32, #tpu.memory_space<vmem>>, vector<2x16xf32>
    tpu.vector_store %arg8[%c0_55, %c304], %104 {strides = array<i32>} : memref<2x320xf32, #tpu.memory_space<vmem>>, vector<2x16xf32>,
    %c0_56 = arith.constant 0 : index
    %c0_57 = arith.constant 0 : index
    %106 = vector.load %arg8[%c0_56, %c0_57] : memref<2x320xf32, #tpu.memory_space<vmem>>, vector<2x256xf32>
    %c2_i32 = arith.constant 2 : i32
    %107 = tpu.dynamic_rotate %106 by %c2_i32 dim 1 : vector<2x256xf32>, i32 -> vector<2x256xf32>
    %c254_i32 = arith.constant 254 : i32
    %108 = tpu.dynamic_rotate %106 by %c254_i32 dim 1 : vector<2x256xf32>, i32 -> vector<2x256xf32>
    %109 = vector.shape_cast %20 : vector<1x256xi1> to vector<1x256xi1>
    %110 = vector.broadcast %109 : vector<1x256xi1> to vector<2x256xi1>
    %111 = arith.select %110, %106, %107 : vector<2x256xi1>, vector<2x256xf32>
    %112 = vector.shape_cast %18 : vector<1x256xi1> to vector<1x256xi1>
    %113 = vector.broadcast %112 : vector<1x256xi1> to vector<2x256xi1>
    %114 = arith.select %113, %108, %111 : vector<2x256xi1>, vector<2x256xf32>
    %115 = vector.shape_cast %24 : vector<1x256xi1> to vector<1x256xi1>
    %116 = vector.broadcast %115 : vector<1x256xi1> to vector<2x256xi1>
    %117 = arith.select %116, %106, %108 : vector<2x256xi1>, vector<2x256xf32>
    %118 = vector.shape_cast %22 : vector<1x256xi1> to vector<1x256xi1>
    %119 = vector.broadcast %118 : vector<1x256xi1> to vector<2x256xi1>
    %120 = arith.select %119, %107, %117 : vector<2x256xi1>, vector<2x256xf32>
    %c0_58 = arith.constant 0 : index
    %c0_59 = arith.constant 0 : index
    %121 = vector.load %arg9[%c0_58, %c0_59] : memref<54x256xf32, #tpu.memory_space<vmem>>, vector<2x256xf32>
    tpu.vector_store %arg9[%c0_58, %c0_59], %114 {strides = array<i32>} : memref<54x256xf32, #tpu.memory_space<vmem>>, vector<2x256xf32>,
    %c2 = arith.constant 2 : index
    %c0_60 = arith.constant 0 : index
    %122 = vector.load %arg9[%c2, %c0_60] : memref<54x256xf32, #tpu.memory_space<vmem>>, vector<2x256xf32>
    tpu.vector_store %arg9[%c2, %c0_60], %106 {strides = array<i32>} : memref<54x256xf32, #tpu.memory_space<vmem>>, vector<2x256xf32>,
    %c4 = arith.constant 4 : index
    %c0_61 = arith.constant 0 : index
    %123 = vector.load %arg9[%c4, %c0_61] : memref<54x256xf32, #tpu.memory_space<vmem>>, vector<2x256xf32>
    tpu.vector_store %arg9[%c4, %c0_61], %120 {strides = array<i32>} : memref<54x256xf32, #tpu.memory_space<vmem>>, vector<2x256xf32>,
    %c0_62 = arith.constant 0 : index
    %c32_63 = arith.constant 32 : index
    %124 = vector.load %arg8[%c0_62, %c32_63] : memref<2x320xf32, #tpu.memory_space<vmem>>, vector<2x256xf32>
    %c2_i32_64 = arith.constant 2 : i32
    %125 = tpu.dynamic_rotate %124 by %c2_i32_64 dim 1 : vector<2x256xf32>, i32 -> vector<2x256xf32>
    %c254_i32_65 = arith.constant 254 : i32
    %126 = tpu.dynamic_rotate %124 by %c254_i32_65 dim 1 : vector<2x256xf32>, i32 -> vector<2x256xf32>
    %127 = vector.shape_cast %20 : vector<1x256xi1> to vector<1x256xi1>
    %128 = vector.broadcast %127 : vector<1x256xi1> to vector<2x256xi1>
    %129 = arith.select %128, %124, %125 : vector<2x256xi1>, vector<2x256xf32>
    %130 = vector.shape_cast %18 : vector<1x256xi1> to vector<1x256xi1>
    %131 = vector.broadcast %130 : vector<1x256xi1> to vector<2x256xi1>
    %132 = arith.select %131, %126, %129 : vector<2x256xi1>, vector<2x256xf32>
    %133 = vector.shape_cast %24 : vector<1x256xi1> to vector<1x256xi1>
    %134 = vector.broadcast %133 : vector<1x256xi1> to vector<2x256xi1>
    %135 = arith.select %134, %124, %126 : vector<2x256xi1>, vector<2x256xf32>
    %136 = vector.shape_cast %22 : vector<1x256xi1> to vector<1x256xi1>
    %137 = vector.broadcast %136 : vector<1x256xi1> to vector<2x256xi1>
    %138 = arith.select %137, %125, %135 : vector<2x256xi1>, vector<2x256xf32>
    %c6 = arith.constant 6 : index
    %c0_66 = arith.constant 0 : index
    %139 = vector.load %arg9[%c6, %c0_66] : memref<54x256xf32, #tpu.memory_space<vmem>>, vector<2x256xf32>
    tpu.vector_store %arg9[%c6, %c0_66], %132 {strides = array<i32>} : memref<54x256xf32, #tpu.memory_space<vmem>>, vector<2x256xf32>,
    %c8 = arith.constant 8 : index
    %c0_67 = arith.constant 0 : index
    %140 = vector.load %arg9[%c8, %c0_67] : memref<54x256xf32, #tpu.memory_space<vmem>>, vector<2x256xf32>
    tpu.vector_store %arg9[%c8, %c0_67], %124 {strides = array<i32>} : memref<54x256xf32, #tpu.memory_space<vmem>>, vector<2x256xf32>,
    %c10 = arith.constant 10 : index
    %c0_68 = arith.constant 0 : index
    %141 = vector.load %arg9[%c10, %c0_68] : memref<54x256xf32, #tpu.memory_space<vmem>>, vector<2x256xf32>
    tpu.vector_store %arg9[%c10, %c0_68], %138 {strides = array<i32>} : memref<54x256xf32, #tpu.memory_space<vmem>>, vector<2x256xf32>,
    %c0_69 = arith.constant 0 : index
    %c64 = arith.constant 64 : index
    %142 = vector.load %arg8[%c0_69, %c64] : memref<2x320xf32, #tpu.memory_space<vmem>>, vector<2x256xf32>
    %c2_i32_70 = arith.constant 2 : i32
    %143 = tpu.dynamic_rotate %142 by %c2_i32_70 dim 1 : vector<2x256xf32>, i32 -> vector<2x256xf32>
    %c254_i32_71 = arith.constant 254 : i32
    %144 = tpu.dynamic_rotate %142 by %c254_i32_71 dim 1 : vector<2x256xf32>, i32 -> vector<2x256xf32>
    %145 = vector.shape_cast %20 : vector<1x256xi1> to vector<1x256xi1>
    %146 = vector.broadcast %145 : vector<1x256xi1> to vector<2x256xi1>
    %147 = arith.select %146, %142, %143 : vector<2x256xi1>, vector<2x256xf32>
    %148 = vector.shape_cast %18 : vector<1x256xi1> to vector<1x256xi1>
    %149 = vector.broadcast %148 : vector<1x256xi1> to vector<2x256xi1>
    %150 = arith.select %149, %144, %147 : vector<2x256xi1>, vector<2x256xf32>
    %151 = vector.shape_cast %24 : vector<1x256xi1> to vector<1x256xi1>
    %152 = vector.broadcast %151 : vector<1x256xi1> to vector<2x256xi1>
    %153 = arith.select %152, %142, %144 : vector<2x256xi1>, vector<2x256xf32>
    %154 = vector.shape_cast %22 : vector<1x256xi1> to vector<1x256xi1>
    %155 = vector.broadcast %154 : vector<1x256xi1> to vector<2x256xi1>
    %156 = arith.select %155, %143, %153 : vector<2x256xi1>, vector<2x256xf32>
    %c12 = arith.constant 12 : index
    %c0_72 = arith.constant 0 : index
    %157 = vector.load %arg9[%c12, %c0_72] : memref<54x256xf32, #tpu.memory_space<vmem>>, vector<2x256xf32>
    tpu.vector_store %arg9[%c12, %c0_72], %150 {strides = array<i32>} : memref<54x256xf32, #tpu.memory_space<vmem>>, vector<2x256xf32>,
    %c14 = arith.constant 14 : index
    %c0_73 = arith.constant 0 : index
    %158 = vector.load %arg9[%c14, %c0_73] : memref<54x256xf32, #tpu.memory_space<vmem>>, vector<2x256xf32>
    tpu.vector_store %arg9[%c14, %c0_73], %142 {strides = array<i32>} : memref<54x256xf32, #tpu.memory_space<vmem>>, vector<2x256xf32>,
    %c16_74 = arith.constant 16 : index
    %c0_75 = arith.constant 0 : index
    %159 = vector.load %arg9[%c16_74, %c0_75] : memref<54x256xf32, #tpu.memory_space<vmem>>, vector<2x256xf32>
    tpu.vector_store %arg9[%c16_74, %c0_75], %156 {strides = array<i32>} : memref<54x256xf32, #tpu.memory_space<vmem>>, vector<2x256xf32>,
    %c0_76 = arith.constant 0 : index
    %c0_77 = arith.constant 0 : index
    %160 = vector.load %arg9[%c0_76, %c0_77] : memref<54x256xf32, #tpu.memory_space<vmem>>, vector<18x256xf32>
    %cst_78 = arith.constant dense<0.000000e+00> : vector<2x256xf32>
    %161 = tpu.matmul %25, %160, %cst_78 {dimension_numbers = #tpu.dot_dimension_numbers<[1], [0], [0], [1], [0, 0, 1, 1], [], []>} : vector<2x18xf32>, vector<18x256xf32>, vector<2x256xf32> -> vector<2x256xf32>
    %cst_79 = arith.constant dense<0.000000e+00> : vector<2xf32>
    %162 = vector.multi_reduction <add>, %161, %cst_79 [1] : vector<2x256xf32> to vector<2xf32>
    %163 = vector.shape_cast %162 : vector<2xf32> to vector<2x1xf32>
    %cst_80 = arith.constant 3.906250e-03 : f32
    %164 = vector.broadcast %cst_80 : f32 to vector<2x1xf32>
    %165 = arith.mulf %163, %164 : vector<2x1xf32>
    %166 = arith.mulf %161, %161 : vector<2x256xf32>
    %cst_81 = arith.constant dense<0.000000e+00> : vector<2xf32>
    %167 = vector.multi_reduction <add>, %166, %cst_81 [1] : vector<2x256xf32> to vector<2xf32>
    %168 = vector.shape_cast %167 : vector<2xf32> to vector<2x1xf32>
    %cst_82 = arith.constant 3.906250e-03 : f32
    %169 = vector.broadcast %cst_82 : f32 to vector<2x1xf32>
    %170 = arith.mulf %168, %169 : vector<2x1xf32>
    %171 = arith.mulf %165, %165 : vector<2x1xf32>
    %172 = arith.subf %170, %171 : vector<2x1xf32>
    %cst_83 = arith.constant 0.000000e+00 : f32
    %173 = vector.broadcast %cst_83 : f32 to vector<2x1xf32>
    %174 = arith.maximumf %172, %173 : vector<2x1xf32>
    %175 = vector.broadcast %165 : vector<2x1xf32> to vector<2x256xf32>
    %176 = arith.subf %161, %175 : vector<2x256xf32>
    %cst_84 = arith.constant 9.99999974E-6 : f32
    %177 = vector.broadcast %cst_84 : f32 to vector<2x1xf32>
    %178 = arith.addf %174, %177 : vector<2x1xf32>
    %179 = math.rsqrt %178 : vector<2x1xf32>
    %180 = vector.broadcast %179 : vector<2x1xf32> to vector<2x256xf32>
    %181 = arith.mulf %176, %180 : vector<2x256xf32>
    %cst_85 = arith.constant 0.000000e+00 : f32
    %182 = vector.broadcast %cst_85 : f32 to vector<2x256xf32>
    %183 = arith.maximumf %181, %182 : vector<2x256xf32>
    %c0_86 = arith.constant 0 : index
    %c16_87 = arith.constant 16 : index
    %184 = vector.load %arg7[%c0_86, %c16_87] : memref<2x288xf32, #tpu.memory_space<vmem>>, vector<2x256xf32>
    tpu.vector_store %arg7[%c0_86, %c16_87], %183 {strides = array<i32>} : memref<2x288xf32, #tpu.memory_space<vmem>>, vector<2x256xf32>,
    %185 = vector.extract_strided_slice %183 {offsets = [0, 16], sizes = [2, 16], strides = [1, 1]} : vector<2x256xf32> to vector<2x16xf32>
    %c0_88 = arith.constant 0 : index
    %c0_89 = arith.constant 0 : index
    %186 = vector.load %arg7[%c0_88, %c0_89] : memref<2x288xf32, #tpu.memory_space<vmem>>, vector<2x16xf32>
    tpu.vector_store %arg7[%c0_88, %c0_89], %185 {strides = array<i32>} : memref<2x288xf32, #tpu.memory_space<vmem>>, vector<2x16xf32>,
    %187 = vector.extract_strided_slice %183 {offsets = [0, 224], sizes = [2, 16], strides = [1, 1]} : vector<2x256xf32> to vector<2x16xf32>
    %c0_90 = arith.constant 0 : index
    %c272_91 = arith.constant 272 : index
    %188 = vector.load %arg7[%c0_90, %c272_91] : memref<2x288xf32, #tpu.memory_space<vmem>>, vector<2x16xf32>
    tpu.vector_store %arg7[%c0_90, %c272_91], %187 {strides = array<i32>} : memref<2x288xf32, #tpu.memory_space<vmem>>, vector<2x16xf32>,
    %c0_92 = arith.constant 0 : index
    %c0_93 = arith.constant 0 : index
    %189 = vector.load %arg7[%c0_92, %c0_93] : memref<2x288xf32, #tpu.memory_space<vmem>>, vector<2x256xf32>
    %c1_i32_94 = arith.constant 1 : i32
    %190 = tpu.dynamic_rotate %189 by %c1_i32_94 dim 1 : vector<2x256xf32>, i32 -> vector<2x256xf32>
    %c255_i32_95 = arith.constant 255 : i32
    %191 = tpu.dynamic_rotate %189 by %c255_i32_95 dim 1 : vector<2x256xf32>, i32 -> vector<2x256xf32>
    %192 = vector.shape_cast %18 : vector<1x256xi1> to vector<1x256xi1>
    %193 = vector.broadcast %192 : vector<1x256xi1> to vector<2x256xi1>
    %194 = arith.select %193, %191, %190 : vector<2x256xi1>, vector<2x256xf32>
    %195 = vector.shape_cast %22 : vector<1x256xi1> to vector<1x256xi1>
    %196 = vector.broadcast %195 : vector<1x256xi1> to vector<2x256xi1>
    %197 = arith.select %196, %190, %191 : vector<2x256xi1>, vector<2x256xf32>
    %c0_96 = arith.constant 0 : index
    %c0_97 = arith.constant 0 : index
    %198 = vector.load %arg9[%c0_96, %c0_97] : memref<54x256xf32, #tpu.memory_space<vmem>>, vector<2x256xf32>
    tpu.vector_store %arg9[%c0_96, %c0_97], %194 {strides = array<i32>} : memref<54x256xf32, #tpu.memory_space<vmem>>, vector<2x256xf32>,
    %c2_98 = arith.constant 2 : index
    %c0_99 = arith.constant 0 : index
    %199 = vector.load %arg9[%c2_98, %c0_99] : memref<54x256xf32, #tpu.memory_space<vmem>>, vector<2x256xf32>
    tpu.vector_store %arg9[%c2_98, %c0_99], %189 {strides = array<i32>} : memref<54x256xf32, #tpu.memory_space<vmem>>, vector<2x256xf32>,
    %c4_100 = arith.constant 4 : index
    %c0_101 = arith.constant 0 : index
    %200 = vector.load %arg9[%c4_100, %c0_101] : memref<54x256xf32, #tpu.memory_space<vmem>>, vector<2x256xf32>
    tpu.vector_store %arg9[%c4_100, %c0_101], %197 {strides = array<i32>} : memref<54x256xf32, #tpu.memory_space<vmem>>, vector<2x256xf32>,
    %c0_102 = arith.constant 0 : index
    %c16_103 = arith.constant 16 : index
    %201 = vector.load %arg7[%c0_102, %c16_103] : memref<2x288xf32, #tpu.memory_space<vmem>>, vector<2x256xf32>
    %c1_i32_104 = arith.constant 1 : i32
    %202 = tpu.dynamic_rotate %201 by %c1_i32_104 dim 1 : vector<2x256xf32>, i32 -> vector<2x256xf32>
    %c255_i32_105 = arith.constant 255 : i32
    %203 = tpu.dynamic_rotate %201 by %c255_i32_105 dim 1 : vector<2x256xf32>, i32 -> vector<2x256xf32>
    %204 = vector.shape_cast %18 : vector<1x256xi1> to vector<1x256xi1>
    %205 = vector.broadcast %204 : vector<1x256xi1> to vector<2x256xi1>
    %206 = arith.select %205, %203, %202 : vector<2x256xi1>, vector<2x256xf32>
    %207 = vector.shape_cast %22 : vector<1x256xi1> to vector<1x256xi1>
    %208 = vector.broadcast %207 : vector<1x256xi1> to vector<2x256xi1>
    %209 = arith.select %208, %202, %203 : vector<2x256xi1>, vector<2x256xf32>
    %c6_106 = arith.constant 6 : index
    %c0_107 = arith.constant 0 : index
    %210 = vector.load %arg9[%c6_106, %c0_107] : memref<54x256xf32, #tpu.memory_space<vmem>>, vector<2x256xf32>
    tpu.vector_store %arg9[%c6_106, %c0_107], %206 {strides = array<i32>} : memref<54x256xf32, #tpu.memory_space<vmem>>, vector<2x256xf32>,
    %c8_108 = arith.constant 8 : index
    %c0_109 = arith.constant 0 : index
    %211 = vector.load %arg9[%c8_108, %c0_109] : memref<54x256xf32, #tpu.memory_space<vmem>>, vector<2x256xf32>
    tpu.vector_store %arg9[%c8_108, %c0_109], %201 {strides = array<i32>} : memref<54x256xf32, #tpu.memory_space<vmem>>, vector<2x256xf32>,
    %c10_110 = arith.constant 10 : index
    %c0_111 = arith.constant 0 : index
    %212 = vector.load %arg9[%c10_110, %c0_111] : memref<54x256xf32, #tpu.memory_space<vmem>>, vector<2x256xf32>
    tpu.vector_store %arg9[%c10_110, %c0_111], %209 {strides = array<i32>} : memref<54x256xf32, #tpu.memory_space<vmem>>, vector<2x256xf32>,
    %c0_112 = arith.constant 0 : index
    %c32_113 = arith.constant 32 : index
    %213 = vector.load %arg7[%c0_112, %c32_113] : memref<2x288xf32, #tpu.memory_space<vmem>>, vector<2x256xf32>
    %c1_i32_114 = arith.constant 1 : i32
    %214 = tpu.dynamic_rotate %213 by %c1_i32_114 dim 1 : vector<2x256xf32>, i32 -> vector<2x256xf32>
    %c255_i32_115 = arith.constant 255 : i32
    %215 = tpu.dynamic_rotate %213 by %c255_i32_115 dim 1 : vector<2x256xf32>, i32 -> vector<2x256xf32>
    %216 = vector.shape_cast %18 : vector<1x256xi1> to vector<1x256xi1>
    %217 = vector.broadcast %216 : vector<1x256xi1> to vector<2x256xi1>
    %218 = arith.select %217, %215, %214 : vector<2x256xi1>, vector<2x256xf32>
    %219 = vector.shape_cast %22 : vector<1x256xi1> to vector<1x256xi1>
    %220 = vector.broadcast %219 : vector<1x256xi1> to vector<2x256xi1>
    %221 = arith.select %220, %214, %215 : vector<2x256xi1>, vector<2x256xf32>
    %c12_116 = arith.constant 12 : index
    %c0_117 = arith.constant 0 : index
    %222 = vector.load %arg9[%c12_116, %c0_117] : memref<54x256xf32, #tpu.memory_space<vmem>>, vector<2x256xf32>
    tpu.vector_store %arg9[%c12_116, %c0_117], %218 {strides = array<i32>} : memref<54x256xf32, #tpu.memory_space<vmem>>, vector<2x256xf32>,
    %c14_118 = arith.constant 14 : index
    %c0_119 = arith.constant 0 : index
    %223 = vector.load %arg9[%c14_118, %c0_119] : memref<54x256xf32, #tpu.memory_space<vmem>>, vector<2x256xf32>
    tpu.vector_store %arg9[%c14_118, %c0_119], %213 {strides = array<i32>} : memref<54x256xf32, #tpu.memory_space<vmem>>, vector<2x256xf32>,
    %c16_120 = arith.constant 16 : index
    %c0_121 = arith.constant 0 : index
    %224 = vector.load %arg9[%c16_120, %c0_121] : memref<54x256xf32, #tpu.memory_space<vmem>>, vector<2x256xf32>
    tpu.vector_store %arg9[%c16_120, %c0_121], %221 {strides = array<i32>} : memref<54x256xf32, #tpu.memory_space<vmem>>, vector<2x256xf32>,
    %c0_122 = arith.constant 0 : index
    %c0_123 = arith.constant 0 : index
    %225 = vector.load %arg9[%c0_122, %c0_123] : memref<54x256xf32, #tpu.memory_space<vmem>>, vector<36x256xf32>
    %cst_124 = arith.constant dense<0.000000e+00> : vector<2x256xf32>
    %226 = tpu.matmul %26, %225, %cst_124 {dimension_numbers = #tpu.dot_dimension_numbers<[1], [0], [0], [1], [0, 0, 1, 1], [], []>} : vector<2x36xf32>, vector<36x256xf32>, vector<2x256xf32> -> vector<2x256xf32>
    %cst_125 = arith.constant dense<0.000000e+00> : vector<2xf32>
    %227 = vector.multi_reduction <add>, %226, %cst_125 [1] : vector<2x256xf32> to vector<2xf32>
    %228 = vector.shape_cast %227 : vector<2xf32> to vector<2x1xf32>
    %cst_126 = arith.constant 3.906250e-03 : f32
    %229 = vector.broadcast %cst_126 : f32 to vector<2x1xf32>
    %230 = arith.mulf %228, %229 : vector<2x1xf32>
    %231 = arith.mulf %226, %226 : vector<2x256xf32>
    %cst_127 = arith.constant dense<0.000000e+00> : vector<2xf32>
    %232 = vector.multi_reduction <add>, %231, %cst_127 [1] : vector<2x256xf32> to vector<2xf32>
    %233 = vector.shape_cast %232 : vector<2xf32> to vector<2x1xf32>
    %cst_128 = arith.constant 3.906250e-03 : f32
    %234 = vector.broadcast %cst_128 : f32 to vector<2x1xf32>
    %235 = arith.mulf %233, %234 : vector<2x1xf32>
    %236 = arith.mulf %230, %230 : vector<2x1xf32>
    %237 = arith.subf %235, %236 : vector<2x1xf32>
    %cst_129 = arith.constant 0.000000e+00 : f32
    %238 = vector.broadcast %cst_129 : f32 to vector<2x1xf32>
    %239 = arith.maximumf %237, %238 : vector<2x1xf32>
    %240 = vector.broadcast %230 : vector<2x1xf32> to vector<2x256xf32>
    %241 = arith.subf %226, %240 : vector<2x256xf32>
    %cst_130 = arith.constant 9.99999974E-6 : f32
    %242 = vector.broadcast %cst_130 : f32 to vector<2x1xf32>
    %243 = arith.addf %239, %242 : vector<2x1xf32>
    %244 = math.rsqrt %243 : vector<2x1xf32>
    %245 = vector.broadcast %244 : vector<2x1xf32> to vector<2x256xf32>
    %246 = arith.mulf %241, %245 : vector<2x256xf32>
    %cst_131 = arith.constant 0.000000e+00 : f32
    %247 = vector.broadcast %cst_131 : f32 to vector<2x256xf32>
    %248 = arith.maximumf %246, %247 : vector<2x256xf32>
    %c0_132 = arith.constant 0 : index
    %c16_133 = arith.constant 16 : index
    %249 = vector.load %arg7[%c0_132, %c16_133] : memref<2x288xf32, #tpu.memory_space<vmem>>, vector<2x256xf32>
    tpu.vector_store %arg7[%c0_132, %c16_133], %248 {strides = array<i32>} : memref<2x288xf32, #tpu.memory_space<vmem>>, vector<2x256xf32>,
    %250 = vector.extract_strided_slice %248 {offsets = [0, 16], sizes = [2, 16], strides = [1, 1]} : vector<2x256xf32> to vector<2x16xf32>
    %c0_134 = arith.constant 0 : index
    %c0_135 = arith.constant 0 : index
    %251 = vector.load %arg7[%c0_134, %c0_135] : memref<2x288xf32, #tpu.memory_space<vmem>>, vector<2x16xf32>
    tpu.vector_store %arg7[%c0_134, %c0_135], %250 {strides = array<i32>} : memref<2x288xf32, #tpu.memory_space<vmem>>, vector<2x16xf32>,
    %252 = vector.extract_strided_slice %248 {offsets = [0, 224], sizes = [2, 16], strides = [1, 1]} : vector<2x256xf32> to vector<2x16xf32>
    %c0_136 = arith.constant 0 : index
    %c272_137 = arith.constant 272 : index
    %253 = vector.load %arg7[%c0_136, %c272_137] : memref<2x288xf32, #tpu.memory_space<vmem>>, vector<2x16xf32>
    tpu.vector_store %arg7[%c0_136, %c272_137], %252 {strides = array<i32>} : memref<2x288xf32, #tpu.memory_space<vmem>>, vector<2x16xf32>,
    %c0_138 = arith.constant 0 : index
    %c0_139 = arith.constant 0 : index
    %254 = vector.load %arg7[%c0_138, %c0_139] : memref<2x288xf32, #tpu.memory_space<vmem>>, vector<2x256xf32>
    %c1_i32_140 = arith.constant 1 : i32
    %255 = tpu.dynamic_rotate %254 by %c1_i32_140 dim 1 : vector<2x256xf32>, i32 -> vector<2x256xf32>
    %c255_i32_141 = arith.constant 255 : i32
    %256 = tpu.dynamic_rotate %254 by %c255_i32_141 dim 1 : vector<2x256xf32>, i32 -> vector<2x256xf32>
    %257 = vector.shape_cast %18 : vector<1x256xi1> to vector<1x256xi1>
    %258 = vector.broadcast %257 : vector<1x256xi1> to vector<2x256xi1>
    %259 = arith.select %258, %256, %255 : vector<2x256xi1>, vector<2x256xf32>
    %260 = vector.shape_cast %22 : vector<1x256xi1> to vector<1x256xi1>
    %261 = vector.broadcast %260 : vector<1x256xi1> to vector<2x256xi1>
    %262 = arith.select %261, %255, %256 : vector<2x256xi1>, vector<2x256xf32>
    %c36 = arith.constant 36 : index
    %c0_142 = arith.constant 0 : index
    %263 = vector.load %arg9[%c36, %c0_142] : memref<54x256xf32, #tpu.memory_space<vmem>>, vector<2x256xf32>
    tpu.vector_store %arg9[%c36, %c0_142], %259 {strides = array<i32>} : memref<54x256xf32, #tpu.memory_space<vmem>>, vector<2x256xf32>,
    %c38 = arith.constant 38 : index
    %c0_143 = arith.constant 0 : index
    %264 = vector.load %arg9[%c38, %c0_143] : memref<54x256xf32, #tpu.memory_space<vmem>>, vector<2x256xf32>
    tpu.vector_store %arg9[%c38, %c0_143], %254 {strides = array<i32>} : memref<54x256xf32, #tpu.memory_space<vmem>>, vector<2x256xf32>,
    %c40 = arith.constant 40 : index
    %c0_144 = arith.constant 0 : index
    %265 = vector.load %arg9[%c40, %c0_144] : memref<54x256xf32, #tpu.memory_space<vmem>>, vector<2x256xf32>
    tpu.vector_store %arg9[%c40, %c0_144], %262 {strides = array<i32>} : memref<54x256xf32, #tpu.memory_space<vmem>>, vector<2x256xf32>,
    %c0_145 = arith.constant 0 : index
    %c16_146 = arith.constant 16 : index
    %266 = vector.load %arg7[%c0_145, %c16_146] : memref<2x288xf32, #tpu.memory_space<vmem>>, vector<2x256xf32>
    %c1_i32_147 = arith.constant 1 : i32
    %267 = tpu.dynamic_rotate %266 by %c1_i32_147 dim 1 : vector<2x256xf32>, i32 -> vector<2x256xf32>
    %c255_i32_148 = arith.constant 255 : i32
    %268 = tpu.dynamic_rotate %266 by %c255_i32_148 dim 1 : vector<2x256xf32>, i32 -> vector<2x256xf32>
    %269 = vector.shape_cast %18 : vector<1x256xi1> to vector<1x256xi1>
    %270 = vector.broadcast %269 : vector<1x256xi1> to vector<2x256xi1>
    %271 = arith.select %270, %268, %267 : vector<2x256xi1>, vector<2x256xf32>
    %272 = vector.shape_cast %22 : vector<1x256xi1> to vector<1x256xi1>
    %273 = vector.broadcast %272 : vector<1x256xi1> to vector<2x256xi1>
    %274 = arith.select %273, %267, %268 : vector<2x256xi1>, vector<2x256xf32>
    %c42 = arith.constant 42 : index
    %c0_149 = arith.constant 0 : index
    %275 = vector.load %arg9[%c42, %c0_149] : memref<54x256xf32, #tpu.memory_space<vmem>>, vector<2x256xf32>
    tpu.vector_store %arg9[%c42, %c0_149], %271 {strides = array<i32>} : memref<54x256xf32, #tpu.memory_space<vmem>>, vector<2x256xf32>,
    %c44 = arith.constant 44 : index
    %c0_150 = arith.constant 0 : index
    %276 = vector.load %arg9[%c44, %c0_150] : memref<54x256xf32, #tpu.memory_space<vmem>>, vector<2x256xf32>
    tpu.vector_store %arg9[%c44, %c0_150], %266 {strides = array<i32>} : memref<54x256xf32, #tpu.memory_space<vmem>>, vector<2x256xf32>,
    %c46 = arith.constant 46 : index
    %c0_151 = arith.constant 0 : index
    %277 = vector.load %arg9[%c46, %c0_151] : memref<54x256xf32, #tpu.memory_space<vmem>>, vector<2x256xf32>
    tpu.vector_store %arg9[%c46, %c0_151], %274 {strides = array<i32>} : memref<54x256xf32, #tpu.memory_space<vmem>>, vector<2x256xf32>,
    %c0_152 = arith.constant 0 : index
    %c32_153 = arith.constant 32 : index
    %278 = vector.load %arg7[%c0_152, %c32_153] : memref<2x288xf32, #tpu.memory_space<vmem>>, vector<2x256xf32>
    %c1_i32_154 = arith.constant 1 : i32
    %279 = tpu.dynamic_rotate %278 by %c1_i32_154 dim 1 : vector<2x256xf32>, i32 -> vector<2x256xf32>
    %c255_i32_155 = arith.constant 255 : i32
    %280 = tpu.dynamic_rotate %278 by %c255_i32_155 dim 1 : vector<2x256xf32>, i32 -> vector<2x256xf32>
    %281 = vector.shape_cast %18 : vector<1x256xi1> to vector<1x256xi1>
    %282 = vector.broadcast %281 : vector<1x256xi1> to vector<2x256xi1>
    %283 = arith.select %282, %280, %279 : vector<2x256xi1>, vector<2x256xf32>
    %284 = vector.shape_cast %22 : vector<1x256xi1> to vector<1x256xi1>
    %285 = vector.broadcast %284 : vector<1x256xi1> to vector<2x256xi1>
    %286 = arith.select %285, %279, %280 : vector<2x256xi1>, vector<2x256xf32>
    %c48 = arith.constant 48 : index
    %c0_156 = arith.constant 0 : index
    %287 = vector.load %arg9[%c48, %c0_156] : memref<54x256xf32, #tpu.memory_space<vmem>>, vector<2x256xf32>
    tpu.vector_store %arg9[%c48, %c0_156], %283 {strides = array<i32>} : memref<54x256xf32, #tpu.memory_space<vmem>>, vector<2x256xf32>,
    %c50 = arith.constant 50 : index
    %c0_157 = arith.constant 0 : index
    %288 = vector.load %arg9[%c50, %c0_157] : memref<54x256xf32, #tpu.memory_space<vmem>>, vector<2x256xf32>
    tpu.vector_store %arg9[%c50, %c0_157], %278 {strides = array<i32>} : memref<54x256xf32, #tpu.memory_space<vmem>>, vector<2x256xf32>,
    %c52 = arith.constant 52 : index
    %c0_158 = arith.constant 0 : index
    %289 = vector.load %arg9[%c52, %c0_158] : memref<54x256xf32, #tpu.memory_space<vmem>>, vector<2x256xf32>
    tpu.vector_store %arg9[%c52, %c0_158], %286 {strides = array<i32>} : memref<54x256xf32, #tpu.memory_space<vmem>>, vector<2x256xf32>,
    %c18_159 = arith.constant 18 : index
    %c0_160 = arith.constant 0 : index
    %290 = vector.load %arg9[%c18_159, %c0_160] : memref<54x256xf32, #tpu.memory_space<vmem>>, vector<36x256xf32>
    %cst_161 = arith.constant dense<0.000000e+00> : vector<2x256xf32>
    %291 = tpu.matmul %27, %290, %cst_161 {dimension_numbers = #tpu.dot_dimension_numbers<[1], [0], [0], [1], [0, 0, 1, 1], [], []>} : vector<2x36xf32>, vector<36x256xf32>, vector<2x256xf32> -> vector<2x256xf32>
    %cst_162 = arith.constant dense<0.000000e+00> : vector<2xf32>
    %292 = vector.multi_reduction <add>, %291, %cst_162 [1] : vector<2x256xf32> to vector<2xf32>
    %293 = vector.shape_cast %292 : vector<2xf32> to vector<2x1xf32>
    %cst_163 = arith.constant 3.906250e-03 : f32
    %294 = vector.broadcast %cst_163 : f32 to vector<2x1xf32>
    %295 = arith.mulf %293, %294 : vector<2x1xf32>
    %296 = arith.mulf %291, %291 : vector<2x256xf32>
    %cst_164 = arith.constant dense<0.000000e+00> : vector<2xf32>
    %297 = vector.multi_reduction <add>, %296, %cst_164 [1] : vector<2x256xf32> to vector<2xf32>
    %298 = vector.shape_cast %297 : vector<2xf32> to vector<2x1xf32>
    %cst_165 = arith.constant 3.906250e-03 : f32
    %299 = vector.broadcast %cst_165 : f32 to vector<2x1xf32>
    %300 = arith.mulf %298, %299 : vector<2x1xf32>
    %301 = arith.mulf %295, %295 : vector<2x1xf32>
    %302 = arith.subf %300, %301 : vector<2x1xf32>
    %cst_166 = arith.constant 0.000000e+00 : f32
    %303 = vector.broadcast %cst_166 : f32 to vector<2x1xf32>
    %304 = arith.maximumf %302, %303 : vector<2x1xf32>
    %305 = vector.broadcast %295 : vector<2x1xf32> to vector<2x256xf32>
    %306 = arith.subf %291, %305 : vector<2x256xf32>
    %cst_167 = arith.constant 9.99999974E-6 : f32
    %307 = vector.broadcast %cst_167 : f32 to vector<2x1xf32>
    %308 = arith.addf %304, %307 : vector<2x1xf32>
    %309 = math.rsqrt %308 : vector<2x1xf32>
    %310 = vector.broadcast %309 : vector<2x1xf32> to vector<2x256xf32>
    %311 = arith.mulf %306, %310 : vector<2x256xf32>
    %cst_168 = arith.constant 0.000000e+00 : f32
    %312 = vector.broadcast %cst_168 : f32 to vector<2x256xf32>
    %313 = arith.maximumf %311, %312 : vector<2x256xf32>
    %c0_169 = arith.constant 0 : index
    %c0_170 = arith.constant 0 : index
    %314 = vector.load %arg9[%c0_169, %c0_170] : memref<54x256xf32, #tpu.memory_space<vmem>>, vector<2x256xf32>
    tpu.vector_store %arg9[%c0_169, %c0_170], %313 {strides = array<i32>} : memref<54x256xf32, #tpu.memory_space<vmem>>, vector<2x256xf32>,
    %c2_171 = arith.constant 2 : index
    %c0_172 = arith.constant 0 : index
    %315 = vector.load %arg9[%c2_171, %c0_172] : memref<54x256xf32, #tpu.memory_space<vmem>>, vector<2x256xf32>
    tpu.vector_store %arg9[%c2_171, %c0_172], %53 {strides = array<i32>} : memref<54x256xf32, #tpu.memory_space<vmem>>, vector<2x256xf32>,
    %c0_173 = arith.constant 0 : index
    %c0_174 = arith.constant 0 : index
    %316 = vector.load %arg5[%c0_173, %c0_174] : memref<4x4xf32, #tpu.memory_space<vmem>>, vector<4x4xf32>
    %c0_175 = arith.constant 0 : index
    %c0_176 = arith.constant 0 : index
    %317 = vector.load %arg9[%c0_175, %c0_176] : memref<54x256xf32, #tpu.memory_space<vmem>>, vector<4x256xf32>
    %cst_177 = arith.constant dense<0.000000e+00> : vector<4x256xf32>
    %318 = tpu.matmul %316, %317, %cst_177 {dimension_numbers = #tpu.dot_dimension_numbers<[1], [0], [0], [1], [0, 0, 1, 1], [], []>} : vector<4x4xf32>, vector<4x256xf32>, vector<4x256xf32> -> vector<4x256xf32>
    %cst_178 = arith.constant dense<0.000000e+00> : vector<4xf32>
    %319 = vector.multi_reduction <add>, %318, %cst_178 [1] : vector<4x256xf32> to vector<4xf32>
    %320 = vector.shape_cast %319 : vector<4xf32> to vector<4x1xf32>
    %cst_179 = arith.constant 3.906250e-03 : f32
    %321 = vector.broadcast %cst_179 : f32 to vector<4x1xf32>
    %322 = arith.mulf %320, %321 : vector<4x1xf32>
    %323 = arith.mulf %318, %318 : vector<4x256xf32>
    %cst_180 = arith.constant dense<0.000000e+00> : vector<4xf32>
    %324 = vector.multi_reduction <add>, %323, %cst_180 [1] : vector<4x256xf32> to vector<4xf32>
    %325 = vector.shape_cast %324 : vector<4xf32> to vector<4x1xf32>
    %cst_181 = arith.constant 3.906250e-03 : f32
    %326 = vector.broadcast %cst_181 : f32 to vector<4x1xf32>
    %327 = arith.mulf %325, %326 : vector<4x1xf32>
    %328 = arith.mulf %322, %322 : vector<4x1xf32>
    %329 = arith.subf %327, %328 : vector<4x1xf32>
    %cst_182 = arith.constant 0.000000e+00 : f32
    %330 = vector.broadcast %cst_182 : f32 to vector<4x1xf32>
    %331 = arith.maximumf %329, %330 : vector<4x1xf32>
    %332 = vector.broadcast %322 : vector<4x1xf32> to vector<4x256xf32>
    %333 = arith.subf %318, %332 : vector<4x256xf32>
    %cst_183 = arith.constant 9.99999974E-6 : f32
    %334 = vector.broadcast %cst_183 : f32 to vector<4x1xf32>
    %335 = arith.addf %331, %334 : vector<4x1xf32>
    %336 = math.rsqrt %335 : vector<4x1xf32>
    %337 = vector.broadcast %336 : vector<4x1xf32> to vector<4x256xf32>
    %338 = arith.mulf %333, %337 : vector<4x256xf32>
    %c0_184 = arith.constant 0 : index
    %c0_185 = arith.constant 0 : index
    %c0_186 = arith.constant 0 : index
    %339 = vector.load %arg6[%c0_184, %c0_185, %c0_186] : memref<2x4x256xf32, #tpu.memory_space<vmem>>, vector<1x4x256xf32>
    %340 = vector.shape_cast %339 : vector<1x4x256xf32> to vector<4x256xf32>
    %341 = vector.shape_cast %338 : vector<4x256xf32> to vector<1x4x256xf32>
    tpu.vector_store %arg6[%c0_184, %c0_185, %c0_186], %341 {strides = array<i32>} : memref<2x4x256xf32, #tpu.memory_space<vmem>>, vector<1x4x256xf32>,
    %c0_187 = arith.constant 0 : index
    %c0_188 = arith.constant 0 : index
    %342 = vector.load %arg3[%c0_187, %c0_188] : memref<2x2xf32, #tpu.memory_space<vmem>>, vector<2x2xf32>
    %c1 = arith.constant 1 : index
    %c0_189 = arith.constant 0 : index
    %c0_190 = arith.constant 0 : index
    %343 = vector.load %arg1[%c1, %c0_189, %c0_190] : memref<2x2x256xf32, #tpu.memory_space<vmem>>, vector<1x2x256xf32>
    %344 = vector.shape_cast %343 : vector<1x2x256xf32> to vector<2x256xf32>
    %cst_191 = arith.constant dense<0.000000e+00> : vector<2x256xf32>
    %345 = tpu.matmul %342, %344, %cst_191 {dimension_numbers = #tpu.dot_dimension_numbers<[1], [0], [0], [1], [0, 0, 1, 1], [], []>} : vector<2x2xf32>, vector<2x256xf32>, vector<2x256xf32> -> vector<2x256xf32>
    %cst_192 = arith.constant dense<0.000000e+00> : vector<2xf32>
    %346 = vector.multi_reduction <add>, %345, %cst_192 [1] : vector<2x256xf32> to vector<2xf32>
    %347 = vector.shape_cast %346 : vector<2xf32> to vector<2x1xf32>
    %cst_193 = arith.constant 3.906250e-03 : f32
    %348 = vector.broadcast %cst_193 : f32 to vector<2x1xf32>
    %349 = arith.mulf %347, %348 : vector<2x1xf32>
    %350 = arith.mulf %345, %345 : vector<2x256xf32>
    %cst_194 = arith.constant dense<0.000000e+00> : vector<2xf32>
    %351 = vector.multi_reduction <add>, %350, %cst_194 [1] : vector<2x256xf32> to vector<2xf32>
    %352 = vector.shape_cast %351 : vector<2xf32> to vector<2x1xf32>
    %cst_195 = arith.constant 3.906250e-03 : f32
    %353 = vector.broadcast %cst_195 : f32 to vector<2x1xf32>
    %354 = arith.mulf %352, %353 : vector<2x1xf32>
    %355 = arith.mulf %349, %349 : vector<2x1xf32>
    %356 = arith.subf %354, %355 : vector<2x1xf32>
    %cst_196 = arith.constant 0.000000e+00 : f32
    %357 = vector.broadcast %cst_196 : f32 to vector<2x1xf32>
    %358 = arith.maximumf %356, %357 : vector<2x1xf32>
    %359 = vector.broadcast %349 : vector<2x1xf32> to vector<2x256xf32>
    %360 = arith.subf %345, %359 : vector<2x256xf32>
    %cst_197 = arith.constant 9.99999974E-6 : f32
    %361 = vector.broadcast %cst_197 : f32 to vector<2x1xf32>
    %362 = arith.addf %358, %361 : vector<2x1xf32>
    %363 = math.rsqrt %362 : vector<2x1xf32>
    %364 = vector.broadcast %363 : vector<2x1xf32> to vector<2x256xf32>
    %365 = arith.mulf %360, %364 : vector<2x256xf32>
    %cst_198 = arith.constant 0.000000e+00 : f32
    %366 = vector.broadcast %cst_198 : f32 to vector<2x256xf32>
    %367 = arith.maximumf %365, %366 : vector<2x256xf32>
    %c0_199 = arith.constant 0 : index
    %c16_200 = arith.constant 16 : index
    %368 = vector.load %arg7[%c0_199, %c16_200] : memref<2x288xf32, #tpu.memory_space<vmem>>, vector<2x256xf32>
    tpu.vector_store %arg7[%c0_199, %c16_200], %367 {strides = array<i32>} : memref<2x288xf32, #tpu.memory_space<vmem>>, vector<2x256xf32>,
    %369 = vector.extract_strided_slice %367 {offsets = [0, 16], sizes = [2, 16], strides = [1, 1]} : vector<2x256xf32> to vector<2x16xf32>
    %c0_201 = arith.constant 0 : index
    %c0_202 = arith.constant 0 : index
    %370 = vector.load %arg7[%c0_201, %c0_202] : memref<2x288xf32, #tpu.memory_space<vmem>>, vector<2x16xf32>
    tpu.vector_store %arg7[%c0_201, %c0_202], %369 {strides = array<i32>} : memref<2x288xf32, #tpu.memory_space<vmem>>, vector<2x16xf32>,
    %371 = vector.extract_strided_slice %367 {offsets = [0, 224], sizes = [2, 16], strides = [1, 1]} : vector<2x256xf32> to vector<2x16xf32>
    %c0_203 = arith.constant 0 : index
    %c272_204 = arith.constant 272 : index
    %372 = vector.load %arg7[%c0_203, %c272_204] : memref<2x288xf32, #tpu.memory_space<vmem>>, vector<2x16xf32>
    tpu.vector_store %arg7[%c0_203, %c272_204], %371 {strides = array<i32>} : memref<2x288xf32, #tpu.memory_space<vmem>>, vector<2x16xf32>,
    %c0_205 = arith.constant 0 : index
    %c0_206 = arith.constant 0 : index
    %373 = vector.load %arg7[%c0_205, %c0_206] : memref<2x288xf32, #tpu.memory_space<vmem>>, vector<2x256xf32>
    %c1_i32_207 = arith.constant 1 : i32
    %374 = tpu.dynamic_rotate %373 by %c1_i32_207 dim 1 : vector<2x256xf32>, i32 -> vector<2x256xf32>
    %c255_i32_208 = arith.constant 255 : i32
    %375 = tpu.dynamic_rotate %373 by %c255_i32_208 dim 1 : vector<2x256xf32>, i32 -> vector<2x256xf32>
    %376 = vector.shape_cast %18 : vector<1x256xi1> to vector<1x256xi1>
    %377 = vector.broadcast %376 : vector<1x256xi1> to vector<2x256xi1>
    %378 = arith.select %377, %375, %374 : vector<2x256xi1>, vector<2x256xf32>
    %379 = vector.shape_cast %22 : vector<1x256xi1> to vector<1x256xi1>
    %380 = vector.broadcast %379 : vector<1x256xi1> to vector<2x256xi1>
    %381 = arith.select %380, %374, %375 : vector<2x256xi1>, vector<2x256xf32>
    %c18_209 = arith.constant 18 : index
    %c0_210 = arith.constant 0 : index
    %382 = vector.load %arg9[%c18_209, %c0_210] : memref<54x256xf32, #tpu.memory_space<vmem>>, vector<2x256xf32>
    tpu.vector_store %arg9[%c18_209, %c0_210], %378 {strides = array<i32>} : memref<54x256xf32, #tpu.memory_space<vmem>>, vector<2x256xf32>,
    %c20_211 = arith.constant 20 : index
    %c0_212 = arith.constant 0 : index
    %383 = vector.load %arg9[%c20_211, %c0_212] : memref<54x256xf32, #tpu.memory_space<vmem>>, vector<2x256xf32>
    tpu.vector_store %arg9[%c20_211, %c0_212], %373 {strides = array<i32>} : memref<54x256xf32, #tpu.memory_space<vmem>>, vector<2x256xf32>,
    %c22_213 = arith.constant 22 : index
    %c0_214 = arith.constant 0 : index
    %384 = vector.load %arg9[%c22_213, %c0_214] : memref<54x256xf32, #tpu.memory_space<vmem>>, vector<2x256xf32>
    tpu.vector_store %arg9[%c22_213, %c0_214], %381 {strides = array<i32>} : memref<54x256xf32, #tpu.memory_space<vmem>>, vector<2x256xf32>,
    %c0_215 = arith.constant 0 : index
    %c16_216 = arith.constant 16 : index
    %385 = vector.load %arg7[%c0_215, %c16_216] : memref<2x288xf32, #tpu.memory_space<vmem>>, vector<2x256xf32>
    %c1_i32_217 = arith.constant 1 : i32
    %386 = tpu.dynamic_rotate %385 by %c1_i32_217 dim 1 : vector<2x256xf32>, i32 -> vector<2x256xf32>
    %c255_i32_218 = arith.constant 255 : i32
    %387 = tpu.dynamic_rotate %385 by %c255_i32_218 dim 1 : vector<2x256xf32>, i32 -> vector<2x256xf32>
    %388 = vector.shape_cast %18 : vector<1x256xi1> to vector<1x256xi1>
    %389 = vector.broadcast %388 : vector<1x256xi1> to vector<2x256xi1>
    %390 = arith.select %389, %387, %386 : vector<2x256xi1>, vector<2x256xf32>
    %391 = vector.shape_cast %22 : vector<1x256xi1> to vector<1x256xi1>
    %392 = vector.broadcast %391 : vector<1x256xi1> to vector<2x256xi1>
    %393 = arith.select %392, %386, %387 : vector<2x256xi1>, vector<2x256xf32>
    %c24_219 = arith.constant 24 : index
    %c0_220 = arith.constant 0 : index
    %394 = vector.load %arg9[%c24_219, %c0_220] : memref<54x256xf32, #tpu.memory_space<vmem>>, vector<2x256xf32>
    tpu.vector_store %arg9[%c24_219, %c0_220], %390 {strides = array<i32>} : memref<54x256xf32, #tpu.memory_space<vmem>>, vector<2x256xf32>,
    %c26_221 = arith.constant 26 : index
    %c0_222 = arith.constant 0 : index
    %395 = vector.load %arg9[%c26_221, %c0_222] : memref<54x256xf32, #tpu.memory_space<vmem>>, vector<2x256xf32>
    tpu.vector_store %arg9[%c26_221, %c0_222], %385 {strides = array<i32>} : memref<54x256xf32, #tpu.memory_space<vmem>>, vector<2x256xf32>,
    %c28_223 = arith.constant 28 : index
    %c0_224 = arith.constant 0 : index
    %396 = vector.load %arg9[%c28_223, %c0_224] : memref<54x256xf32, #tpu.memory_space<vmem>>, vector<2x256xf32>
    tpu.vector_store %arg9[%c28_223, %c0_224], %393 {strides = array<i32>} : memref<54x256xf32, #tpu.memory_space<vmem>>, vector<2x256xf32>,
    %c0_225 = arith.constant 0 : index
    %c32_226 = arith.constant 32 : index
    %397 = vector.load %arg7[%c0_225, %c32_226] : memref<2x288xf32, #tpu.memory_space<vmem>>, vector<2x256xf32>
    %c1_i32_227 = arith.constant 1 : i32
    %398 = tpu.dynamic_rotate %397 by %c1_i32_227 dim 1 : vector<2x256xf32>, i32 -> vector<2x256xf32>
    %c255_i32_228 = arith.constant 255 : i32
    %399 = tpu.dynamic_rotate %397 by %c255_i32_228 dim 1 : vector<2x256xf32>, i32 -> vector<2x256xf32>
    %400 = vector.shape_cast %18 : vector<1x256xi1> to vector<1x256xi1>
    %401 = vector.broadcast %400 : vector<1x256xi1> to vector<2x256xi1>
    %402 = arith.select %401, %399, %398 : vector<2x256xi1>, vector<2x256xf32>
    %403 = vector.shape_cast %22 : vector<1x256xi1> to vector<1x256xi1>
    %404 = vector.broadcast %403 : vector<1x256xi1> to vector<2x256xi1>
    %405 = arith.select %404, %398, %399 : vector<2x256xi1>, vector<2x256xf32>
    %c30_229 = arith.constant 30 : index
    %c0_230 = arith.constant 0 : index
    %406 = vector.load %arg9[%c30_229, %c0_230] : memref<54x256xf32, #tpu.memory_space<vmem>>, vector<2x256xf32>
    tpu.vector_store %arg9[%c30_229, %c0_230], %402 {strides = array<i32>} : memref<54x256xf32, #tpu.memory_space<vmem>>, vector<2x256xf32>,
    %c32_231 = arith.constant 32 : index
    %c0_232 = arith.constant 0 : index
    %407 = vector.load %arg9[%c32_231, %c0_232] : memref<54x256xf32, #tpu.memory_space<vmem>>, vector<2x256xf32>
    tpu.vector_store %arg9[%c32_231, %c0_232], %397 {strides = array<i32>} : memref<54x256xf32, #tpu.memory_space<vmem>>, vector<2x256xf32>,
    %c34_233 = arith.constant 34 : index
    %c0_234 = arith.constant 0 : index
    %408 = vector.load %arg9[%c34_233, %c0_234] : memref<54x256xf32, #tpu.memory_space<vmem>>, vector<2x256xf32>
    tpu.vector_store %arg9[%c34_233, %c0_234], %405 {strides = array<i32>} : memref<54x256xf32, #tpu.memory_space<vmem>>, vector<2x256xf32>,
    %c1_235 = arith.constant 1 : index
    %c0_236 = arith.constant 0 : index
    %c0_237 = arith.constant 0 : index
    %409 = vector.load %arg2[%c1_235, %c0_236, %c0_237] : memref<2x2x256xf32, #tpu.memory_space<vmem>>, vector<1x2x256xf32>
    %410 = vector.shape_cast %409 : vector<1x2x256xf32> to vector<2x256xf32>
    %c0_238 = arith.constant 0 : index
    %c32_239 = arith.constant 32 : index
    %411 = vector.load %arg8[%c0_238, %c32_239] : memref<2x320xf32, #tpu.memory_space<vmem>>, vector<2x256xf32>
    tpu.vector_store %arg8[%c0_238, %c32_239], %410 {strides = array<i32>} : memref<2x320xf32, #tpu.memory_space<vmem>>, vector<2x256xf32>,
    %412 = vector.extract_strided_slice %410 {offsets = [0, 32], sizes = [2, 16], strides = [1, 1]} : vector<2x256xf32> to vector<2x16xf32>
    %c0_240 = arith.constant 0 : index
    %c0_241 = arith.constant 0 : index
    %413 = vector.load %arg8[%c0_240, %c0_241] : memref<2x320xf32, #tpu.memory_space<vmem>>, vector<2x16xf32>
    tpu.vector_store %arg8[%c0_240, %c0_241], %412 {strides = array<i32>} : memref<2x320xf32, #tpu.memory_space<vmem>>, vector<2x16xf32>,
    %414 = vector.extract_strided_slice %410 {offsets = [0, 16], sizes = [2, 16], strides = [1, 1]} : vector<2x256xf32> to vector<2x16xf32>
    %c0_242 = arith.constant 0 : index
    %c16_243 = arith.constant 16 : index
    %415 = vector.load %arg8[%c0_242, %c16_243] : memref<2x320xf32, #tpu.memory_space<vmem>>, vector<2x16xf32>
    tpu.vector_store %arg8[%c0_242, %c16_243], %414 {strides = array<i32>} : memref<2x320xf32, #tpu.memory_space<vmem>>, vector<2x16xf32>,
    %416 = vector.extract_strided_slice %410 {offsets = [0, 224], sizes = [2, 16], strides = [1, 1]} : vector<2x256xf32> to vector<2x16xf32>
    %c0_244 = arith.constant 0 : index
    %c288_245 = arith.constant 288 : index
    %417 = vector.load %arg8[%c0_244, %c288_245] : memref<2x320xf32, #tpu.memory_space<vmem>>, vector<2x16xf32>
    tpu.vector_store %arg8[%c0_244, %c288_245], %416 {strides = array<i32>} : memref<2x320xf32, #tpu.memory_space<vmem>>, vector<2x16xf32>,
    %418 = vector.extract_strided_slice %410 {offsets = [0, 208], sizes = [2, 16], strides = [1, 1]} : vector<2x256xf32> to vector<2x16xf32>
    %c0_246 = arith.constant 0 : index
    %c304_247 = arith.constant 304 : index
    %419 = vector.load %arg8[%c0_246, %c304_247] : memref<2x320xf32, #tpu.memory_space<vmem>>, vector<2x16xf32>
    tpu.vector_store %arg8[%c0_246, %c304_247], %418 {strides = array<i32>} : memref<2x320xf32, #tpu.memory_space<vmem>>, vector<2x16xf32>,
    %c0_248 = arith.constant 0 : index
    %c0_249 = arith.constant 0 : index
    %420 = vector.load %arg8[%c0_248, %c0_249] : memref<2x320xf32, #tpu.memory_space<vmem>>, vector<2x256xf32>
    %c2_i32_250 = arith.constant 2 : i32
    %421 = tpu.dynamic_rotate %420 by %c2_i32_250 dim 1 : vector<2x256xf32>, i32 -> vector<2x256xf32>
    %c254_i32_251 = arith.constant 254 : i32
    %422 = tpu.dynamic_rotate %420 by %c254_i32_251 dim 1 : vector<2x256xf32>, i32 -> vector<2x256xf32>
    %423 = vector.shape_cast %20 : vector<1x256xi1> to vector<1x256xi1>
    %424 = vector.broadcast %423 : vector<1x256xi1> to vector<2x256xi1>
    %425 = arith.select %424, %420, %421 : vector<2x256xi1>, vector<2x256xf32>
    %426 = vector.shape_cast %18 : vector<1x256xi1> to vector<1x256xi1>
    %427 = vector.broadcast %426 : vector<1x256xi1> to vector<2x256xi1>
    %428 = arith.select %427, %422, %425 : vector<2x256xi1>, vector<2x256xf32>
    %429 = vector.shape_cast %24 : vector<1x256xi1> to vector<1x256xi1>
    %430 = vector.broadcast %429 : vector<1x256xi1> to vector<2x256xi1>
    %431 = arith.select %430, %420, %422 : vector<2x256xi1>, vector<2x256xf32>
    %432 = vector.shape_cast %22 : vector<1x256xi1> to vector<1x256xi1>
    %433 = vector.broadcast %432 : vector<1x256xi1> to vector<2x256xi1>
    %434 = arith.select %433, %421, %431 : vector<2x256xi1>, vector<2x256xf32>
    %c0_252 = arith.constant 0 : index
    %c0_253 = arith.constant 0 : index
    %435 = vector.load %arg9[%c0_252, %c0_253] : memref<54x256xf32, #tpu.memory_space<vmem>>, vector<2x256xf32>
    tpu.vector_store %arg9[%c0_252, %c0_253], %428 {strides = array<i32>} : memref<54x256xf32, #tpu.memory_space<vmem>>, vector<2x256xf32>,
    %c2_254 = arith.constant 2 : index
    %c0_255 = arith.constant 0 : index
    %436 = vector.load %arg9[%c2_254, %c0_255] : memref<54x256xf32, #tpu.memory_space<vmem>>, vector<2x256xf32>
    tpu.vector_store %arg9[%c2_254, %c0_255], %420 {strides = array<i32>} : memref<54x256xf32, #tpu.memory_space<vmem>>, vector<2x256xf32>,
    %c4_256 = arith.constant 4 : index
    %c0_257 = arith.constant 0 : index
    %437 = vector.load %arg9[%c4_256, %c0_257] : memref<54x256xf32, #tpu.memory_space<vmem>>, vector<2x256xf32>
    tpu.vector_store %arg9[%c4_256, %c0_257], %434 {strides = array<i32>} : memref<54x256xf32, #tpu.memory_space<vmem>>, vector<2x256xf32>,
    %c0_258 = arith.constant 0 : index
    %c32_259 = arith.constant 32 : index
    %438 = vector.load %arg8[%c0_258, %c32_259] : memref<2x320xf32, #tpu.memory_space<vmem>>, vector<2x256xf32>
    %c2_i32_260 = arith.constant 2 : i32
    %439 = tpu.dynamic_rotate %438 by %c2_i32_260 dim 1 : vector<2x256xf32>, i32 -> vector<2x256xf32>
    %c254_i32_261 = arith.constant 254 : i32
    %440 = tpu.dynamic_rotate %438 by %c254_i32_261 dim 1 : vector<2x256xf32>, i32 -> vector<2x256xf32>
    %441 = vector.shape_cast %20 : vector<1x256xi1> to vector<1x256xi1>
    %442 = vector.broadcast %441 : vector<1x256xi1> to vector<2x256xi1>
    %443 = arith.select %442, %438, %439 : vector<2x256xi1>, vector<2x256xf32>
    %444 = vector.shape_cast %18 : vector<1x256xi1> to vector<1x256xi1>
    %445 = vector.broadcast %444 : vector<1x256xi1> to vector<2x256xi1>
    %446 = arith.select %445, %440, %443 : vector<2x256xi1>, vector<2x256xf32>
    %447 = vector.shape_cast %24 : vector<1x256xi1> to vector<1x256xi1>
    %448 = vector.broadcast %447 : vector<1x256xi1> to vector<2x256xi1>
    %449 = arith.select %448, %438, %440 : vector<2x256xi1>, vector<2x256xf32>
    %450 = vector.shape_cast %22 : vector<1x256xi1> to vector<1x256xi1>
    %451 = vector.broadcast %450 : vector<1x256xi1> to vector<2x256xi1>
    %452 = arith.select %451, %439, %449 : vector<2x256xi1>, vector<2x256xf32>
    %c6_262 = arith.constant 6 : index
    %c0_263 = arith.constant 0 : index
    %453 = vector.load %arg9[%c6_262, %c0_263] : memref<54x256xf32, #tpu.memory_space<vmem>>, vector<2x256xf32>
    tpu.vector_store %arg9[%c6_262, %c0_263], %446 {strides = array<i32>} : memref<54x256xf32, #tpu.memory_space<vmem>>, vector<2x256xf32>,
    %c8_264 = arith.constant 8 : index
    %c0_265 = arith.constant 0 : index
    %454 = vector.load %arg9[%c8_264, %c0_265] : memref<54x256xf32, #tpu.memory_space<vmem>>, vector<2x256xf32>
    tpu.vector_store %arg9[%c8_264, %c0_265], %438 {strides = array<i32>} : memref<54x256xf32, #tpu.memory_space<vmem>>, vector<2x256xf32>,
    %c10_266 = arith.constant 10 : index
    %c0_267 = arith.constant 0 : index
    %455 = vector.load %arg9[%c10_266, %c0_267] : memref<54x256xf32, #tpu.memory_space<vmem>>, vector<2x256xf32>
    tpu.vector_store %arg9[%c10_266, %c0_267], %452 {strides = array<i32>} : memref<54x256xf32, #tpu.memory_space<vmem>>, vector<2x256xf32>,
    %c0_268 = arith.constant 0 : index
    %c64_269 = arith.constant 64 : index
    %456 = vector.load %arg8[%c0_268, %c64_269] : memref<2x320xf32, #tpu.memory_space<vmem>>, vector<2x256xf32>
    %c2_i32_270 = arith.constant 2 : i32
    %457 = tpu.dynamic_rotate %456 by %c2_i32_270 dim 1 : vector<2x256xf32>, i32 -> vector<2x256xf32>
    %c254_i32_271 = arith.constant 254 : i32
    %458 = tpu.dynamic_rotate %456 by %c254_i32_271 dim 1 : vector<2x256xf32>, i32 -> vector<2x256xf32>
    %459 = vector.shape_cast %20 : vector<1x256xi1> to vector<1x256xi1>
    %460 = vector.broadcast %459 : vector<1x256xi1> to vector<2x256xi1>
    %461 = arith.select %460, %456, %457 : vector<2x256xi1>, vector<2x256xf32>
    %462 = vector.shape_cast %18 : vector<1x256xi1> to vector<1x256xi1>
    %463 = vector.broadcast %462 : vector<1x256xi1> to vector<2x256xi1>
    %464 = arith.select %463, %458, %461 : vector<2x256xi1>, vector<2x256xf32>
    %465 = vector.shape_cast %24 : vector<1x256xi1> to vector<1x256xi1>
    %466 = vector.broadcast %465 : vector<1x256xi1> to vector<2x256xi1>
    %467 = arith.select %466, %456, %458 : vector<2x256xi1>, vector<2x256xf32>
    %468 = vector.shape_cast %22 : vector<1x256xi1> to vector<1x256xi1>
    %469 = vector.broadcast %468 : vector<1x256xi1> to vector<2x256xi1>
    %470 = arith.select %469, %457, %467 : vector<2x256xi1>, vector<2x256xf32>
    %c12_272 = arith.constant 12 : index
    %c0_273 = arith.constant 0 : index
    %471 = vector.load %arg9[%c12_272, %c0_273] : memref<54x256xf32, #tpu.memory_space<vmem>>, vector<2x256xf32>
    tpu.vector_store %arg9[%c12_272, %c0_273], %464 {strides = array<i32>} : memref<54x256xf32, #tpu.memory_space<vmem>>, vector<2x256xf32>,
    %c14_274 = arith.constant 14 : index
    %c0_275 = arith.constant 0 : index
    %472 = vector.load %arg9[%c14_274, %c0_275] : memref<54x256xf32, #tpu.memory_space<vmem>>, vector<2x256xf32>
    tpu.vector_store %arg9[%c14_274, %c0_275], %456 {strides = array<i32>} : memref<54x256xf32, #tpu.memory_space<vmem>>, vector<2x256xf32>,
    %c16_276 = arith.constant 16 : index
    %c0_277 = arith.constant 0 : index
    %473 = vector.load %arg9[%c16_276, %c0_277] : memref<54x256xf32, #tpu.memory_space<vmem>>, vector<2x256xf32>
    tpu.vector_store %arg9[%c16_276, %c0_277], %470 {strides = array<i32>} : memref<54x256xf32, #tpu.memory_space<vmem>>, vector<2x256xf32>,
    %c0_278 = arith.constant 0 : index
    %c0_279 = arith.constant 0 : index
    %474 = vector.load %arg9[%c0_278, %c0_279] : memref<54x256xf32, #tpu.memory_space<vmem>>, vector<18x256xf32>
    %cst_280 = arith.constant dense<0.000000e+00> : vector<2x256xf32>
    %475 = tpu.matmul %25, %474, %cst_280 {dimension_numbers = #tpu.dot_dimension_numbers<[1], [0], [0], [1], [0, 0, 1, 1], [], []>} : vector<2x18xf32>, vector<18x256xf32>, vector<2x256xf32> -> vector<2x256xf32>
    %cst_281 = arith.constant dense<0.000000e+00> : vector<2xf32>
    %476 = vector.multi_reduction <add>, %475, %cst_281 [1] : vector<2x256xf32> to vector<2xf32>
    %477 = vector.shape_cast %476 : vector<2xf32> to vector<2x1xf32>
    %cst_282 = arith.constant 3.906250e-03 : f32
    %478 = vector.broadcast %cst_282 : f32 to vector<2x1xf32>
    %479 = arith.mulf %477, %478 : vector<2x1xf32>
    %480 = arith.mulf %475, %475 : vector<2x256xf32>
    %cst_283 = arith.constant dense<0.000000e+00> : vector<2xf32>
    %481 = vector.multi_reduction <add>, %480, %cst_283 [1] : vector<2x256xf32> to vector<2xf32>
    %482 = vector.shape_cast %481 : vector<2xf32> to vector<2x1xf32>
    %cst_284 = arith.constant 3.906250e-03 : f32
    %483 = vector.broadcast %cst_284 : f32 to vector<2x1xf32>
    %484 = arith.mulf %482, %483 : vector<2x1xf32>
    %485 = arith.mulf %479, %479 : vector<2x1xf32>
    %486 = arith.subf %484, %485 : vector<2x1xf32>
    %cst_285 = arith.constant 0.000000e+00 : f32
    %487 = vector.broadcast %cst_285 : f32 to vector<2x1xf32>
    %488 = arith.maximumf %486, %487 : vector<2x1xf32>
    %489 = vector.broadcast %479 : vector<2x1xf32> to vector<2x256xf32>
    %490 = arith.subf %475, %489 : vector<2x256xf32>
    %cst_286 = arith.constant 9.99999974E-6 : f32
    %491 = vector.broadcast %cst_286 : f32 to vector<2x1xf32>
    %492 = arith.addf %488, %491 : vector<2x1xf32>
    %493 = math.rsqrt %492 : vector<2x1xf32>
    %494 = vector.broadcast %493 : vector<2x1xf32> to vector<2x256xf32>
    %495 = arith.mulf %490, %494 : vector<2x256xf32>
    %cst_287 = arith.constant 0.000000e+00 : f32
    %496 = vector.broadcast %cst_287 : f32 to vector<2x256xf32>
    %497 = arith.maximumf %495, %496 : vector<2x256xf32>
    %c0_288 = arith.constant 0 : index
    %c16_289 = arith.constant 16 : index
    %498 = vector.load %arg7[%c0_288, %c16_289] : memref<2x288xf32, #tpu.memory_space<vmem>>, vector<2x256xf32>
    tpu.vector_store %arg7[%c0_288, %c16_289], %497 {strides = array<i32>} : memref<2x288xf32, #tpu.memory_space<vmem>>, vector<2x256xf32>,
    %499 = vector.extract_strided_slice %497 {offsets = [0, 16], sizes = [2, 16], strides = [1, 1]} : vector<2x256xf32> to vector<2x16xf32>
    %c0_290 = arith.constant 0 : index
    %c0_291 = arith.constant 0 : index
    %500 = vector.load %arg7[%c0_290, %c0_291] : memref<2x288xf32, #tpu.memory_space<vmem>>, vector<2x16xf32>
    tpu.vector_store %arg7[%c0_290, %c0_291], %499 {strides = array<i32>} : memref<2x288xf32, #tpu.memory_space<vmem>>, vector<2x16xf32>,
    %501 = vector.extract_strided_slice %497 {offsets = [0, 224], sizes = [2, 16], strides = [1, 1]} : vector<2x256xf32> to vector<2x16xf32>
    %c0_292 = arith.constant 0 : index
    %c272_293 = arith.constant 272 : index
    %502 = vector.load %arg7[%c0_292, %c272_293] : memref<2x288xf32, #tpu.memory_space<vmem>>, vector<2x16xf32>
    tpu.vector_store %arg7[%c0_292, %c272_293], %501 {strides = array<i32>} : memref<2x288xf32, #tpu.memory_space<vmem>>, vector<2x16xf32>,
    %c0_294 = arith.constant 0 : index
    %c0_295 = arith.constant 0 : index
    %503 = vector.load %arg7[%c0_294, %c0_295] : memref<2x288xf32, #tpu.memory_space<vmem>>, vector<2x256xf32>
    %c1_i32_296 = arith.constant 1 : i32
    %504 = tpu.dynamic_rotate %503 by %c1_i32_296 dim 1 : vector<2x256xf32>, i32 -> vector<2x256xf32>
    %c255_i32_297 = arith.constant 255 : i32
    %505 = tpu.dynamic_rotate %503 by %c255_i32_297 dim 1 : vector<2x256xf32>, i32 -> vector<2x256xf32>
    %506 = vector.shape_cast %18 : vector<1x256xi1> to vector<1x256xi1>
    %507 = vector.broadcast %506 : vector<1x256xi1> to vector<2x256xi1>
    %508 = arith.select %507, %505, %504 : vector<2x256xi1>, vector<2x256xf32>
    %509 = vector.shape_cast %22 : vector<1x256xi1> to vector<1x256xi1>
    %510 = vector.broadcast %509 : vector<1x256xi1> to vector<2x256xi1>
    %511 = arith.select %510, %504, %505 : vector<2x256xi1>, vector<2x256xf32>
    %c0_298 = arith.constant 0 : index
    %c0_299 = arith.constant 0 : index
    %512 = vector.load %arg9[%c0_298, %c0_299] : memref<54x256xf32, #tpu.memory_space<vmem>>, vector<2x256xf32>
    tpu.vector_store %arg9[%c0_298, %c0_299], %508 {strides = array<i32>} : memref<54x256xf32, #tpu.memory_space<vmem>>, vector<2x256xf32>,
    %c2_300 = arith.constant 2 : index
    %c0_301 = arith.constant 0 : index
    %513 = vector.load %arg9[%c2_300, %c0_301] : memref<54x256xf32, #tpu.memory_space<vmem>>, vector<2x256xf32>
    tpu.vector_store %arg9[%c2_300, %c0_301], %503 {strides = array<i32>} : memref<54x256xf32, #tpu.memory_space<vmem>>, vector<2x256xf32>,
    %c4_302 = arith.constant 4 : index
    %c0_303 = arith.constant 0 : index
    %514 = vector.load %arg9[%c4_302, %c0_303] : memref<54x256xf32, #tpu.memory_space<vmem>>, vector<2x256xf32>
    tpu.vector_store %arg9[%c4_302, %c0_303], %511 {strides = array<i32>} : memref<54x256xf32, #tpu.memory_space<vmem>>, vector<2x256xf32>,
    %c0_304 = arith.constant 0 : index
    %c16_305 = arith.constant 16 : index
    %515 = vector.load %arg7[%c0_304, %c16_305] : memref<2x288xf32, #tpu.memory_space<vmem>>, vector<2x256xf32>
    %c1_i32_306 = arith.constant 1 : i32
    %516 = tpu.dynamic_rotate %515 by %c1_i32_306 dim 1 : vector<2x256xf32>, i32 -> vector<2x256xf32>
    %c255_i32_307 = arith.constant 255 : i32
    %517 = tpu.dynamic_rotate %515 by %c255_i32_307 dim 1 : vector<2x256xf32>, i32 -> vector<2x256xf32>
    %518 = vector.shape_cast %18 : vector<1x256xi1> to vector<1x256xi1>
    %519 = vector.broadcast %518 : vector<1x256xi1> to vector<2x256xi1>
    %520 = arith.select %519, %517, %516 : vector<2x256xi1>, vector<2x256xf32>
    %521 = vector.shape_cast %22 : vector<1x256xi1> to vector<1x256xi1>
    %522 = vector.broadcast %521 : vector<1x256xi1> to vector<2x256xi1>
    %523 = arith.select %522, %516, %517 : vector<2x256xi1>, vector<2x256xf32>
    %c6_308 = arith.constant 6 : index
    %c0_309 = arith.constant 0 : index
    %524 = vector.load %arg9[%c6_308, %c0_309] : memref<54x256xf32, #tpu.memory_space<vmem>>, vector<2x256xf32>
    tpu.vector_store %arg9[%c6_308, %c0_309], %520 {strides = array<i32>} : memref<54x256xf32, #tpu.memory_space<vmem>>, vector<2x256xf32>,
    %c8_310 = arith.constant 8 : index
    %c0_311 = arith.constant 0 : index
    %525 = vector.load %arg9[%c8_310, %c0_311] : memref<54x256xf32, #tpu.memory_space<vmem>>, vector<2x256xf32>
    tpu.vector_store %arg9[%c8_310, %c0_311], %515 {strides = array<i32>} : memref<54x256xf32, #tpu.memory_space<vmem>>, vector<2x256xf32>,
    %c10_312 = arith.constant 10 : index
    %c0_313 = arith.constant 0 : index
    %526 = vector.load %arg9[%c10_312, %c0_313] : memref<54x256xf32, #tpu.memory_space<vmem>>, vector<2x256xf32>
    tpu.vector_store %arg9[%c10_312, %c0_313], %523 {strides = array<i32>} : memref<54x256xf32, #tpu.memory_space<vmem>>, vector<2x256xf32>,
    %c0_314 = arith.constant 0 : index
    %c32_315 = arith.constant 32 : index
    %527 = vector.load %arg7[%c0_314, %c32_315] : memref<2x288xf32, #tpu.memory_space<vmem>>, vector<2x256xf32>
    %c1_i32_316 = arith.constant 1 : i32
    %528 = tpu.dynamic_rotate %527 by %c1_i32_316 dim 1 : vector<2x256xf32>, i32 -> vector<2x256xf32>
    %c255_i32_317 = arith.constant 255 : i32
    %529 = tpu.dynamic_rotate %527 by %c255_i32_317 dim 1 : vector<2x256xf32>, i32 -> vector<2x256xf32>
    %530 = vector.shape_cast %18 : vector<1x256xi1> to vector<1x256xi1>
    %531 = vector.broadcast %530 : vector<1x256xi1> to vector<2x256xi1>
    %532 = arith.select %531, %529, %528 : vector<2x256xi1>, vector<2x256xf32>
    %533 = vector.shape_cast %22 : vector<1x256xi1> to vector<1x256xi1>
    %534 = vector.broadcast %533 : vector<1x256xi1> to vector<2x256xi1>
    %535 = arith.select %534, %528, %529 : vector<2x256xi1>, vector<2x256xf32>
    %c12_318 = arith.constant 12 : index
    %c0_319 = arith.constant 0 : index
    %536 = vector.load %arg9[%c12_318, %c0_319] : memref<54x256xf32, #tpu.memory_space<vmem>>, vector<2x256xf32>
    tpu.vector_store %arg9[%c12_318, %c0_319], %532 {strides = array<i32>} : memref<54x256xf32, #tpu.memory_space<vmem>>, vector<2x256xf32>,
    %c14_320 = arith.constant 14 : index
    %c0_321 = arith.constant 0 : index
    %537 = vector.load %arg9[%c14_320, %c0_321] : memref<54x256xf32, #tpu.memory_space<vmem>>, vector<2x256xf32>
    tpu.vector_store %arg9[%c14_320, %c0_321], %527 {strides = array<i32>} : memref<54x256xf32, #tpu.memory_space<vmem>>, vector<2x256xf32>,
    %c16_322 = arith.constant 16 : index
    %c0_323 = arith.constant 0 : index
    %538 = vector.load %arg9[%c16_322, %c0_323] : memref<54x256xf32, #tpu.memory_space<vmem>>, vector<2x256xf32>
    tpu.vector_store %arg9[%c16_322, %c0_323], %535 {strides = array<i32>} : memref<54x256xf32, #tpu.memory_space<vmem>>, vector<2x256xf32>,
    %c0_324 = arith.constant 0 : index
    %c0_325 = arith.constant 0 : index
    %539 = vector.load %arg9[%c0_324, %c0_325] : memref<54x256xf32, #tpu.memory_space<vmem>>, vector<36x256xf32>
    %cst_326 = arith.constant dense<0.000000e+00> : vector<2x256xf32>
    %540 = tpu.matmul %26, %539, %cst_326 {dimension_numbers = #tpu.dot_dimension_numbers<[1], [0], [0], [1], [0, 0, 1, 1], [], []>} : vector<2x36xf32>, vector<36x256xf32>, vector<2x256xf32> -> vector<2x256xf32>
    %cst_327 = arith.constant dense<0.000000e+00> : vector<2xf32>
    %541 = vector.multi_reduction <add>, %540, %cst_327 [1] : vector<2x256xf32> to vector<2xf32>
    %542 = vector.shape_cast %541 : vector<2xf32> to vector<2x1xf32>
    %cst_328 = arith.constant 3.906250e-03 : f32
    %543 = vector.broadcast %cst_328 : f32 to vector<2x1xf32>
    %544 = arith.mulf %542, %543 : vector<2x1xf32>
    %545 = arith.mulf %540, %540 : vector<2x256xf32>
    %cst_329 = arith.constant dense<0.000000e+00> : vector<2xf32>
    %546 = vector.multi_reduction <add>, %545, %cst_329 [1] : vector<2x256xf32> to vector<2xf32>
    %547 = vector.shape_cast %546 : vector<2xf32> to vector<2x1xf32>
    %cst_330 = arith.constant 3.906250e-03 : f32
    %548 = vector.broadcast %cst_330 : f32 to vector<2x1xf32>
    %549 = arith.mulf %547, %548 : vector<2x1xf32>
    %550 = arith.mulf %544, %544 : vector<2x1xf32>
    %551 = arith.subf %549, %550 : vector<2x1xf32>
    %cst_331 = arith.constant 0.000000e+00 : f32
    %552 = vector.broadcast %cst_331 : f32 to vector<2x1xf32>
    %553 = arith.maximumf %551, %552 : vector<2x1xf32>
    %554 = vector.broadcast %544 : vector<2x1xf32> to vector<2x256xf32>
    %555 = arith.subf %540, %554 : vector<2x256xf32>
    %cst_332 = arith.constant 9.99999974E-6 : f32
    %556 = vector.broadcast %cst_332 : f32 to vector<2x1xf32>
    %557 = arith.addf %553, %556 : vector<2x1xf32>
    %558 = math.rsqrt %557 : vector<2x1xf32>
    %559 = vector.broadcast %558 : vector<2x1xf32> to vector<2x256xf32>
    %560 = arith.mulf %555, %559 : vector<2x256xf32>
    %cst_333 = arith.constant 0.000000e+00 : f32
    %561 = vector.broadcast %cst_333 : f32 to vector<2x256xf32>
    %562 = arith.maximumf %560, %561 : vector<2x256xf32>
    %c0_334 = arith.constant 0 : index
    %c16_335 = arith.constant 16 : index
    %563 = vector.load %arg7[%c0_334, %c16_335] : memref<2x288xf32, #tpu.memory_space<vmem>>, vector<2x256xf32>
    tpu.vector_store %arg7[%c0_334, %c16_335], %562 {strides = array<i32>} : memref<2x288xf32, #tpu.memory_space<vmem>>, vector<2x256xf32>,
    %564 = vector.extract_strided_slice %562 {offsets = [0, 16], sizes = [2, 16], strides = [1, 1]} : vector<2x256xf32> to vector<2x16xf32>
    %c0_336 = arith.constant 0 : index
    %c0_337 = arith.constant 0 : index
    %565 = vector.load %arg7[%c0_336, %c0_337] : memref<2x288xf32, #tpu.memory_space<vmem>>, vector<2x16xf32>
    tpu.vector_store %arg7[%c0_336, %c0_337], %564 {strides = array<i32>} : memref<2x288xf32, #tpu.memory_space<vmem>>, vector<2x16xf32>,
    %566 = vector.extract_strided_slice %562 {offsets = [0, 224], sizes = [2, 16], strides = [1, 1]} : vector<2x256xf32> to vector<2x16xf32>
    %c0_338 = arith.constant 0 : index
    %c272_339 = arith.constant 272 : index
    %567 = vector.load %arg7[%c0_338, %c272_339] : memref<2x288xf32, #tpu.memory_space<vmem>>, vector<2x16xf32>
    tpu.vector_store %arg7[%c0_338, %c272_339], %566 {strides = array<i32>} : memref<2x288xf32, #tpu.memory_space<vmem>>, vector<2x16xf32>,
    %c0_340 = arith.constant 0 : index
    %c0_341 = arith.constant 0 : index
    %568 = vector.load %arg7[%c0_340, %c0_341] : memref<2x288xf32, #tpu.memory_space<vmem>>, vector<2x256xf32>
    %c1_i32_342 = arith.constant 1 : i32
    %569 = tpu.dynamic_rotate %568 by %c1_i32_342 dim 1 : vector<2x256xf32>, i32 -> vector<2x256xf32>
    %c255_i32_343 = arith.constant 255 : i32
    %570 = tpu.dynamic_rotate %568 by %c255_i32_343 dim 1 : vector<2x256xf32>, i32 -> vector<2x256xf32>
    %571 = vector.shape_cast %18 : vector<1x256xi1> to vector<1x256xi1>
    %572 = vector.broadcast %571 : vector<1x256xi1> to vector<2x256xi1>
    %573 = arith.select %572, %570, %569 : vector<2x256xi1>, vector<2x256xf32>
    %574 = vector.shape_cast %22 : vector<1x256xi1> to vector<1x256xi1>
    %575 = vector.broadcast %574 : vector<1x256xi1> to vector<2x256xi1>
    %576 = arith.select %575, %569, %570 : vector<2x256xi1>, vector<2x256xf32>
    %c36_344 = arith.constant 36 : index
    %c0_345 = arith.constant 0 : index
    %577 = vector.load %arg9[%c36_344, %c0_345] : memref<54x256xf32, #tpu.memory_space<vmem>>, vector<2x256xf32>
    tpu.vector_store %arg9[%c36_344, %c0_345], %573 {strides = array<i32>} : memref<54x256xf32, #tpu.memory_space<vmem>>, vector<2x256xf32>,
    %c38_346 = arith.constant 38 : index
    %c0_347 = arith.constant 0 : index
    %578 = vector.load %arg9[%c38_346, %c0_347] : memref<54x256xf32, #tpu.memory_space<vmem>>, vector<2x256xf32>
    tpu.vector_store %arg9[%c38_346, %c0_347], %568 {strides = array<i32>} : memref<54x256xf32, #tpu.memory_space<vmem>>, vector<2x256xf32>,
    %c40_348 = arith.constant 40 : index
    %c0_349 = arith.constant 0 : index
    %579 = vector.load %arg9[%c40_348, %c0_349] : memref<54x256xf32, #tpu.memory_space<vmem>>, vector<2x256xf32>
    tpu.vector_store %arg9[%c40_348, %c0_349], %576 {strides = array<i32>} : memref<54x256xf32, #tpu.memory_space<vmem>>, vector<2x256xf32>,
    %c0_350 = arith.constant 0 : index
    %c16_351 = arith.constant 16 : index
    %580 = vector.load %arg7[%c0_350, %c16_351] : memref<2x288xf32, #tpu.memory_space<vmem>>, vector<2x256xf32>
    %c1_i32_352 = arith.constant 1 : i32
    %581 = tpu.dynamic_rotate %580 by %c1_i32_352 dim 1 : vector<2x256xf32>, i32 -> vector<2x256xf32>
    %c255_i32_353 = arith.constant 255 : i32
    %582 = tpu.dynamic_rotate %580 by %c255_i32_353 dim 1 : vector<2x256xf32>, i32 -> vector<2x256xf32>
    %583 = vector.shape_cast %18 : vector<1x256xi1> to vector<1x256xi1>
    %584 = vector.broadcast %583 : vector<1x256xi1> to vector<2x256xi1>
    %585 = arith.select %584, %582, %581 : vector<2x256xi1>, vector<2x256xf32>
    %586 = vector.shape_cast %22 : vector<1x256xi1> to vector<1x256xi1>
    %587 = vector.broadcast %586 : vector<1x256xi1> to vector<2x256xi1>
    %588 = arith.select %587, %581, %582 : vector<2x256xi1>, vector<2x256xf32>
    %c42_354 = arith.constant 42 : index
    %c0_355 = arith.constant 0 : index
    %589 = vector.load %arg9[%c42_354, %c0_355] : memref<54x256xf32, #tpu.memory_space<vmem>>, vector<2x256xf32>
    tpu.vector_store %arg9[%c42_354, %c0_355], %585 {strides = array<i32>} : memref<54x256xf32, #tpu.memory_space<vmem>>, vector<2x256xf32>,
    %c44_356 = arith.constant 44 : index
    %c0_357 = arith.constant 0 : index
    %590 = vector.load %arg9[%c44_356, %c0_357] : memref<54x256xf32, #tpu.memory_space<vmem>>, vector<2x256xf32>
    tpu.vector_store %arg9[%c44_356, %c0_357], %580 {strides = array<i32>} : memref<54x256xf32, #tpu.memory_space<vmem>>, vector<2x256xf32>,
    %c46_358 = arith.constant 46 : index
    %c0_359 = arith.constant 0 : index
    %591 = vector.load %arg9[%c46_358, %c0_359] : memref<54x256xf32, #tpu.memory_space<vmem>>, vector<2x256xf32>
    tpu.vector_store %arg9[%c46_358, %c0_359], %588 {strides = array<i32>} : memref<54x256xf32, #tpu.memory_space<vmem>>, vector<2x256xf32>,
    %c0_360 = arith.constant 0 : index
    %c32_361 = arith.constant 32 : index
    %592 = vector.load %arg7[%c0_360, %c32_361] : memref<2x288xf32, #tpu.memory_space<vmem>>, vector<2x256xf32>
    %c1_i32_362 = arith.constant 1 : i32
    %593 = tpu.dynamic_rotate %592 by %c1_i32_362 dim 1 : vector<2x256xf32>, i32 -> vector<2x256xf32>
    %c255_i32_363 = arith.constant 255 : i32
    %594 = tpu.dynamic_rotate %592 by %c255_i32_363 dim 1 : vector<2x256xf32>, i32 -> vector<2x256xf32>
    %595 = vector.shape_cast %18 : vector<1x256xi1> to vector<1x256xi1>
    %596 = vector.broadcast %595 : vector<1x256xi1> to vector<2x256xi1>
    %597 = arith.select %596, %594, %593 : vector<2x256xi1>, vector<2x256xf32>
    %598 = vector.shape_cast %22 : vector<1x256xi1> to vector<1x256xi1>
    %599 = vector.broadcast %598 : vector<1x256xi1> to vector<2x256xi1>
    %600 = arith.select %599, %593, %594 : vector<2x256xi1>, vector<2x256xf32>
    %c48_364 = arith.constant 48 : index
    %c0_365 = arith.constant 0 : index
    %601 = vector.load %arg9[%c48_364, %c0_365] : memref<54x256xf32, #tpu.memory_space<vmem>>, vector<2x256xf32>
    tpu.vector_store %arg9[%c48_364, %c0_365], %597 {strides = array<i32>} : memref<54x256xf32, #tpu.memory_space<vmem>>, vector<2x256xf32>,
    %c50_366 = arith.constant 50 : index
    %c0_367 = arith.constant 0 : index
    %602 = vector.load %arg9[%c50_366, %c0_367] : memref<54x256xf32, #tpu.memory_space<vmem>>, vector<2x256xf32>
    tpu.vector_store %arg9[%c50_366, %c0_367], %592 {strides = array<i32>} : memref<54x256xf32, #tpu.memory_space<vmem>>, vector<2x256xf32>,
    %c52_368 = arith.constant 52 : index
    %c0_369 = arith.constant 0 : index
    %603 = vector.load %arg9[%c52_368, %c0_369] : memref<54x256xf32, #tpu.memory_space<vmem>>, vector<2x256xf32>
    tpu.vector_store %arg9[%c52_368, %c0_369], %600 {strides = array<i32>} : memref<54x256xf32, #tpu.memory_space<vmem>>, vector<2x256xf32>,
    %c18_370 = arith.constant 18 : index
    %c0_371 = arith.constant 0 : index
    %604 = vector.load %arg9[%c18_370, %c0_371] : memref<54x256xf32, #tpu.memory_space<vmem>>, vector<36x256xf32>
    %cst_372 = arith.constant dense<0.000000e+00> : vector<2x256xf32>
    %605 = tpu.matmul %27, %604, %cst_372 {dimension_numbers = #tpu.dot_dimension_numbers<[1], [0], [0], [1], [0, 0, 1, 1], [], []>} : vector<2x36xf32>, vector<36x256xf32>, vector<2x256xf32> -> vector<2x256xf32>
    %cst_373 = arith.constant dense<0.000000e+00> : vector<2xf32>
    %606 = vector.multi_reduction <add>, %605, %cst_373 [1] : vector<2x256xf32> to vector<2xf32>
    %607 = vector.shape_cast %606 : vector<2xf32> to vector<2x1xf32>
    %cst_374 = arith.constant 3.906250e-03 : f32
    %608 = vector.broadcast %cst_374 : f32 to vector<2x1xf32>
    %609 = arith.mulf %607, %608 : vector<2x1xf32>
    %610 = arith.mulf %605, %605 : vector<2x256xf32>
    %cst_375 = arith.constant dense<0.000000e+00> : vector<2xf32>
    %611 = vector.multi_reduction <add>, %610, %cst_375 [1] : vector<2x256xf32> to vector<2xf32>
    %612 = vector.shape_cast %611 : vector<2xf32> to vector<2x1xf32>
    %cst_376 = arith.constant 3.906250e-03 : f32
    %613 = vector.broadcast %cst_376 : f32 to vector<2x1xf32>
    %614 = arith.mulf %612, %613 : vector<2x1xf32>
    %615 = arith.mulf %609, %609 : vector<2x1xf32>
    %616 = arith.subf %614, %615 : vector<2x1xf32>
    %cst_377 = arith.constant 0.000000e+00 : f32
    %617 = vector.broadcast %cst_377 : f32 to vector<2x1xf32>
    %618 = arith.maximumf %616, %617 : vector<2x1xf32>
    %619 = vector.broadcast %609 : vector<2x1xf32> to vector<2x256xf32>
    %620 = arith.subf %605, %619 : vector<2x256xf32>
    %cst_378 = arith.constant 9.99999974E-6 : f32
    %621 = vector.broadcast %cst_378 : f32 to vector<2x1xf32>
    %622 = arith.addf %618, %621 : vector<2x1xf32>
    %623 = math.rsqrt %622 : vector<2x1xf32>
    %624 = vector.broadcast %623 : vector<2x1xf32> to vector<2x256xf32>
    %625 = arith.mulf %620, %624 : vector<2x256xf32>
    %cst_379 = arith.constant 0.000000e+00 : f32
    %626 = vector.broadcast %cst_379 : f32 to vector<2x256xf32>
    %627 = arith.maximumf %625, %626 : vector<2x256xf32>
    %c0_380 = arith.constant 0 : index
    %c0_381 = arith.constant 0 : index
    %628 = vector.load %arg9[%c0_380, %c0_381] : memref<54x256xf32, #tpu.memory_space<vmem>>, vector<2x256xf32>
    tpu.vector_store %arg9[%c0_380, %c0_381], %627 {strides = array<i32>} : memref<54x256xf32, #tpu.memory_space<vmem>>, vector<2x256xf32>,
    %c2_382 = arith.constant 2 : index
    %c0_383 = arith.constant 0 : index
    %629 = vector.load %arg9[%c2_382, %c0_383] : memref<54x256xf32, #tpu.memory_space<vmem>>, vector<2x256xf32>
    tpu.vector_store %arg9[%c2_382, %c0_383], %367 {strides = array<i32>} : memref<54x256xf32, #tpu.memory_space<vmem>>, vector<2x256xf32>,
    %c0_384 = arith.constant 0 : index
    %c0_385 = arith.constant 0 : index
    %630 = vector.load %arg5[%c0_384, %c0_385] : memref<4x4xf32, #tpu.memory_space<vmem>>, vector<4x4xf32>
    %c0_386 = arith.constant 0 : index
    %c0_387 = arith.constant 0 : index
    %631 = vector.load %arg9[%c0_386, %c0_387] : memref<54x256xf32, #tpu.memory_space<vmem>>, vector<4x256xf32>
    %cst_388 = arith.constant dense<0.000000e+00> : vector<4x256xf32>
    %632 = tpu.matmul %630, %631, %cst_388 {dimension_numbers = #tpu.dot_dimension_numbers<[1], [0], [0], [1], [0, 0, 1, 1], [], []>} : vector<4x4xf32>, vector<4x256xf32>, vector<4x256xf32> -> vector<4x256xf32>
    %cst_389 = arith.constant dense<0.000000e+00> : vector<4xf32>
    %633 = vector.multi_reduction <add>, %632, %cst_389 [1] : vector<4x256xf32> to vector<4xf32>
    %634 = vector.shape_cast %633 : vector<4xf32> to vector<4x1xf32>
    %cst_390 = arith.constant 3.906250e-03 : f32
    %635 = vector.broadcast %cst_390 : f32 to vector<4x1xf32>
    %636 = arith.mulf %634, %635 : vector<4x1xf32>
    %637 = arith.mulf %632, %632 : vector<4x256xf32>
    %cst_391 = arith.constant dense<0.000000e+00> : vector<4xf32>
    %638 = vector.multi_reduction <add>, %637, %cst_391 [1] : vector<4x256xf32> to vector<4xf32>
    %639 = vector.shape_cast %638 : vector<4xf32> to vector<4x1xf32>
    %cst_392 = arith.constant 3.906250e-03 : f32
    %640 = vector.broadcast %cst_392 : f32 to vector<4x1xf32>
    %641 = arith.mulf %639, %640 : vector<4x1xf32>
    %642 = arith.mulf %636, %636 : vector<4x1xf32>
    %643 = arith.subf %641, %642 : vector<4x1xf32>
    %cst_393 = arith.constant 0.000000e+00 : f32
    %644 = vector.broadcast %cst_393 : f32 to vector<4x1xf32>
    %645 = arith.maximumf %643, %644 : vector<4x1xf32>
    %646 = vector.broadcast %636 : vector<4x1xf32> to vector<4x256xf32>
    %647 = arith.subf %632, %646 : vector<4x256xf32>
    %cst_394 = arith.constant 9.99999974E-6 : f32
    %648 = vector.broadcast %cst_394 : f32 to vector<4x1xf32>
    %649 = arith.addf %645, %648 : vector<4x1xf32>
    %650 = math.rsqrt %649 : vector<4x1xf32>
    %651 = vector.broadcast %650 : vector<4x1xf32> to vector<4x256xf32>
    %652 = arith.mulf %647, %651 : vector<4x256xf32>
    %c1_395 = arith.constant 1 : index
    %c0_396 = arith.constant 0 : index
    %c0_397 = arith.constant 0 : index
    %653 = vector.load %arg6[%c1_395, %c0_396, %c0_397] : memref<2x4x256xf32, #tpu.memory_space<vmem>>, vector<1x4x256xf32>
    %654 = vector.shape_cast %653 : vector<1x4x256xf32> to vector<4x256xf32>
    %655 = vector.shape_cast %652 : vector<4x256xf32> to vector<1x4x256xf32>
    tpu.vector_store %arg6[%c1_395, %c0_396, %c0_397], %655 {strides = array<i32>} : memref<2x4x256xf32, #tpu.memory_space<vmem>>, vector<1x4x256xf32>,
    return
  }
  func.func @transform_0(%arg0: i32) -> (i32, i32, i32) {
    %c0_i32 = arith.constant 0 : i32
    %c0_i32_0 = arith.constant 0 : i32
    %c0_i32_1 = arith.constant 0 : i32
    return %arg0, %c0_i32, %c0_i32_0 : i32, i32, i32
  }
  func.func @transform_1(%arg0: i32) -> (i32, i32, i32) {
    %c0_i32 = arith.constant 0 : i32
    %c0_i32_0 = arith.constant 0 : i32
    %c0_i32_1 = arith.constant 0 : i32
    return %arg0, %c0_i32, %c0_i32_0 : i32, i32, i32
  }
  func.func @transform_2(%arg0: i32) -> (i32, i32) {
    %c0_i32 = arith.constant 0 : i32
    %c0_i32_0 = arith.constant 0 : i32
    %c0_i32_1 = arith.constant 0 : i32
    return %c0_i32, %c0_i32_0 : i32, i32
  }
  func.func @transform_3(%arg0: i32) -> (i32, i32) {
    %c0_i32 = arith.constant 0 : i32
    %c0_i32_0 = arith.constant 0 : i32
    %c0_i32_1 = arith.constant 0 : i32
    return %c0_i32, %c0_i32_0 : i32, i32
  }
  func.func @transform_4(%arg0: i32) -> (i32, i32) {
    %c0_i32 = arith.constant 0 : i32
    %c0_i32_0 = arith.constant 0 : i32
    %c0_i32_1 = arith.constant 0 : i32
    return %c0_i32, %c0_i32_0 : i32, i32
  }
  func.func @transform_5(%arg0: i32) -> (i32, i32, i32) {
    %c0_i32 = arith.constant 0 : i32
    %c0_i32_0 = arith.constant 0 : i32
    %c0_i32_1 = arith.constant 0 : i32
    return %arg0, %c0_i32, %c0_i32_0 : i32, i32, i32
  }
}

</mosaic_0001>

<llo_original>
// kernel: msfm_forward.1
$region0: #{msfm_forward.1}
  #allocation0 [shape = 'u32[]', space=smem, size = 0x4, offset = 0x4, fixed_abs, tag = 'smem constant byte address 0x4 - core index']
  #allocation1 [shape = 'u32[144,128]{1,0:T(1,128)}', space=vmem, size = 0x12000, scoped, tag = 'internal scratch']
  #allocation2 [shape = 'f32[2,288]{1,0:T(2,128)}', space=vmem, size = 0xc00, scoped, tag = 'scratch operand']
  #allocation3 [shape = 'f32[2,320]{1,0:T(2,128)}', space=vmem, size = 0xc00, scoped, tag = 'scratch operand']
  #allocation4 [shape = 'f32[54,256]{1,0:T(8,128)}', space=vmem, size = 0xe000, scoped, tag = 'scratch operand']
  %s0 = inlined_call_operand.vmem [shape: f32[2,2,256], index: 0, kind: input, shape index: {}]
  %s1 = inlined_call_operand.vmem [shape: f32[2,2,256], index: 1, kind: input, shape index: {}]
  %s2 = inlined_call_operand.vmem [shape: f32[2,2], index: 2, kind: input, shape index: {}]
  %s3 = inlined_call_operand.vmem [shape: f32[2,90], index: 3, kind: input, shape index: {}]
  %s4 = inlined_call_operand.vmem [shape: f32[4,4], index: 4, kind: input, shape index: {}]
  %s5 = inlined_call_operand.vmem [shape: f32[2,4,256], index: 5, kind: output, shape index: {}]
  %s6 = sld [smem:[#allocation0]]
  $region30: #{msfm_forward.1} parent=0
    _
  %s8 = ssub.s32 1, %s6
  %s9 = scalar_select 0, %s8, %s6
  // Predicated region
  $region2: #{msfm_forward.1} parent=0 // pred_check
    _
  $region3: #{msfm_forward.1} parent=0 // pred_check_branch
    %11 = sbr.rel (0) target = $region5
  $region4: #{msfm_forward.1} parent=0 // pred_region
    _
  $region5: #{msfm_forward.1} parent=0 // pred_fallthru
    _
  // Predicated region
  $region6: #{msfm_forward.1} parent=0 // pred_check
    _
  $region7: #{msfm_forward.1} parent=0 // pred_check_branch
    %13 = sbr.rel (0) target = $region9
  $region8: #{msfm_forward.1} parent=0 // pred_region
    _
  $region9: #{msfm_forward.1} parent=0 // pred_fallthru
    _
  // Predicated region
  $region10: #{msfm_forward.1} parent=0 // pred_check
    _
  $region11: #{msfm_forward.1} parent=0 // pred_check_branch
    %15 = sbr.rel (0) target = $region13
  $region12: #{msfm_forward.1} parent=0 // pred_region
    _
  $region13: #{msfm_forward.1} parent=0 // pred_fallthru
    _
  // Predicated region
  $region14: #{msfm_forward.1} parent=0 // pred_check
    _
  $region15: #{msfm_forward.1} parent=0 // pred_check_branch
    %17 = sbr.rel (0) target = $region17
  $region16: #{msfm_forward.1} parent=0 // pred_region
    _
  $region17: #{msfm_forward.1} parent=0 // pred_fallthru
    _
  // Predicated region
  $region18: #{msfm_forward.1} parent=0 // pred_check
    _
  $region19: #{msfm_forward.1} parent=0 // pred_check_branch
    %19 = sbr.rel (0) target = $region21
  $region20: #{msfm_forward.1} parent=0 // pred_region
    _
  $region21: #{msfm_forward.1} parent=0 // pred_fallthru
    _
  %v20 = vlaneseq
  %v21 = vand.u32 %v20, 127
  %v22 = vadd.s32 %v21, 128
  %vm23 = vcmp.lt.s32.totalorder %v21, 0
  %v24 = vsub.s32 0, %v21
  %v25 = vsel %vm23, %v24, %v21
  %v26 = vshrl.u32 %v25, 4
  %v27 = vand.u32 %v25, 15
  %v28 = vsub.s32 0, %v27
  %v29 = vsel %vm23, %v28, %v27
  %vm30 = vcmp.lt.s32.totalorder %v22, 0
  %v31 = vsub.s32 0, %v22
  %v32 = vsel %vm30, %v31, %v22
  %v33 = vshrl.u32 %v32, 4
  %v34 = vand.u32 %v32, 15
  %v35 = vsub.s32 0, %v34
  %v36 = vsel %vm30, %v35, %v34
  %vm37 = vcmp.ne.s32.totalorder %v29, 0
  %vm38 = vcmp.ne.s32.totalorder %v36, 0
  %vm39 = vcmp.lt.s32.totalorder %v29, 0
  %vm40 = vcmp.lt.s32.totalorder %v36, 0
  %vm41 = vmand %vm39, %vm37
  %vm42 = vmand %vm40, %vm38
  %v43 = vadd.s32 %v29, 16
  %v44 = vadd.s32 %v36, 16
  %v45 = vsel %vm41, %v43, %v29
  %v46 = vsel %vm42, %v44, %v36
  %vm47 = vcmp.eq.s32.totalorder %v45, 0
  %vm48 = vcmp.eq.s32.totalorder %v46, 0
  %vm49 = vcmp.eq.s32.totalorder %v45, 1
  %vm50 = vcmp.eq.s32.totalorder %v46, 1
  %vm51 = vcmp.eq.s32.totalorder %v45, 15
  %vm52 = vcmp.eq.s32.totalorder %v46, 15
  %vm53 = vcmp.eq.s32.totalorder %v45, 14
  %vm54 = vcmp.eq.s32.totalorder %v46, 14
  %v55 = vld [vmem:[%s3] sm:$0x3]
  %v56 = vld [vmem:[%s2] sm:$0x3]
  %v57 = vld [vmem:[%s0] sm:$0xf]
  %v60 = vunpack.c.l.s4 1983009808
  %v61 = vunpack.c.0.s8 %v60
  %v62 = vlaneseq
  %v63 = vshrl.u32 %v62, 7
  %v64 = vsub.s32 %v61, %v63
  %v65 = vrot.slane %v57, %v64
  %v66 = vcombine.high %v65, %v65
  %vm67 = vcmask 15360
  %v69 = vsel %vm67, %v56, 0
  %vm71 = vcmask 1041408
  %v72 = vsel %vm71, %v65, 0
  %v74 = vsel %vm71, %v66, 0
  %76 = vmatprep.subr.mxu0 %v74
  %77 = vmatpush1.msra.mxu0 %v72
  %78 = vmatprep.subr.mxu0 0.0
  %79 = vmatpush1.msra.mxu0 0.0
  %80 = vmatprep.subr.mxu0 0.0
  %81 = vmatpush1.msra.mxu0 0.0
  %82 = vmatprep.subr.mxu0 0.0
  %83 = vmatpush1.msra.mxu0 0.0
  %84 = vmatprep.subr.mxu0 0.0
  %85 = vmatpush1.msra.mxu0 0.0
  %86 = vmatprep.subr.mxu0 0.0
  %87 = vmatpush1.msra.mxu0 0.0
  %88 = vmatprep.subr.mxu0 0.0
  %89 = vmatpush1.msra.mxu0 0.0
  %90 = vmatprep.subr.mxu0 0.0
  %91 = vmatpush1.msra.mxu0 0.0
  %92 = vmatprep.subr.mxu0 0.0
  %93 = vmatpush1.msra.mxu0 0.0
  %94 = vmatprep.subr.mxu0 0.0
  %95 = vmatpush1.msra.mxu0 0.0
  %96 = vmatprep.subr.mxu0 0.0
  %97 = vmatpush1.msra.mxu0 0.0
  %98 = vmatprep.subr.mxu0 0.0
  %99 = vmatpush1.msra.mxu0 0.0
  %100 = vmatprep.subr.mxu0 0.0
  %101 = vmatpush1.msra.mxu0 0.0
  %102 = vmatprep.subr.mxu0 0.0
  %103 = vmatpush1.msra.mxu0 0.0
  %104 = vmatprep.subr.mxu0 0.0
  %105 = vmatpush1.msra.mxu0 0.0
  %106 = vmatprep.subr.mxu0 0.0
  %107 = vmatpush1.msra.mxu0 0.0
  %108 = vmatprep.subr.mxu0 0.0
  %109 = vmatpush1.msra.mxu0 0.0
  %110 = vmatprep.subr.mxu0 0.0
  %111 = vmatpush1.msra.mxu0 0.0
  %112 = vmatprep.subr.mxu0 0.0
  %113 = vmatpush1.msra.mxu0 0.0
  %114 = vmatprep.subr.mxu0 0.0
  %115 = vmatpush1.msra.mxu0 0.0
  %116 = vmatprep.subr.mxu0 0.0
  %117 = vmatpush1.msra.mxu0 0.0
  %118 = vmatprep.subr.mxu0 0.0
  %119 = vmatpush1.msra.mxu0 0.0
  %120 = vmatprep.subr.mxu0 0.0
  %121 = vmatpush1.msra.mxu0 0.0
  %122 = vmatprep.subr.mxu0 0.0
  %123 = vmatpush1.msra.mxu0 0.0
  %124 = vmatprep.subr.mxu0 0.0
  %125 = vmatpush1.msra.mxu0 0.0
  %126 = vmatprep.subr.mxu0 0.0
  %127 = vmatpush1.msra.mxu0 0.0
  %128 = vmatprep.subr.mxu0 0.0
  %129 = vmatpush1.msra.mxu0 0.0
  %130 = vmatprep.subr.mxu0 0.0
  %131 = vmatpush1.msra.mxu0 0.0
  %132 = vmatprep.subr.mxu0 0.0
  %133 = vmatpush1.msra.mxu0 0.0
  %134 = vmatprep.subr.mxu0 0.0
  %135 = vmatpush1.msra.mxu0 0.0
  %136 = vmatprep.subr.mxu0 0.0
  %137 = vmatpush1.msra.mxu0 0.0
  %138 = vmatprep.subr.mxu0 0.0
  %139 = vmatpush1.msra.mxu0 0.0
  %140 = vmatprep.mubr.f32.mxu0 0.0
  %141 = vmatmul.mubr.f32.gmra.mrb[0].mxu0 %v69
  %v142 = vpop.f32.mrb[0].mxu0
  %v143 = vadd.f32 0.0, %v142
  %v144 = vpop.f32.mrb[0].mxu0
  %v145 = vadd.f32 0.0, %v144
  %146 = vdwg.mxu0
  %v147 = vsel %vm71, %v143, 0.0
  %v148 = vsel %vm71, %v145, 0.0
  %v149 = vadd.f32 %v147, %v148
  %150 = vadd.xlane.f32.xlu0 %v149
  %v151 = vpop.xlane.xlu0 %150
  %v152 = vmul.f32 %v151, 0.00390625
  %v153 = vmul.f32 %v143, %v143
  %v154 = vmul.f32 %v145, %v145
  %v155 = vsel %vm71, %v153, 0.0
  %v156 = vsel %vm71, %v154, 0.0
  %v157 = vadd.f32 %v155, %v156
  %158 = vadd.xlane.f32.xlu0 %v157
  %v159 = vpop.xlane.xlu0 %158
  %v160 = vmul.f32 %v159, 0.00390625
  %v161 = vmul.f32 %v152, %v152
  %v162 = vsub.f32 %v160, %v161
  %v163 = vmax.f32 %v162, 0.0
  %v164 = vsub.f32 %v143, %v152
  %v165 = vsub.f32 %v145, %v152
  %v166 = vadd.f32 %v163, 1e-05
  %v167 = vrsqrt.pop %v166
  %v168 = vmul.f32 %v164, %v167
  %v169 = vmul.f32 %v165, %v167
  %v170 = vmax.f32 %v168, 0.0
  %v171 = vmax.f32 %v169, 0.0
  %v174 = vcombine.low %v170, %v171
  %v176 = vunpack.c.l.s4 1983009808
  %v177 = vunpack.c.0.s8 %v176
  %v178 = vlaneseq
  %v179 = vshrl.u32 %v178, 7
  %v180 = vsub.s32 %v177, %v179
  %v181 = vrot.slane %v174, %v180
  %182 = vrot.lane.b32.xlu0 %v181, 16
  %v183 = vpop.permute.xlu0 %182
  %v184 = vrot.slane %v183, 6
  %vm185 = vcmask 130048
  %v186 = vsel %vm185, %v184, %v183
  %vm188 = vcmask 1041536
  %vm189 = vcmask 1043458
  %vm190 = vmor %vm189, %vm188
  %vm191 = vcmask 128004
  %vm192 = vmor %vm191, %vm190
  %193 = vst.msk [vmem:[#allocation2] sm:$0x3f] %vm192, %v186
  %v195 = vunpack.c.l.s4 1983009808
  %v196 = vunpack.c.0.s8 %v195
  %v197 = vlaneseq
  %v198 = vshrl.u32 %v197, 7
  %v199 = vsub.s32 %v196, %v198
  %v200 = vrot.slane %v170, %v199
  %201 = vrot.lane.b32.xlu0 %v200, 112
  %v202 = vpop.permute.xlu0 %201
  %vm204 = vcmask 123904
  %205 = vst.msk [vmem:[#allocation2] sm:$0x3] %vm204, %v202
  %v207 = vunpack.c.l.s4 1983009808
  %v208 = vunpack.c.0.s8 %v207
  %v209 = vlaneseq
  %v210 = vshrl.u32 %v209, 7
  %v211 = vsub.s32 %v208, %v210
  %v212 = vrot.slane %v171, %v211
  %213 = vrot.lane.b32.xlu0 %v212, 48
  %v214 = vpop.permute.xlu0 %213
  %vm216 = vcmask 255104
  %217 = vst.msk [vmem:[#allocation2 + $0x4] sm:$0x3] %vm216, %v214
  %v218 = vld [vmem:[#allocation2] sm:$0xf]
  %v221 = vunpack.c.l.s4 1983009808
  %v222 = vunpack.c.0.s8 %v221
  %v223 = vlaneseq
  %v224 = vshrl.u32 %v223, 7
  %v225 = vsub.s32 %v222, %v224
  %v226 = vrot.slane %v218, %v225
  %v227 = vcombine.high %v226, %v226
  %230 = vrot.lane.b32.xlu0 %v226, 1
  %v231 = vpop.permute.xlu0 %230
  %232 = vrot.lane.b32.xlu0 %v227, 1
  %v233 = vpop.permute.xlu0 %232
  %vm234 = vcmp.lt.s32.totalorder %v21, 1
  %v235 = vsel %vm234, %v231, %v233
  %v236 = vsel %vm234, %v233, %v231
  %237 = vrot.lane.b32.xlu0 %v226, 127
  %v238 = vpop.permute.xlu0 %237
  %239 = vrot.lane.b32.xlu0 %v227, 127
  %v240 = vpop.permute.xlu0 %239
  %vm241 = vcmp.lt.s32.totalorder %v21, 127
  %v242 = vsel %vm241, %v238, %v240
  %v243 = vsel %vm241, %v240, %v238
  %v244 = vsel %vm47, 1, 0
  %v245 = vsel %vm48, 1, 0
  %vm246 = vcmp.eq.s32.totalorder %v244, 1
  %vm247 = vcmp.eq.s32.totalorder %v245, 1
  %v248 = vsel %vm246, %v242, %v236
  %v249 = vsel %vm247, %v243, %v235
  %v250 = vsel %vm51, 1, 0
  %v251 = vsel %vm52, 1, 0
  %vm252 = vcmp.eq.s32.totalorder %v250, 1
  %vm253 = vcmp.eq.s32.totalorder %v251, 1
  %v254 = vsel %vm252, %v236, %v242
  %v255 = vsel %vm253, %v235, %v243
  %v258 = vrot.slane %v248, 6
  %v259 = vrot.slane %v249, 6
  %262 = vst [vmem:[#allocation4 + $0x20] sm:$0xc] %v258
  %263 = vst [vmem:[#allocation4 + $0x28] sm:$0xc] %v259
  %v264 = vcombine.low %v226, %v226
  %266 = vst [vmem:[#allocation4 + $0x20] sm:$0x30] %v264
  %267 = vst [vmem:[#allocation4 + $0x28] sm:$0x30] %v226
  %v270 = vrot.slane %v254, 2
  %v271 = vrot.slane %v255, 2
  %274 = vst [vmem:[#allocation4 + $0x20] sm:$0xc0] %v270
  %275 = vst [vmem:[#allocation4 + $0x28] sm:$0xc0] %v271
  %v276 = vld [vmem:[#allocation2] sm:$0x3f]
  %v278 = vcombine.high %v276, %v276
  %v280 = vunpack.c.l.s4 1983009808
  %v281 = vunpack.c.0.s8 %v280
  %v282 = vlaneseq
  %v283 = vshrl.u32 %v282, 7
  %v284 = vsub.s32 %v281, %v283
  %v285 = vrot.slane %v276, %v284
  %v287 = vunpack.c.l.s4 1983009808
  %v288 = vunpack.c.0.s8 %v287
  %v289 = vlaneseq
  %v290 = vshrl.u32 %v289, 7
  %v291 = vsub.s32 %v288, %v290
  %v292 = vrot.slane %v278, %v291
  %v293 = vcombine.high %v285, %v285
  %294 = vrot.lane.b32.xlu0 %v285, 112
  %v295 = vpop.permute.xlu0 %294
  %296 = vrot.lane.b32.xlu0 %v293, 112
  %v297 = vpop.permute.xlu0 %296
  %298 = vrot.lane.b32.xlu0 %v292, 112
  %v299 = vpop.permute.xlu0 %298
  %vm300 = vcmask 916480
  %v301 = vsel %vm300, %v295, %v297
  %v302 = vsel %vm300, %v297, %v299
  %305 = vrot.lane.b32.xlu0 %v301, 1
  %v306 = vpop.permute.xlu0 %305
  %307 = vrot.lane.b32.xlu0 %v302, 1
  %v308 = vpop.permute.xlu0 %307
  %v309 = vsel %vm234, %v306, %v308
  %v310 = vsel %vm234, %v308, %v306
  %311 = vrot.lane.b32.xlu0 %v301, 127
  %v312 = vpop.permute.xlu0 %311
  %313 = vrot.lane.b32.xlu0 %v302, 127
  %v314 = vpop.permute.xlu0 %313
  %v315 = vsel %vm241, %v312, %v314
  %v316 = vsel %vm241, %v314, %v312
  %v317 = vsel %vm246, %v315, %v310
  %v318 = vsel %vm247, %v316, %v309
  %v319 = vsel %vm252, %v310, %v315
  %v320 = vsel %vm253, %v309, %v316
  %321 = vst [vmem:[#allocation4 + $0x30] sm:$0x3] %v317
  %322 = vst [vmem:[#allocation4 + $0x38] sm:$0x3] %v318
  %v323 = vcombine.low %v276, %v276
  %v325 = vunpack.c.l.s4 1983009808
  %v326 = vunpack.c.0.s8 %v325
  %v327 = vlaneseq
  %v328 = vshrl.u32 %v327, 7
  %v329 = vsub.s32 %v326, %v328
  %v330 = vrot.slane %v323, %v329
  %v331 = vcombine.high %v330, %v330
  %332 = vrot.lane.b32.xlu0 %v330, 112
  %v333 = vpop.permute.xlu0 %332
  %334 = vrot.lane.b32.xlu0 %v331, 112
  %v335 = vpop.permute.xlu0 %334
  %v336 = vsel %vm300, %v333, %v335
  %v337 = vsel %vm300, %v335, %v295
  %340 = vst [vmem:[#allocation4 + $0x30] sm:$0xc] %v336
  %341 = vst [vmem:[#allocation4 + $0x38] sm:$0xc] %v337
  %v344 = vrot.slane %v319, 4
  %v345 = vrot.slane %v320, 4
  %348 = vst [vmem:[#allocation4 + $0x30] sm:$0x30] %v344
  %349 = vst [vmem:[#allocation4 + $0x38] sm:$0x30] %v345
  %v350 = vld [vmem:[#allocation2] sm:$0x3f]
  %v352 = vcombine.high %v350, %v350
  %v354 = vunpack.c.l.s4 1983009808
  %v355 = vunpack.c.0.s8 %v354
  %v356 = vlaneseq
  %v357 = vshrl.u32 %v356, 7
  %v358 = vsub.s32 %v355, %v357
  %v359 = vrot.slane %v350, %v358
  %v361 = vunpack.c.l.s4 1983009808
  %v362 = vunpack.c.0.s8 %v361
  %v363 = vlaneseq
  %v364 = vshrl.u32 %v363, 7
  %v365 = vsub.s32 %v362, %v364
  %v366 = vrot.slane %v352, %v365
  %v367 = vcombine.high %v359, %v359
  %368 = vrot.lane.b32.xlu0 %v359, 96
  %v369 = vpop.permute.xlu0 %368
  %370 = vrot.lane.b32.xlu0 %v367, 96
  %v371 = vpop.permute.xlu0 %370
  %372 = vrot.lane.b32.xlu0 %v366, 96
  %v373 = vpop.permute.xlu0 %372
  %vm374 = vcmask 785408
  %v375 = vsel %vm374, %v369, %v371
  %v376 = vsel %vm374, %v371, %v373
  %379 = vrot.lane.b32.xlu0 %v375, 1
  %v380 = vpop.permute.xlu0 %379
  %381 = vrot.lane.b32.xlu0 %v376, 1
  %v382 = vpop.permute.xlu0 %381
  %v383 = vsel %vm234, %v380, %v382
  %v384 = vsel %vm234, %v382, %v380
  %385 = vrot.lane.b32.xlu0 %v375, 127
  %v386 = vpop.permute.xlu0 %385
  %387 = vrot.lane.b32.xlu0 %v376, 127
  %v388 = vpop.permute.xlu0 %387
  %v389 = vsel %vm241, %v386, %v388
  %v390 = vsel %vm241, %v388, %v386
  %v391 = vsel %vm246, %v389, %v384
  %v392 = vsel %vm247, %v390, %v383
  %v393 = vsel %vm252, %v384, %v389
  %v394 = vsel %vm253, %v383, %v390
  %v397 = vrot.slane %v391, 2
  %v398 = vrot.slane %v392, 2
  %401 = vst [vmem:[#allocation4 + $0x30] sm:$0xc0] %v397
  %402 = vst [vmem:[#allocation4 + $0x38] sm:$0xc0] %v398
  %403 = vst [vmem:[#allocation4 + $0x40] sm:$0x3] %v375
  %404 = vst [vmem:[#allocation4 + $0x48] sm:$0x3] %v376
  %v407 = vrot.slane %v393, 6
  %v408 = vrot.slane %v394, 6
  %411 = vst [vmem:[#allocation4 + $0x40] sm:$0xc] %v407
  %412 = vst [vmem:[#allocation4 + $0x48] sm:$0xc] %v408
  %v413 = vld [vmem:[%s1] sm:$0xf]
  %415 = vrot.lane.b32.xlu0 %v413, 32
  %v416 = vpop.permute.xlu0 %415
  %v417 = vrot.slane %v416, 6
  %vm418 = vcmask 261120
  %v419 = vsel %vm418, %v417, %v416
  %vm421 = vcmask 1041664
  %vm422 = vmor %vm189, %vm421
  %vm423 = vcmask 259076
  %vm424 = vmor %vm423, %vm422
  %425 = vst.msk [vmem:[#allocation3] sm:$0x3f] %vm424, %v419
  %426 = vrot.lane.b32.xlu0 %v413, 96
  %v427 = vpop.permute.xlu0 %426
  %429 = vst.msk [vmem:[#allocation3] sm:$0x3] %vm204, %v427
  %430 = vst.msk [vmem:[#allocation3] sm:$0x3] %vm216, %v413
  %431 = vrot.lane.b32.xlu0 %v413, 64
  %v432 = vpop.permute.xlu0 %431
  %v433 = vrot.slane %v432, 2
  %vm435 = vcmask 386304
  %436 = vst.msk [vmem:[#allocation3 + $0x4] sm:$0x3] %vm435, %v433
  %v437 = vrot.slane %v427, 2
  %vm439 = vcmask 517504
  %440 = vst.msk [vmem:[#allocation3 + $0x4] sm:$0x3] %vm439, %v437
  %v441 = vld [vmem:[#allocation3] sm:$0xf]
  %v444 = vunpack.c.l.s4 1983009808
  %v445 = vunpack.c.0.s8 %v444
  %v446 = vlaneseq
  %v447 = vshrl.u32 %v446, 7
  %v448 = vsub.s32 %v445, %v447
  %v449 = vrot.slane %v441, %v448
  %v450 = vcombine.high %v449, %v449
  %453 = vrot.lane.b32.xlu0 %v449, 2
  %v454 = vpop.permute.xlu0 %453
  %455 = vrot.lane.b32.xlu0 %v450, 2
  %v456 = vpop.permute.xlu0 %455
  %vm457 = vcmp.lt.s32.totalorder %v21, 2
  %v458 = vsel %vm457, %v454, %v456
  %v459 = vsel %vm457, %v456, %v454
  %460 = vrot.lane.b32.xlu0 %v449, 126
  %v461 = vpop.permute.xlu0 %460
  %462 = vrot.lane.b32.xlu0 %v450, 126
  %v463 = vpop.permute.xlu0 %462
  %vm464 = vcmp.lt.s32.totalorder %v21, 126
  %v465 = vsel %vm464, %v461, %v463
  %v466 = vsel %vm464, %v463, %v461
  %v467 = vsel %vm49, 1, 0
  %v468 = vsel %vm50, 1, 0
  %vm469 = vcmp.eq.s32.totalorder %v467, 1
  %vm470 = vcmp.eq.s32.totalorder %v468, 1
  %v471 = vsel %vm469, %v449, %v459
  %v472 = vsel %vm470, %v450, %v458
  %v473 = vsel %vm246, %v465, %v471
  %v474 = vsel %vm247, %v466, %v472
  %v475 = vsel %vm53, 1, 0
  %v476 = vsel %vm54, 1, 0
  %vm477 = vcmp.eq.s32.totalorder %v475, 1
  %vm478 = vcmp.eq.s32.totalorder %v476, 1
  %v479 = vsel %vm477, %v449, %v465
  %v480 = vsel %vm478, %v450, %v466
  %v481 = vsel %vm252, %v459, %v479
  %v482 = vsel %vm253, %v458, %v480
  %483 = vst [vmem:[#allocation4] sm:$0x3] %v473
  %484 = vst [vmem:[#allocation4 + $0x8] sm:$0x3] %v474
  %v485 = vcombine.low %v441, %v441
  %v487 = vunpack.c.l.s4 1983009808
  %v488 = vunpack.c.0.s8 %v487
  %v489 = vlaneseq
  %v490 = vshrl.u32 %v489, 7
  %v491 = vsub.s32 %v488, %v490
  %v492 = vrot.slane %v485, %v491
  %v493 = vcombine.high %v492, %v492
  %496 = vst [vmem:[#allocation4] sm:$0xc] %v492
  %497 = vst [vmem:[#allocation4 + $0x8] sm:$0xc] %v493
  %v500 = vrot.slane %v481, 4
  %v501 = vrot.slane %v482, 4
  %504 = vst [vmem:[#allocation4] sm:$0x30] %v500
  %505 = vst [vmem:[#allocation4 + $0x8] sm:$0x30] %v501
  %v506 = vld [vmem:[#allocation3] sm:$0x3f]
  %v508 = vcombine.high %v506, %v506
  %v510 = vunpack.c.l.s4 1983009808
  %v511 = vunpack.c.0.s8 %v510
  %v512 = vlaneseq
  %v513 = vshrl.u32 %v512, 7
  %v514 = vsub.s32 %v511, %v513
  %v515 = vrot.slane %v506, %v514
  %v517 = vunpack.c.l.s4 1983009808
  %v518 = vunpack.c.0.s8 %v517
  %v519 = vlaneseq
  %v520 = vshrl.u32 %v519, 7
  %v521 = vsub.s32 %v518, %v520
  %v522 = vrot.slane %v508, %v521
  %v523 = vcombine.high %v515, %v515
  %524 = vrot.lane.b32.xlu0 %v515, 96
  %v525 = vpop.permute.xlu0 %524
  %526 = vrot.lane.b32.xlu0 %v523, 96
  %v527 = vpop.permute.xlu0 %526
  %528 = vrot.lane.b32.xlu0 %v522, 96
  %v529 = vpop.permute.xlu0 %528
  %v530 = vsel %vm374, %v525, %v527
  %v531 = vsel %vm374, %v527, %v529
  %534 = vrot.lane.b32.xlu0 %v530, 2
  %v535 = vpop.permute.xlu0 %534
  %536 = vrot.lane.b32.xlu0 %v531, 2
  %v537 = vpop.permute.xlu0 %536
  %v538 = vsel %vm457, %v535, %v537
  %v539 = vsel %vm457, %v537, %v535
  %540 = vrot.lane.b32.xlu0 %v530, 126
  %v541 = vpop.permute.xlu0 %540
  %542 = vrot.lane.b32.xlu0 %v531, 126
  %v543 = vpop.permute.xlu0 %542
  %v544 = vsel %vm464, %v541, %v543
  %v545 = vsel %vm464, %v543, %v541
  %v546 = vsel %vm469, %v530, %v539
  %v547 = vsel %vm470, %v531, %v538
  %v548 = vsel %vm246, %v544, %v546
  %v549 = vsel %vm247, %v545, %v547
  %v550 = vsel %vm477, %v530, %v544
  %v551 = vsel %vm478, %v531, %v545
  %v552 = vsel %vm252, %v539, %v550
  %v553 = vsel %vm253, %v538, %v551
  %v556 = vrot.slane %v548, 2
  %v557 = vrot.slane %v549, 2
  %560 = vst [vmem:[#allocation4] sm:$0xc0] %v556
  %561 = vst [vmem:[#allocation4 + $0x8] sm:$0xc0] %v557
  %562 = vst [vmem:[#allocation4 + $0x10] sm:$0x3] %v530
  %563 = vst [vmem:[#allocation4 + $0x18] sm:$0x3] %v531
  %v566 = vrot.slane %v552, 6
  %v567 = vrot.slane %v553, 6
  %570 = vst [vmem:[#allocation4 + $0x10] sm:$0xc] %v566
  %571 = vst [vmem:[#allocation4 + $0x18] sm:$0xc] %v567
  %v572 = vld [vmem:[#allocation3] sm:$0x3f]
  %v574 = vcombine.high %v572, %v572
  %v576 = vunpack.c.l.s4 1983009808
  %v577 = vunpack.c.0.s8 %v576
  %v578 = vlaneseq
  %v579 = vshrl.u32 %v578, 7
  %v580 = vsub.s32 %v577, %v579
  %v581 = vrot.slane %v572, %v580
  %v583 = vunpack.c.l.s4 1983009808
  %v584 = vunpack.c.0.s8 %v583
  %v585 = vlaneseq
  %v586 = vshrl.u32 %v585, 7
  %v587 = vsub.s32 %v584, %v586
  %v588 = vrot.slane %v574, %v587
  %v589 = vcombine.high %v581, %v581
  %590 = vrot.lane.b32.xlu0 %v581, 64
  %v591 = vpop.permute.xlu0 %590
  %592 = vrot.lane.b32.xlu0 %v589, 64
  %v593 = vpop.permute.xlu0 %592
  %594 = vrot.lane.b32.xlu0 %v588, 64
  %v595 = vpop.permute.xlu0 %594
  %vm596 = vcmask 523264
  %v597 = vsel %vm596, %v591, %v593
  %v598 = vsel %vm596, %v593, %v595
  %601 = vrot.lane.b32.xlu0 %v597, 2
  %v602 = vpop.permute.xlu0 %601
  %603 = vrot.lane.b32.xlu0 %v598, 2
  %v604 = vpop.permute.xlu0 %603
  %v605 = vsel %vm457, %v602, %v604
  %v606 = vsel %vm457, %v604, %v602
  %607 = vrot.lane.b32.xlu0 %v597, 126
  %v608 = vpop.permute.xlu0 %607
  %609 = vrot.lane.b32.xlu0 %v598, 126
  %v610 = vpop.permute.xlu0 %609
  %v611 = vsel %vm464, %v608, %v610
  %v612 = vsel %vm464, %v610, %v608
  %v613 = vsel %vm469, %v597, %v606
  %v614 = vsel %vm470, %v598, %v605
  %v615 = vsel %vm246, %v611, %v613
  %v616 = vsel %vm247, %v612, %v614
  %v617 = vsel %vm477, %v597, %v611
  %v618 = vsel %vm478, %v598, %v612
  %v619 = vsel %vm252, %v606, %v617
  %v620 = vsel %vm253, %v605, %v618
  %v623 = vrot.slane %v615, 4
  %v624 = vrot.slane %v616, 4
  %627 = vst [vmem:[#allocation4 + $0x10] sm:$0x30] %v623
  %628 = vst [vmem:[#allocation4 + $0x18] sm:$0x30] %v624
  %v629 = vcombine.low %v572, %v572
  %v631 = vunpack.c.l.s4 1983009808
  %v632 = vunpack.c.0.s8 %v631
  %v633 = vlaneseq
  %v634 = vshrl.u32 %v633, 7
  %v635 = vsub.s32 %v632, %v634
  %v636 = vrot.slane %v629, %v635
  %v637 = vcombine.low %v636, %v636
  %v638 = vcombine.low %v581, %v581
  %639 = vrot.lane.b32.xlu0 %v637, 64
  %v640 = vpop.permute.xlu0 %639
  %641 = vrot.lane.b32.xlu0 %v636, 64
  %v642 = vpop.permute.xlu0 %641
  %643 = vrot.lane.b32.xlu0 %v638, 64
  %v644 = vpop.permute.xlu0 %643
  %v645 = vsel %vm596, %v640, %v642
  %v646 = vsel %vm596, %v642, %v644
  %649 = vst [vmem:[#allocation4 + $0x10] sm:$0xc0] %v645
  %650 = vst [vmem:[#allocation4 + $0x18] sm:$0xc0] %v646
  %651 = vst [vmem:[#allocation4 + $0x20] sm:$0x3] %v619
  %652 = vst [vmem:[#allocation4 + $0x28] sm:$0x3] %v620
  %v653 = vld [vmem:[#allocation4] sm:$0xff]
  %v654 = vld [vmem:[#allocation4 + $0x8] sm:$0xff]
  %v655 = vld [vmem:[#allocation4 + $0x10] sm:$0xff]
  %v656 = vld [vmem:[#allocation4 + $0x18] sm:$0xff]
  %v657 = vld [vmem:[#allocation4 + $0x20] sm:$0x3]
  %v658 = vld [vmem:[#allocation4 + $0x28] sm:$0x3]
  %vm659 = vcmask 146432
  %v661 = vsel %vm659, %v55, 0
  %v664 = vsel %vm71, %v657, 0
  %v667 = vsel %vm71, %v658, 0
  %669 = vmatprep.subr.mxu0 %v654
  %670 = vmatpush1.msra.mxu0 %v653
  %671 = vmatprep.subr.mxu0 %v656
  %672 = vmatpush1.msra.mxu0 %v655
  %673 = vmatprep.subr.mxu0 %v667
  %674 = vmatpush1.msra.mxu0 %v664
  %675 = vmatprep.subr.mxu0 0.0
  %676 = vmatpush1.msra.mxu0 0.0
  %677 = vmatprep.subr.mxu0 0.0
  %678 = vmatpush1.msra.mxu0 0.0
  %679 = vmatprep.subr.mxu0 0.0
  %680 = vmatpush1.msra.mxu0 0.0
  %681 = vmatprep.subr.mxu0 0.0
  %682 = vmatpush1.msra.mxu0 0.0
  %683 = vmatprep.subr.mxu0 0.0
  %684 = vmatpush1.msra.mxu0 0.0
  %685 = vmatprep.subr.mxu0 0.0
  %686 = vmatpush1.msra.mxu0 0.0
  %687 = vmatprep.subr.mxu0 0.0
  %688 = vmatpush1.msra.mxu0 0.0
  %689 = vmatprep.subr.mxu0 0.0
  %690 = vmatpush1.msra.mxu0 0.0
  %691 = vmatprep.subr.mxu0 0.0
  %692 = vmatpush1.msra.mxu0 0.0
  %693 = vmatprep.subr.mxu0 0.0
  %694 = vmatpush1.msra.mxu0 0.0
  %695 = vmatprep.subr.mxu0 0.0
  %696 = vmatpush1.msra.mxu0 0.0
  %697 = vmatprep.subr.mxu0 0.0
  %698 = vmatpush1.msra.mxu0 0.0
  %699 = vmatprep.subr.mxu0 0.0
  %700 = vmatpush1.msra.mxu0 0.0
  %701 = vmatprep.subr.mxu0 0.0
  %702 = vmatpush1.msra.mxu0 0.0
  %703 = vmatprep.subr.mxu0 0.0
  %704 = vmatpush1.msra.mxu0 0.0
  %705 = vmatprep.subr.mxu0 0.0
  %706 = vmatpush1.msra.mxu0 0.0
  %707 = vmatprep.subr.mxu0 0.0
  %708 = vmatpush1.msra.mxu0 0.0
  %709 = vmatprep.subr.mxu0 0.0
  %710 = vmatpush1.msra.mxu0 0.0
  %711 = vmatprep.subr.mxu0 0.0
  %712 = vmatpush1.msra.mxu0 0.0
  %713 = vmatprep.subr.mxu0 0.0
  %714 = vmatpush1.msra.mxu0 0.0
  %715 = vmatprep.subr.mxu0 0.0
  %716 = vmatpush1.msra.mxu0 0.0
  %717 = vmatprep.subr.mxu0 0.0
  %718 = vmatpush1.msra.mxu0 0.0
  %719 = vmatprep.subr.mxu0 0.0
  %720 = vmatpush1.msra.mxu0 0.0
  %721 = vmatprep.subr.mxu0 0.0
  %722 = vmatpush1.msra.mxu0 0.0
  %723 = vmatprep.subr.mxu0 0.0
  %724 = vmatpush1.msra.mxu0 0.0
  %725 = vmatprep.subr.mxu0 0.0
  %726 = vmatpush1.msra.mxu0 0.0
  %727 = vmatprep.subr.mxu0 0.0
  %728 = vmatpush1.msra.mxu0 0.0
  %729 = vmatprep.subr.mxu0 0.0
  %730 = vmatpush1.msra.mxu0 0.0
  %731 = vmatprep.subr.mxu0 0.0
  %732 = vmatpush1.msra.mxu0 0.0
  %733 = vmatprep.mubr.f32.mxu0 0.0
  %734 = vmatmul.mubr.f32.gmra.mrb[0].mxu0 %v661
  %v735 = vpop.f32.mrb[0].mxu0
  %v736 = vadd.f32 0.0, %v735
  %v737 = vpop.f32.mrb[0].mxu0
  %v738 = vadd.f32 0.0, %v737
  %739 = vdwg.mxu0
  %v740 = vsel %vm71, %v736, 0.0
  %v741 = vsel %vm71, %v738, 0.0
  %v742 = vadd.f32 %v740, %v741
  %743 = vadd.xlane.f32.xlu0 %v742
  %v744 = vpop.xlane.xlu0 %743
  %v745 = vmul.f32 %v744, 0.00390625
  %v746 = vmul.f32 %v736, %v736
  %v747 = vmul.f32 %v738, %v738
  %v748 = vsel %vm71, %v746, 0.0
  %v749 = vsel %vm71, %v747, 0.0
  %v750 = vadd.f32 %v748, %v749
  %751 = vadd.xlane.f32.xlu0 %v750
  %v752 = vpop.xlane.xlu0 %751
  %v753 = vmul.f32 %v752, 0.00390625
  %v754 = vmul.f32 %v745, %v745
  %v755 = vsub.f32 %v753, %v754
  %v756 = vmax.f32 %v755, 0.0
  %v757 = vsub.f32 %v736, %v745
  %v758 = vsub.f32 %v738, %v745
  %v759 = vadd.f32 %v756, 1e-05
  %v760 = vrsqrt.pop %v759
  %v761 = vmul.f32 %v757, %v760
  %v762 = vmul.f32 %v758, %v760
  %v763 = vmax.f32 %v761, 0.0
  %v764 = vmax.f32 %v762, 0.0
  %v767 = vcombine.low %v763, %v764
  %v769 = vunpack.c.l.s4 1983009808
  %v770 = vunpack.c.0.s8 %v769
  %v771 = vlaneseq
  %v772 = vshrl.u32 %v771, 7
  %v773 = vsub.s32 %v770, %v772
  %v774 = vrot.slane %v767, %v773
  %775 = vrot.lane.b32.xlu0 %v774, 16
  %v776 = vpop.permute.xlu0 %775
  %v777 = vrot.slane %v776, 6
  %v778 = vsel %vm185, %v777, %v776
  %780 = vst.msk [vmem:[#allocation2] sm:$0x3f] %vm192, %v778
  %v782 = vunpack.c.l.s4 1983009808
  %v783 = vunpack.c.0.s8 %v782
  %v784 = vlaneseq
  %v785 = vshrl.u32 %v784, 7
  %v786 = vsub.s32 %v783, %v785
  %v787 = vrot.slane %v763, %v786
  %788 = vrot.lane.b32.xlu0 %v787, 112
  %v789 = vpop.permute.xlu0 %788
  %791 = vst.msk [vmem:[#allocation2] sm:$0x3] %vm204, %v789
  %v793 = vunpack.c.l.s4 1983009808
  %v794 = vunpack.c.0.s8 %v793
  %v795 = vlaneseq
  %v796 = vshrl.u32 %v795, 7
  %v797 = vsub.s32 %v794, %v796
  %v798 = vrot.slane %v764, %v797
  %799 = vrot.lane.b32.xlu0 %v798, 48
  %v800 = vpop.permute.xlu0 %799
  %802 = vst.msk [vmem:[#allocation2 + $0x4] sm:$0x3] %vm216, %v800
  %v803 = vld [vmem:[#allocation2] sm:$0xf]
  %v806 = vunpack.c.l.s4 1983009808
  %v807 = vunpack.c.0.s8 %v806
  %v808 = vlaneseq
  %v809 = vshrl.u32 %v808, 7
  %v810 = vsub.s32 %v807, %v809
  %v811 = vrot.slane %v803, %v810
  %v812 = vcombine.high %v811, %v811
  %815 = vrot.lane.b32.xlu0 %v811, 1
  %v816 = vpop.permute.xlu0 %815
  %817 = vrot.lane.b32.xlu0 %v812, 1
  %v818 = vpop.permute.xlu0 %817
  %v819 = vsel %vm234, %v816, %v818
  %v820 = vsel %vm234, %v818, %v816
  %821 = vrot.lane.b32.xlu0 %v811, 127
  %v822 = vpop.permute.xlu0 %821
  %823 = vrot.lane.b32.xlu0 %v812, 127
  %v824 = vpop.permute.xlu0 %823
  %v825 = vsel %vm241, %v822, %v824
  %v826 = vsel %vm241, %v824, %v822
  %v827 = vsel %vm246, %v825, %v820
  %v828 = vsel %vm247, %v826, %v819
  %v829 = vsel %vm252, %v820, %v825
  %v830 = vsel %vm253, %v819, %v826
  %831 = vst [vmem:[#allocation4] sm:$0x3] %v827
  %832 = vst [vmem:[#allocation4 + $0x8] sm:$0x3] %v828
  %v833 = vcombine.low %v803, %v803
  %v835 = vunpack.c.l.s4 1983009808
  %v836 = vunpack.c.0.s8 %v835
  %v837 = vlaneseq
  %v838 = vshrl.u32 %v837, 7
  %v839 = vsub.s32 %v836, %v838
  %v840 = vrot.slane %v833, %v839
  %v841 = vcombine.high %v840, %v840
  %844 = vst [vmem:[#allocation4] sm:$0xc] %v840
  %845 = vst [vmem:[#allocation4 + $0x8] sm:$0xc] %v841
  %v848 = vrot.slane %v829, 4
  %v849 = vrot.slane %v830, 4
  %852 = vst [vmem:[#allocation4] sm:$0x30] %v848
  %853 = vst [vmem:[#allocation4 + $0x8] sm:$0x30] %v849
  %v854 = vld [vmem:[#allocation2] sm:$0x3f]
  %v856 = vcombine.high %v854, %v854
  %v858 = vunpack.c.l.s4 1983009808
  %v859 = vunpack.c.0.s8 %v858
  %v860 = vlaneseq
  %v861 = vshrl.u32 %v860, 7
  %v862 = vsub.s32 %v859, %v861
  %v863 = vrot.slane %v854, %v862
  %v865 = vunpack.c.l.s4 1983009808
  %v866 = vunpack.c.0.s8 %v865
  %v867 = vlaneseq
  %v868 = vshrl.u32 %v867, 7
  %v869 = vsub.s32 %v866, %v868
  %v870 = vrot.slane %v856, %v869
  %v871 = vcombine.high %v863, %v863
  %872 = vrot.lane.b32.xlu0 %v863, 112
  %v873 = vpop.permute.xlu0 %872
  %874 = vrot.lane.b32.xlu0 %v871, 112
  %v875 = vpop.permute.xlu0 %874
  %876 = vrot.lane.b32.xlu0 %v870, 112
  %v877 = vpop.permute.xlu0 %876
  %v878 = vsel %vm300, %v873, %v875
  %v879 = vsel %vm300, %v875, %v877
  %882 = vrot.lane.b32.xlu0 %v878, 1
  %v883 = vpop.permute.xlu0 %882
  %884 = vrot.lane.b32.xlu0 %v879, 1
  %v885 = vpop.permute.xlu0 %884
  %v886 = vsel %vm234, %v883, %v885
  %v887 = vsel %vm234, %v885, %v883
  %888 = vrot.lane.b32.xlu0 %v878, 127
  %v889 = vpop.permute.xlu0 %888
  %890 = vrot.lane.b32.xlu0 %v879, 127
  %v891 = vpop.permute.xlu0 %890
  %v892 = vsel %vm241, %v889, %v891
  %v893 = vsel %vm241, %v891, %v889
  %v894 = vsel %vm246, %v892, %v887
  %v895 = vsel %vm247, %v893, %v886
  %v896 = vsel %vm252, %v887, %v892
  %v897 = vsel %vm253, %v886, %v893
  %v900 = vrot.slane %v894, 2
  %v901 = vrot.slane %v895, 2
  %904 = vst [vmem:[#allocation4] sm:$0xc0] %v900
  %905 = vst [vmem:[#allocation4 + $0x8] sm:$0xc0] %v901
  %906 = vst [vmem:[#allocation4 + $0x10] sm:$0x3] %v878
  %907 = vst [vmem:[#allocation4 + $0x18] sm:$0x3] %v879
  %v910 = vrot.slane %v896, 6
  %v911 = vrot.slane %v897, 6
  %914 = vst [vmem:[#allocation4 + $0x10] sm:$0xc] %v910
  %915 = vst [vmem:[#allocation4 + $0x18] sm:$0xc] %v911
  %v916 = vld [vmem:[#allocation2] sm:$0x3f]
  %v918 = vcombine.high %v916, %v916
  %v920 = vunpack.c.l.s4 1983009808
  %v921 = vunpack.c.0.s8 %v920
  %v922 = vlaneseq
  %v923 = vshrl.u32 %v922, 7
  %v924 = vsub.s32 %v921, %v923
  %v925 = vrot.slane %v916, %v924
  %v927 = vunpack.c.l.s4 1983009808
  %v928 = vunpack.c.0.s8 %v927
  %v929 = vlaneseq
  %v930 = vshrl.u32 %v929, 7
  %v931 = vsub.s32 %v928, %v930
  %v932 = vrot.slane %v918, %v931
  %v933 = vcombine.high %v925, %v925
  %934 = vrot.lane.b32.xlu0 %v925, 96
  %v935 = vpop.permute.xlu0 %934
  %936 = vrot.lane.b32.xlu0 %v933, 96
  %v937 = vpop.permute.xlu0 %936
  %938 = vrot.lane.b32.xlu0 %v932, 96
  %v939 = vpop.permute.xlu0 %938
  %v940 = vsel %vm374, %v935, %v937
  %v941 = vsel %vm374, %v937, %v939
  %944 = vrot.lane.b32.xlu0 %v940, 1
  %v945 = vpop.permute.xlu0 %944
  %946 = vrot.lane.b32.xlu0 %v941, 1
  %v947 = vpop.permute.xlu0 %946
  %v948 = vsel %vm234, %v945, %v947
  %v949 = vsel %vm234, %v947, %v945
  %950 = vrot.lane.b32.xlu0 %v940, 127
  %v951 = vpop.permute.xlu0 %950
  %952 = vrot.lane.b32.xlu0 %v941, 127
  %v953 = vpop.permute.xlu0 %952
  %v954 = vsel %vm241, %v951, %v953
  %v955 = vsel %vm241, %v953, %v951
  %v956 = vsel %vm246, %v954, %v949
  %v957 = vsel %vm247, %v955, %v948
  %v958 = vsel %vm252, %v949, %v954
  %v959 = vsel %vm253, %v948, %v955
  %v962 = vrot.slane %v956, 4
  %v963 = vrot.slane %v957, 4
  %966 = vst [vmem:[#allocation4 + $0x10] sm:$0x30] %v962
  %967 = vst [vmem:[#allocation4 + $0x18] sm:$0x30] %v963
  %v968 = vcombine.low %v916, %v916
  %v970 = vunpack.c.l.s4 1983009808
  %v971 = vunpack.c.0.s8 %v970
  %v972 = vlaneseq
  %v973 = vshrl.u32 %v972, 7
  %v974 = vsub.s32 %v971, %v973
  %v975 = vrot.slane %v968, %v974
  %v976 = vcombine.low %v975, %v975
  %v977 = vcombine.low %v925, %v925
  %978 = vrot.lane.b32.xlu0 %v976, 96
  %v979 = vpop.permute.xlu0 %978
  %980 = vrot.lane.b32.xlu0 %v975, 96
  %v981 = vpop.permute.xlu0 %980
  %982 = vrot.lane.b32.xlu0 %v977, 96
  %v983 = vpop.permute.xlu0 %982
  %v984 = vsel %vm374, %v979, %v981
  %v985 = vsel %vm374, %v981, %v983
  %988 = vst [vmem:[#allocation4 + $0x10] sm:$0xc0] %v984
  %989 = vst [vmem:[#allocation4 + $0x18] sm:$0xc0] %v985
  %990 = vst [vmem:[#allocation4 + $0x20] sm:$0x3] %v958
  %991 = vst [vmem:[#allocation4 + $0x28] sm:$0x3] %v959
  %v992 = vld [vmem:[#allocation4] sm:$0xff]
  %v993 = vld [vmem:[#allocation4 + $0x8] sm:$0xff]
  %v994 = vld [vmem:[#allocation4 + $0x10] sm:$0xff]
  %v995 = vld [vmem:[#allocation4 + $0x18] sm:$0xff]
  %v996 = vld [vmem:[#allocation4 + $0x20] sm:$0xff]
  %v997 = vld [vmem:[#allocation4 + $0x28] sm:$0xff]
  %v998 = vld [vmem:[#allocation4 + $0x30] sm:$0xff]
  %v999 = vld [vmem:[#allocation4 + $0x38] sm:$0xff]
  %v1000 = vld [vmem:[#allocation4 + $0x40] sm:$0xf]
  %v1001 = vld [vmem:[#allocation4 + $0x48] sm:$0xf]
  %1002 = vrot.lane.b32.xlu0 %v55, 110
  %v1003 = vpop.permute.xlu0 %1002
  %vm1004 = vcmask 293888
  %v1005 = vsel %vm1004, %v1003, 0
  %vm1007 = vcmask 1043456
  %v1009 = vsel %vm1007, %v1000, 0
  %v1012 = vsel %vm1007, %v1001, 0
  %1014 = vmatprep.subr.mxu0 %v993
  %1015 = vmatpush1.msra.mxu0 %v992
  %1016 = vmatprep.subr.mxu0 %v995
  %1017 = vmatpush1.msra.mxu0 %v994
  %1018 = vmatprep.subr.mxu0 %v997
  %1019 = vmatpush1.msra.mxu0 %v996
  %1020 = vmatprep.subr.mxu0 %v999
  %1021 = vmatpush1.msra.mxu0 %v998
  %1022 = vmatprep.subr.mxu0 %v1012
  %1023 = vmatpush1.msra.mxu0 %v1009
  %1024 = vmatprep.subr.mxu0 0.0
  %1025 = vmatpush1.msra.mxu0 0.0
  %1026 = vmatprep.subr.mxu0 0.0
  %1027 = vmatpush1.msra.mxu0 0.0
  %1028 = vmatprep.subr.mxu0 0.0
  %1029 = vmatpush1.msra.mxu0 0.0
  %1030 = vmatprep.subr.mxu0 0.0
  %1031 = vmatpush1.msra.mxu0 0.0
  %1032 = vmatprep.subr.mxu0 0.0
  %1033 = vmatpush1.msra.mxu0 0.0
  %1034 = vmatprep.subr.mxu0 0.0
  %1035 = vmatpush1.msra.mxu0 0.0
  %1036 = vmatprep.subr.mxu0 0.0
  %1037 = vmatpush1.msra.mxu0 0.0
  %1038 = vmatprep.subr.mxu0 0.0
  %1039 = vmatpush1.msra.mxu0 0.0
  %1040 = vmatprep.subr.mxu0 0.0
  %1041 = vmatpush1.msra.mxu0 0.0
  %1042 = vmatprep.subr.mxu0 0.0
  %1043 = vmatpush1.msra.mxu0 0.0
  %1044 = vmatprep.subr.mxu0 0.0
  %1045 = vmatpush1.msra.mxu0 0.0
  %1046 = vmatprep.subr.mxu0 0.0
  %1047 = vmatpush1.msra.mxu0 0.0
  %1048 = vmatprep.subr.mxu0 0.0
  %1049 = vmatpush1.msra.mxu0 0.0
  %1050 = vmatprep.subr.mxu0 0.0
  %1051 = vmatpush1.msra.mxu0 0.0
  %1052 = vmatprep.subr.mxu0 0.0
  %1053 = vmatpush1.msra.mxu0 0.0
  %1054 = vmatprep.subr.mxu0 0.0
  %1055 = vmatpush1.msra.mxu0 0.0
  %1056 = vmatprep.subr.mxu0 0.0
  %1057 = vmatpush1.msra.mxu0 0.0
  %1058 = vmatprep.subr.mxu0 0.0
  %1059 = vmatpush1.msra.mxu0 0.0
  %1060 = vmatprep.subr.mxu0 0.0
  %1061 = vmatpush1.msra.mxu0 0.0
  %1062 = vmatprep.subr.mxu0 0.0
  %1063 = vmatpush1.msra.mxu0 0.0
  %1064 = vmatprep.subr.mxu0 0.0
  %1065 = vmatpush1.msra.mxu0 0.0
  %1066 = vmatprep.subr.mxu0 0.0
  %1067 = vmatpush1.msra.mxu0 0.0
  %1068 = vmatprep.subr.mxu0 0.0
  %1069 = vmatpush1.msra.mxu0 0.0
  %1070 = vmatprep.subr.mxu0 0.0
  %1071 = vmatpush1.msra.mxu0 0.0
  %1072 = vmatprep.subr.mxu0 0.0
  %1073 = vmatpush1.msra.mxu0 0.0
  %1074 = vmatprep.subr.mxu0 0.0
  %1075 = vmatpush1.msra.mxu0 0.0
  %1076 = vmatprep.subr.mxu0 0.0
  %1077 = vmatpush1.msra.mxu0 0.0
  %1078 = vmatprep.mubr.f32.mxu0 0.0
  %1079 = vmatmul.mubr.f32.gmra.mrb[0].mxu0 %v1005
  %v1080 = vpop.f32.mrb[0].mxu0
  %v1081 = vadd.f32 0.0, %v1080
  %v1082 = vpop.f32.mrb[0].mxu0
  %v1083 = vadd.f32 0.0, %v1082
  %1084 = vdwg.mxu0
  %v1085 = vsel %vm71, %v1081, 0.0
  %v1086 = vsel %vm71, %v1083, 0.0
  %v1087 = vadd.f32 %v1085, %v1086
  %1088 = vadd.xlane.f32.xlu0 %v1087
  %v1089 = vpop.xlane.xlu0 %1088
  %v1090 = vmul.f32 %v1089, 0.00390625
  %v1091 = vmul.f32 %v1081, %v1081
  %v1092 = vmul.f32 %v1083, %v1083
  %v1093 = vsel %vm71, %v1091, 0.0
  %v1094 = vsel %vm71, %v1092, 0.0
  %v1095 = vadd.f32 %v1093, %v1094
  %1096 = vadd.xlane.f32.xlu0 %v1095
  %v1097 = vpop.xlane.xlu0 %1096
  %v1098 = vmul.f32 %v1097, 0.00390625
  %v1099 = vmul.f32 %v1090, %v1090
  %v1100 = vsub.f32 %v1098, %v1099
  %v1101 = vmax.f32 %v1100, 0.0
  %v1102 = vsub.f32 %v1081, %v1090
  %v1103 = vsub.f32 %v1083, %v1090
  %v1104 = vadd.f32 %v1101, 1e-05
  %v1105 = vrsqrt.pop %v1104
  %v1106 = vmul.f32 %v1102, %v1105
  %v1107 = vmul.f32 %v1103, %v1105
  %v1108 = vmax.f32 %v1106, 0.0
  %v1109 = vmax.f32 %v1107, 0.0
  %v1112 = vcombine.low %v1108, %v1109
  %v1114 = vunpack.c.l.s4 1983009808
  %v1115 = vunpack.c.0.s8 %v1114
  %v1116 = vlaneseq
  %v1117 = vshrl.u32 %v1116, 7
  %v1118 = vsub.s32 %v1115, %v1117
  %v1119 = vrot.slane %v1112, %v1118
  %1120 = vrot.lane.b32.xlu0 %v1119, 16
  %v1121 = vpop.permute.xlu0 %1120
  %v1122 = vrot.slane %v1121, 6
  %v1123 = vsel %vm185, %v1122, %v1121
  %1125 = vst.msk [vmem:[#allocation2] sm:$0x3f] %vm192, %v1123
  %v1127 = vunpack.c.l.s4 1983009808
  %v1128 = vunpack.c.0.s8 %v1127
  %v1129 = vlaneseq
  %v1130 = vshrl.u32 %v1129, 7
  %v1131 = vsub.s32 %v1128, %v1130
  %v1132 = vrot.slane %v1108, %v1131
  %1133 = vrot.lane.b32.xlu0 %v1132, 112
  %v1134 = vpop.permute.xlu0 %1133
  %1136 = vst.msk [vmem:[#allocation2] sm:$0x3] %vm204, %v1134
  %v1138 = vunpack.c.l.s4 1983009808
  %v1139 = vunpack.c.0.s8 %v1138
  %v1140 = vlaneseq
  %v1141 = vshrl.u32 %v1140, 7
  %v1142 = vsub.s32 %v1139, %v1141
  %v1143 = vrot.slane %v1109, %v1142
  %1144 = vrot.lane.b32.xlu0 %v1143, 48
  %v1145 = vpop.permute.xlu0 %1144
  %1147 = vst.msk [vmem:[#allocation2 + $0x4] sm:$0x3] %vm216, %v1145
  %v1148 = vld [vmem:[#allocation2] sm:$0xf]
  %v1151 = vunpack.c.l.s4 1983009808
  %v1152 = vunpack.c.0.s8 %v1151
  %v1153 = vlaneseq
  %v1154 = vshrl.u32 %v1153, 7
  %v1155 = vsub.s32 %v1152, %v1154
  %v1156 = vrot.slane %v1148, %v1155
  %v1157 = vcombine.high %v1156, %v1156
  %1160 = vrot.lane.b32.xlu0 %v1156, 1
  %v1161 = vpop.permute.xlu0 %1160
  %1162 = vrot.lane.b32.xlu0 %v1157, 1
  %v1163 = vpop.permute.xlu0 %1162
  %v1164 = vsel %vm234, %v1161, %v1163
  %v1165 = vsel %vm234, %v1163, %v1161
  %1166 = vrot.lane.b32.xlu0 %v1156, 127
  %v1167 = vpop.permute.xlu0 %1166
  %1168 = vrot.lane.b32.xlu0 %v1157, 127
  %v1169 = vpop.permute.xlu0 %1168
  %v1170 = vsel %vm241, %v1167, %v1169
  %v1171 = vsel %vm241, %v1169, %v1167
  %v1172 = vsel %vm246, %v1170, %v1165
  %v1173 = vsel %vm247, %v1171, %v1164
  %v1174 = vsel %vm252, %v1165, %v1170
  %v1175 = vsel %vm253, %v1164, %v1171
  %v1178 = vrot.slane %v1172, 4
  %v1179 = vrot.slane %v1173, 4
  %1182 = vst [vmem:[#allocation4 + $0x40] sm:$0x30] %v1178
  %1183 = vst [vmem:[#allocation4 + $0x48] sm:$0x30] %v1179
  %v1184 = vcombine.low %v1148, %v1148
  %v1186 = vunpack.c.l.s4 1983009808
  %v1187 = vunpack.c.0.s8 %v1186
  %v1188 = vlaneseq
  %v1189 = vshrl.u32 %v1188, 7
  %v1190 = vsub.s32 %v1187, %v1189
  %v1191 = vrot.slane %v1184, %v1190
  %v1192 = vcombine.low %v1191, %v1191
  %1195 = vst [vmem:[#allocation4 + $0x40] sm:$0xc0] %v1192
  %1196 = vst [vmem:[#allocation4 + $0x48] sm:$0xc0] %v1191
  %1197 = vst [vmem:[#allocation4 + $0x50] sm:$0x3] %v1174
  %1198 = vst [vmem:[#allocation4 + $0x58] sm:$0x3] %v1175
  %v1199 = vld [vmem:[#allocation2] sm:$0x3f]
  %v1201 = vcombine.high %v1199, %v1199
  %v1203 = vunpack.c.l.s4 1983009808
  %v1204 = vunpack.c.0.s8 %v1203
  %v1205 = vlaneseq
  %v1206 = vshrl.u32 %v1205, 7
  %v1207 = vsub.s32 %v1204, %v1206
  %v1208 = vrot.slane %v1199, %v1207
  %v1210 = vunpack.c.l.s4 1983009808
  %v1211 = vunpack.c.0.s8 %v1210
  %v1212 = vlaneseq
  %v1213 = vshrl.u32 %v1212, 7
  %v1214 = vsub.s32 %v1211, %v1213
  %v1215 = vrot.slane %v1201, %v1214
  %v1216 = vcombine.high %v1208, %v1208
  %1217 = vrot.lane.b32.xlu0 %v1208, 112
  %v1218 = vpop.permute.xlu0 %1217
  %1219 = vrot.lane.b32.xlu0 %v1216, 112
  %v1220 = vpop.permute.xlu0 %1219
  %1221 = vrot.lane.b32.xlu0 %v1215, 112
  %v1222 = vpop.permute.xlu0 %1221
  %v1223 = vsel %vm300, %v1218, %v1220
  %v1224 = vsel %vm300, %v1220, %v1222
  %1227 = vrot.lane.b32.xlu0 %v1223, 1
  %v1228 = vpop.permute.xlu0 %1227
  %1229 = vrot.lane.b32.xlu0 %v1224, 1
  %v1230 = vpop.permute.xlu0 %1229
  %v1231 = vsel %vm234, %v1228, %v1230
  %v1232 = vsel %vm234, %v1230, %v1228
  %1233 = vrot.lane.b32.xlu0 %v1223, 127
  %v1234 = vpop.permute.xlu0 %1233
  %1235 = vrot.lane.b32.xlu0 %v1224, 127
  %v1236 = vpop.permute.xlu0 %1235
  %v1237 = vsel %vm241, %v1234, %v1236
  %v1238 = vsel %vm241, %v1236, %v1234
  %v1239 = vsel %vm246, %v1237, %v1232
  %v1240 = vsel %vm247, %v1238, %v1231
  %v1241 = vsel %vm252, %v1232, %v1237
  %v1242 = vsel %vm253, %v1231, %v1238
  %v1245 = vrot.slane %v1239, 6
  %v1246 = vrot.slane %v1240, 6
  %1249 = vst [vmem:[#allocation4 + $0x50] sm:$0xc] %v1245
  %1250 = vst [vmem:[#allocation4 + $0x58] sm:$0xc] %v1246
  %v1251 = vcombine.low %v1208, %v1208
  %v1252 = vcombine.low %v1215, %v1215
  %1253 = vrot.lane.b32.xlu0 %v1251, 112
  %v1254 = vpop.permute.xlu0 %1253
  %1255 = vrot.lane.b32.xlu0 %v1252, 112
  %v1256 = vpop.permute.xlu0 %1255
  %v1257 = vsel %vm300, %v1254, %v1218
  %v1258 = vsel %vm300, %v1218, %v1256
  %1261 = vst [vmem:[#allocation4 + $0x50] sm:$0x30] %v1257
  %1262 = vst [vmem:[#allocation4 + $0x58] sm:$0x30] %v1258
  %v1265 = vrot.slane %v1241, 2
  %v1266 = vrot.slane %v1242, 2
  %1269 = vst [vmem:[#allocation4 + $0x50] sm:$0xc0] %v1265
  %1270 = vst [vmem:[#allocation4 + $0x58] sm:$0xc0] %v1266
  %v1271 = vld [vmem:[#allocation2] sm:$0x3f]
  %v1273 = vcombine.high %v1271, %v1271
  %v1275 = vunpack.c.l.s4 1983009808
  %v1276 = vunpack.c.0.s8 %v1275
  %v1277 = vlaneseq
  %v1278 = vshrl.u32 %v1277, 7
  %v1279 = vsub.s32 %v1276, %v1278
  %v1280 = vrot.slane %v1271, %v1279
  %v1282 = vunpack.c.l.s4 1983009808
  %v1283 = vunpack.c.0.s8 %v1282
  %v1284 = vlaneseq
  %v1285 = vshrl.u32 %v1284, 7
  %v1286 = vsub.s32 %v1283, %v1285
  %v1287 = vrot.slane %v1273, %v1286
  %v1288 = vcombine.high %v1280, %v1280
  %1289 = vrot.lane.b32.xlu0 %v1280, 96
  %v1290 = vpop.permute.xlu0 %1289
  %1291 = vrot.lane.b32.xlu0 %v1288, 96
  %v1292 = vpop.permute.xlu0 %1291
  %1293 = vrot.lane.b32.xlu0 %v1287, 96
  %v1294 = vpop.permute.xlu0 %1293
  %v1295 = vsel %vm374, %v1290, %v1292
  %v1296 = vsel %vm374, %v1292, %v1294
  %1299 = vrot.lane.b32.xlu0 %v1295, 1
  %v1300 = vpop.permute.xlu0 %1299
  %1301 = vrot.lane.b32.xlu0 %v1296, 1
  %v1302 = vpop.permute.xlu0 %1301
  %v1303 = vsel %vm234, %v1300, %v1302
  %v1304 = vsel %vm234, %v1302, %v1300
  %1305 = vrot.lane.b32.xlu0 %v1295, 127
  %v1306 = vpop.permute.xlu0 %1305
  %1307 = vrot.lane.b32.xlu0 %v1296, 127
  %v1308 = vpop.permute.xlu0 %1307
  %v1309 = vsel %vm241, %v1306, %v1308
  %v1310 = vsel %vm241, %v1308, %v1306
  %v1311 = vsel %vm246, %v1309, %v1304
  %v1312 = vsel %vm247, %v1310, %v1303
  %v1313 = vsel %vm252, %v1304, %v1309
  %v1314 = vsel %vm253, %v1303, %v1310
  %1315 = vst [vmem:[#allocation4 + $0x60] sm:$0x3] %v1311
  %1316 = vst [vmem:[#allocation4 + $0x68] sm:$0x3] %v1312
  %v1317 = vcombine.low %v1271, %v1271
  %v1319 = vunpack.c.l.s4 1983009808
  %v1320 = vunpack.c.0.s8 %v1319
  %v1321 = vlaneseq
  %v1322 = vshrl.u32 %v1321, 7
  %v1323 = vsub.s32 %v1320, %v1322
  %v1324 = vrot.slane %v1317, %v1323
  %v1325 = vcombine.high %v1324, %v1324
  %1326 = vrot.lane.b32.xlu0 %v1324, 96
  %v1327 = vpop.permute.xlu0 %1326
  %1328 = vrot.lane.b32.xlu0 %v1325, 96
  %v1329 = vpop.permute.xlu0 %1328
  %v1330 = vsel %vm374, %v1327, %v1329
  %v1331 = vsel %vm374, %v1329, %v1290
  %1334 = vst [vmem:[#allocation4 + $0x60] sm:$0xc] %v1330
  %1335 = vst [vmem:[#allocation4 + $0x68] sm:$0xc] %v1331
  %v1338 = vrot.slane %v1313, 4
  %v1339 = vrot.slane %v1314, 4
  %1342 = vst [vmem:[#allocation4 + $0x60] sm:$0x30] %v1338
  %1343 = vst [vmem:[#allocation4 + $0x68] sm:$0x30] %v1339
  %v1344 = vld [vmem:[#allocation4 + $0x20] sm:$0xfc]
  %v1345 = vld [vmem:[#allocation4 + $0x28] sm:$0xfc]
  %v1346 = vld [vmem:[#allocation4 + $0x30] sm:$0xff]
  %v1347 = vld [vmem:[#allocation4 + $0x38] sm:$0xff]
  %v1348 = vld [vmem:[#allocation4 + $0x40] sm:$0xff]
  %v1349 = vld [vmem:[#allocation4 + $0x48] sm:$0xff]
  %v1350 = vld [vmem:[#allocation4 + $0x50] sm:$0xff]
  %v1351 = vld [vmem:[#allocation4 + $0x58] sm:$0xff]
  %v1352 = vld [vmem:[#allocation4 + $0x60] sm:$0x3f]
  %v1353 = vld [vmem:[#allocation4 + $0x68] sm:$0x3f]
  %1354 = vrot.lane.b32.xlu0 %v55, 74
  %v1355 = vpop.permute.xlu0 %1354
  %vm1366 = vcmask 1045504
  %v1367 = vrot.slane %v1344, 2
  %v1368 = vrot.slane %v1346, 2
  %v1369 = vsel %vm1366, %v1367, %v1368
  %v1370 = vrot.slane %v1345, 2
  %v1371 = vrot.slane %v1347, 2
  %v1372 = vsel %vm1366, %v1370, %v1371
  %v1373 = vrot.slane %v1348, 2
  %v1374 = vsel %vm1366, %v1368, %v1373
  %v1375 = vrot.slane %v1349, 2
  %v1376 = vsel %vm1366, %v1371, %v1375
  %v1377 = vrot.slane %v1350, 2
  %v1378 = vsel %vm1366, %v1373, %v1377
  %v1379 = vrot.slane %v1351, 2
  %v1380 = vsel %vm1366, %v1375, %v1379
  %v1381 = vrot.slane %v1352, 2
  %v1382 = vsel %vm1366, %v1377, %v1381
  %v1383 = vrot.slane %v1353, 2
  %v1384 = vsel %vm1366, %v1379, %v1383
  %v1393 = vsel %vm1004, %v1355, 0
  %v1395 = vsel %vm1007, %v1381, 0
  %v1397 = vsel %vm1007, %v1383, 0
  %1399 = vmatprep.subr.mxu0 %v1372
  %1400 = vmatpush1.msra.mxu0 %v1369
  %1401 = vmatprep.subr.mxu0 %v1376
  %1402 = vmatpush1.msra.mxu0 %v1374
  %1403 = vmatprep.subr.mxu0 %v1380
  %1404 = vmatpush1.msra.mxu0 %v1378
  %1405 = vmatprep.subr.mxu0 %v1384
  %1406 = vmatpush1.msra.mxu0 %v1382
  %1407 = vmatprep.subr.mxu0 %v1397
  %1408 = vmatpush1.msra.mxu0 %v1395
  %1409 = vmatprep.subr.mxu0 0.0
  %1410 = vmatpush1.msra.mxu0 0.0
  %1411 = vmatprep.subr.mxu0 0.0
  %1412 = vmatpush1.msra.mxu0 0.0
  %1413 = vmatprep.subr.mxu0 0.0
  %1414 = vmatpush1.msra.mxu0 0.0
  %1415 = vmatprep.subr.mxu0 0.0
  %1416 = vmatpush1.msra.mxu0 0.0
  %1417 = vmatprep.subr.mxu0 0.0
  %1418 = vmatpush1.msra.mxu0 0.0
  %1419 = vmatprep.subr.mxu0 0.0
  %1420 = vmatpush1.msra.mxu0 0.0
  %1421 = vmatprep.subr.mxu0 0.0
  %1422 = vmatpush1.msra.mxu0 0.0
  %1423 = vmatprep.subr.mxu0 0.0
  %1424 = vmatpush1.msra.mxu0 0.0
  %1425 = vmatprep.subr.mxu0 0.0
  %1426 = vmatpush1.msra.mxu0 0.0
  %1427 = vmatprep.subr.mxu0 0.0
  %1428 = vmatpush1.msra.mxu0 0.0
  %1429 = vmatprep.subr.mxu0 0.0
  %1430 = vmatpush1.msra.mxu0 0.0
  %1431 = vmatprep.subr.mxu0 0.0
  %1432 = vmatpush1.msra.mxu0 0.0
  %1433 = vmatprep.subr.mxu0 0.0
  %1434 = vmatpush1.msra.mxu0 0.0
  %1435 = vmatprep.subr.mxu0 0.0
  %1436 = vmatpush1.msra.mxu0 0.0
  %1437 = vmatprep.subr.mxu0 0.0
  %1438 = vmatpush1.msra.mxu0 0.0
  %1439 = vmatprep.subr.mxu0 0.0
  %1440 = vmatpush1.msra.mxu0 0.0
  %1441 = vmatprep.subr.mxu0 0.0
  %1442 = vmatpush1.msra.mxu0 0.0
  %1443 = vmatprep.subr.mxu0 0.0
  %1444 = vmatpush1.msra.mxu0 0.0
  %1445 = vmatprep.subr.mxu0 0.0
  %1446 = vmatpush1.msra.mxu0 0.0
  %1447 = vmatprep.subr.mxu0 0.0
  %1448 = vmatpush1.msra.mxu0 0.0
  %1449 = vmatprep.subr.mxu0 0.0
  %1450 = vmatpush1.msra.mxu0 0.0
  %1451 = vmatprep.subr.mxu0 0.0
  %1452 = vmatpush1.msra.mxu0 0.0
  %1453 = vmatprep.subr.mxu0 0.0
  %1454 = vmatpush1.msra.mxu0 0.0
  %1455 = vmatprep.subr.mxu0 0.0
  %1456 = vmatpush1.msra.mxu0 0.0
  %1457 = vmatprep.subr.mxu0 0.0
  %1458 = vmatpush1.msra.mxu0 0.0
  %1459 = vmatprep.subr.mxu0 0.0
  %1460 = vmatpush1.msra.mxu0 0.0
  %1461 = vmatprep.subr.mxu0 0.0
  %1462 = vmatpush1.msra.mxu0 0.0
  %1463 = vmatprep.mubr.f32.mxu0 0.0
  %1464 = vmatmul.mubr.f32.gmra.mrb[0].mxu0 %v1393
  %v1465 = vpop.f32.mrb[0].mxu0
  %v1466 = vadd.f32 0.0, %v1465
  %v1467 = vpop.f32.mrb[0].mxu0
  %v1468 = vadd.f32 0.0, %v1467
  %1469 = vdwg.mxu0
  %v1470 = vsel %vm71, %v1466, 0.0
  %v1471 = vsel %vm71, %v1468, 0.0
  %v1472 = vadd.f32 %v1470, %v1471
  %1473 = vadd.xlane.f32.xlu0 %v1472
  %v1474 = vpop.xlane.xlu0 %1473
  %v1475 = vmul.f32 %v1474, 0.00390625
  %v1476 = vmul.f32 %v1466, %v1466
  %v1477 = vmul.f32 %v1468, %v1468
  %v1478 = vsel %vm71, %v1476, 0.0
  %v1479 = vsel %vm71, %v1477, 0.0
  %v1480 = vadd.f32 %v1478, %v1479
  %1481 = vadd.xlane.f32.xlu0 %v1480
  %v1482 = vpop.xlane.xlu0 %1481
  %v1483 = vmul.f32 %v1482, 0.00390625
  %v1484 = vmul.f32 %v1475, %v1475
  %v1485 = vsub.f32 %v1483, %v1484
  %v1486 = vmax.f32 %v1485, 0.0
  %v1487 = vsub.f32 %v1466, %v1475
  %v1488 = vsub.f32 %v1468, %v1475
  %v1489 = vadd.f32 %v1486, 1e-05
  %v1490 = vrsqrt.pop %v1489
  %v1491 = vmul.f32 %v1487, %v1490
  %v1492 = vmul.f32 %v1488, %v1490
  %v1493 = vmax.f32 %v1491, 0.0
  %v1494 = vmax.f32 %v1492, 0.0
  %1495 = vst [vmem:[#allocation4] sm:$0x3] %v1493
  %1496 = vst [vmem:[#allocation4 + $0x8] sm:$0x3] %v1494
  %v1497 = vrot.slane %v170, 6
  %v1498 = vrot.slane %v171, 6
  %1501 = vst [vmem:[#allocation4] sm:$0xc] %v1497
  %1502 = vst [vmem:[#allocation4 + $0x8] sm:$0xc] %v1498
  %v1503 = vld [vmem:[%s4] sm:$0xf]
  %v1504 = vld [vmem:[#allocation4] sm:$0xf]
  %v1505 = vld [vmem:[#allocation4 + $0x8] sm:$0xf]
  %vm1506 = vcmask 31744
  %v1508 = vsel %vm1506, %v1503, 0
  %v1511 = vsel %vm1007, %v1504, 0
  %v1514 = vsel %vm1007, %v1505, 0
  %1516 = vmatprep.subr.mxu0 %v1514
  %1517 = vmatpush1.msra.mxu0 %v1511
  %1518 = vmatprep.subr.mxu0 0.0
  %1519 = vmatpush1.msra.mxu0 0.0
  %1520 = vmatprep.subr.mxu0 0.0
  %1521 = vmatpush1.msra.mxu0 0.0
  %1522 = vmatprep.subr.mxu0 0.0
  %1523 = vmatpush1.msra.mxu0 0.0
  %1524 = vmatprep.subr.mxu0 0.0
  %1525 = vmatpush1.msra.mxu0 0.0
  %1526 = vmatprep.subr.mxu0 0.0
  %1527 = vmatpush1.msra.mxu0 0.0
  %1528 = vmatprep.subr.mxu0 0.0
  %1529 = vmatpush1.msra.mxu0 0.0
  %1530 = vmatprep.subr.mxu0 0.0
  %1531 = vmatpush1.msra.mxu0 0.0
  %1532 = vmatprep.subr.mxu0 0.0
  %1533 = vmatpush1.msra.mxu0 0.0
  %1534 = vmatprep.subr.mxu0 0.0
  %1535 = vmatpush1.msra.mxu0 0.0
  %1536 = vmatprep.subr.mxu0 0.0
  %1537 = vmatpush1.msra.mxu0 0.0
  %1538 = vmatprep.subr.mxu0 0.0
  %1539 = vmatpush1.msra.mxu0 0.0
  %1540 = vmatprep.subr.mxu0 0.0
  %1541 = vmatpush1.msra.mxu0 0.0
  %1542 = vmatprep.subr.mxu0 0.0
  %1543 = vmatpush1.msra.mxu0 0.0
  %1544 = vmatprep.subr.mxu0 0.0
  %1545 = vmatpush1.msra.mxu0 0.0
  %1546 = vmatprep.subr.mxu0 0.0
  %1547 = vmatpush1.msra.mxu0 0.0
  %1548 = vmatprep.subr.mxu0 0.0
  %1549 = vmatpush1.msra.mxu0 0.0
  %1550 = vmatprep.subr.mxu0 0.0
  %1551 = vmatpush1.msra.mxu0 0.0
  %1552 = vmatprep.subr.mxu0 0.0
  %1553 = vmatpush1.msra.mxu0 0.0
  %1554 = vmatprep.subr.mxu0 0.0
  %1555 = vmatpush1.msra.mxu0 0.0
  %1556 = vmatprep.subr.mxu0 0.0
  %1557 = vmatpush1.msra.mxu0 0.0
  %1558 = vmatprep.subr.mxu0 0.0
  %1559 = vmatpush1.msra.mxu0 0.0
  %1560 = vmatprep.subr.mxu0 0.0
  %1561 = vmatpush1.msra.mxu0 0.0
  %1562 = vmatprep.subr.mxu0 0.0
  %1563 = vmatpush1.msra.mxu0 0.0
  %1564 = vmatprep.subr.mxu0 0.0
  %1565 = vmatpush1.msra.mxu0 0.0
  %1566 = vmatprep.subr.mxu0 0.0
  %1567 = vmatpush1.msra.mxu0 0.0
  %1568 = vmatprep.subr.mxu0 0.0
  %1569 = vmatpush1.msra.mxu0 0.0
  %1570 = vmatprep.subr.mxu0 0.0
  %1571 = vmatpush1.msra.mxu0 0.0
  %1572 = vmatprep.subr.mxu0 0.0
  %1573 = vmatpush1.msra.mxu0 0.0
  %1574 = vmatprep.subr.mxu0 0.0
  %1575 = vmatpush1.msra.mxu0 0.0
  %1576 = vmatprep.subr.mxu0 0.0
  %1577 = vmatpush1.msra.mxu0 0.0
  %1578 = vmatprep.subr.mxu0 0.0
  %1579 = vmatpush1.msra.mxu0 0.0
  %1580 = vmatprep.mubr.f32.mxu0 0.0
  %1581 = vmatmul.mubr.f32.gmra.mrb[0].mxu0 %v1508
  %v1582 = vpop.f32.mrb[0].mxu0
  %v1583 = vadd.f32 0.0, %v1582
  %v1584 = vpop.f32.mrb[0].mxu0
  %v1585 = vadd.f32 0.0, %v1584
  %1586 = vdwg.mxu0
  %v1587 = vsel %vm1007, %v1583, 0.0
  %v1588 = vsel %vm1007, %v1585, 0.0
  %v1589 = vadd.f32 %v1587, %v1588
  %1590 = vadd.xlane.f32.xlu0 %v1589
  %v1591 = vpop.xlane.xlu0 %1590
  %v1592 = vmul.f32 %v1591, 0.00390625
  %v1593 = vmul.f32 %v1583, %v1583
  %v1594 = vmul.f32 %v1585, %v1585
  %v1595 = vsel %vm1007, %v1593, 0.0
  %v1596 = vsel %vm1007, %v1594, 0.0
  %v1597 = vadd.f32 %v1595, %v1596
  %1598 = vadd.xlane.f32.xlu0 %v1597
  %v1599 = vpop.xlane.xlu0 %1598
  %v1600 = vmul.f32 %v1599, 0.00390625
  %v1601 = vmul.f32 %v1592, %v1592
  %v1602 = vsub.f32 %v1600, %v1601
  %v1603 = vmax.f32 %v1602, 0.0
  %v1604 = vsub.f32 %v1583, %v1592
  %v1605 = vsub.f32 %v1585, %v1592
  %v1606 = vadd.f32 %v1603, 1e-05
  %v1607 = vrsqrt.pop %v1606
  %v1608 = vmul.f32 %v1604, %v1607
  %v1609 = vmul.f32 %v1605, %v1607
  %v1612 = vcombine.low %v1608, %v1609
  %1614 = vst [vmem:[%s5] sm:$0xff] %v1612
  %v1615 = vld [vmem:[%s2] sm:$0x3]
  %s1616 = scalar_lea.vmem %s0, 4
  %v1617 = vld [vmem:[%s1616] sm:$0xf]
  %v1620 = vunpack.c.l.s4 1983009808
  %v1621 = vunpack.c.0.s8 %v1620
  %v1622 = vlaneseq
  %v1623 = vshrl.u32 %v1622, 7
  %v1624 = vsub.s32 %v1621, %v1623
  %v1625 = vrot.slane %v1617, %v1624
  %v1626 = vcombine.high %v1625, %v1625
  %v1628 = vsel %vm67, %v1615, 0
  %v1630 = vsel %vm71, %v1625, 0
  %v1632 = vsel %vm71, %v1626, 0
  %1634 = vmatprep.subr.mxu0 %v1632
  %1635 = vmatpush1.msra.mxu0 %v1630
  %1636 = vmatprep.subr.mxu0 0.0
  %1637 = vmatpush1.msra.mxu0 0.0
  %1638 = vmatprep.subr.mxu0 0.0
  %1639 = vmatpush1.msra.mxu0 0.0
  %1640 = vmatprep.subr.mxu0 0.0
  %1641 = vmatpush1.msra.mxu0 0.0
  %1642 = vmatprep.subr.mxu0 0.0
  %1643 = vmatpush1.msra.mxu0 0.0
  %1644 = vmatprep.subr.mxu0 0.0
  %1645 = vmatpush1.msra.mxu0 0.0
  %1646 = vmatprep.subr.mxu0 0.0
  %1647 = vmatpush1.msra.mxu0 0.0
  %1648 = vmatprep.subr.mxu0 0.0
  %1649 = vmatpush1.msra.mxu0 0.0
  %1650 = vmatprep.subr.mxu0 0.0
  %1651 = vmatpush1.msra.mxu0 0.0
  %1652 = vmatprep.subr.mxu0 0.0
  %1653 = vmatpush1.msra.mxu0 0.0
  %1654 = vmatprep.subr.mxu0 0.0
  %1655 = vmatpush1.msra.mxu0 0.0
  %1656 = vmatprep.subr.mxu0 0.0
  %1657 = vmatpush1.msra.mxu0 0.0
  %1658 = vmatprep.subr.mxu0 0.0
  %1659 = vmatpush1.msra.mxu0 0.0
  %1660 = vmatprep.subr.mxu0 0.0
  %1661 = vmatpush1.msra.mxu0 0.0
  %1662 = vmatprep.subr.mxu0 0.0
  %1663 = vmatpush1.msra.mxu0 0.0
  %1664 = vmatprep.subr.mxu0 0.0
  %1665 = vmatpush1.msra.mxu0 0.0
  %1666 = vmatprep.subr.mxu0 0.0
  %1667 = vmatpush1.msra.mxu0 0.0
  %1668 = vmatprep.subr.mxu0 0.0
  %1669 = vmatpush1.msra.mxu0 0.0
  %1670 = vmatprep.subr.mxu0 0.0
  %1671 = vmatpush1.msra.mxu0 0.0
  %1672 = vmatprep.subr.mxu0 0.0
  %1673 = vmatpush1.msra.mxu0 0.0
  %1674 = vmatprep.subr.mxu0 0.0
  %1675 = vmatpush1.msra.mxu0 0.0
  %1676 = vmatprep.subr.mxu0 0.0
  %1677 = vmatpush1.msra.mxu0 0.0
  %1678 = vmatprep.subr.mxu0 0.0
  %1679 = vmatpush1.msra.mxu0 0.0
  %1680 = vmatprep.subr.mxu0 0.0
  %1681 = vmatpush1.msra.mxu0 0.0
  %1682 = vmatprep.subr.mxu0 0.0
  %1683 = vmatpush1.msra.mxu0 0.0
  %1684 = vmatprep.subr.mxu0 0.0
  %1685 = vmatpush1.msra.mxu0 0.0
  %1686 = vmatprep.subr.mxu0 0.0
  %1687 = vmatpush1.msra.mxu0 0.0
  %1688 = vmatprep.subr.mxu0 0.0
  %1689 = vmatpush1.msra.mxu0 0.0
  %1690 = vmatprep.subr.mxu0 0.0
  %1691 = vmatpush1.msra.mxu0 0.0
  %1692 = vmatprep.subr.mxu0 0.0
  %1693 = vmatpush1.msra.mxu0 0.0
  %1694 = vmatprep.subr.mxu0 0.0
  %1695 = vmatpush1.msra.mxu0 0.0
  %1696 = vmatprep.subr.mxu0 0.0
  %1697 = vmatpush1.msra.mxu0 0.0
  %1698 = vmatprep.mubr.f32.mxu0 0.0
  %1699 = vmatmul.mubr.f32.gmra.mrb[0].mxu0 %v1628
  %v1700 = vpop.f32.mrb[0].mxu0
  %v1701 = vadd.f32 0.0, %v1700
  %v1702 = vpop.f32.mrb[0].mxu0
  %v1703 = vadd.f32 0.0, %v1702
  %1704 = vdwg.mxu0
  %v1705 = vsel %vm71, %v1701, 0.0
  %v1706 = vsel %vm71, %v1703, 0.0
  %v1707 = vadd.f32 %v1705, %v1706
  %1708 = vadd.xlane.f32.xlu0 %v1707
  %v1709 = vpop.xlane.xlu0 %1708
  %v1710 = vmul.f32 %v1709, 0.00390625
  %v1711 = vmul.f32 %v1701, %v1701
  %v1712 = vmul.f32 %v1703, %v1703
  %v1713 = vsel %vm71, %v1711, 0.0
  %v1714 = vsel %vm71, %v1712, 0.0
  %v1715 = vadd.f32 %v1713, %v1714
  %1716 = vadd.xlane.f32.xlu0 %v1715
  %v1717 = vpop.xlane.xlu0 %1716
  %v1718 = vmul.f32 %v1717, 0.00390625
  %v1719 = vmul.f32 %v1710, %v1710
  %v1720 = vsub.f32 %v1718, %v1719
  %v1721 = vmax.f32 %v1720, 0.0
  %v1722 = vsub.f32 %v1701, %v1710
  %v1723 = vsub.f32 %v1703, %v1710
  %v1724 = vadd.f32 %v1721, 1e-05
  %v1725 = vrsqrt.pop %v1724
  %v1726 = vmul.f32 %v1722, %v1725
  %v1727 = vmul.f32 %v1723, %v1725
  %v1728 = vmax.f32 %v1726, 0.0
  %v1729 = vmax.f32 %v1727, 0.0
  %v1732 = vcombine.low %v1728, %v1729
  %v1734 = vunpack.c.l.s4 1983009808
  %v1735 = vunpack.c.0.s8 %v1734
  %v1736 = vlaneseq
  %v1737 = vshrl.u32 %v1736, 7
  %v1738 = vsub.s32 %v1735, %v1737
  %v1739 = vrot.slane %v1732, %v1738
  %1740 = vrot.lane.b32.xlu0 %v1739, 16
  %v1741 = vpop.permute.xlu0 %1740
  %v1742 = vrot.slane %v1741, 6
  %v1743 = vsel %vm185, %v1742, %v1741
  %1745 = vst.msk [vmem:[#allocation2] sm:$0x3f] %vm192, %v1743
  %v1747 = vunpack.c.l.s4 1983009808
  %v1748 = vunpack.c.0.s8 %v1747
  %v1749 = vlaneseq
  %v1750 = vshrl.u32 %v1749, 7
  %v1751 = vsub.s32 %v1748, %v1750
  %v1752 = vrot.slane %v1728, %v1751
  %1753 = vrot.lane.b32.xlu0 %v1752, 112
  %v1754 = vpop.permute.xlu0 %1753
  %1756 = vst.msk [vmem:[#allocation2] sm:$0x3] %vm204, %v1754
  %v1758 = vunpack.c.l.s4 1983009808
  %v1759 = vunpack.c.0.s8 %v1758
  %v1760 = vlaneseq
  %v1761 = vshrl.u32 %v1760, 7
  %v1762 = vsub.s32 %v1759, %v1761
  %v1763 = vrot.slane %v1729, %v1762
  %1764 = vrot.lane.b32.xlu0 %v1763, 48
  %v1765 = vpop.permute.xlu0 %1764
  %1767 = vst.msk [vmem:[#allocation2 + $0x4] sm:$0x3] %vm216, %v1765
  %v1768 = vld [vmem:[#allocation2] sm:$0xf]
  %v1771 = vunpack.c.l.s4 1983009808
  %v1772 = vunpack.c.0.s8 %v1771
  %v1773 = vlaneseq
  %v1774 = vshrl.u32 %v1773, 7
  %v1775 = vsub.s32 %v1772, %v1774
  %v1776 = vrot.slane %v1768, %v1775
  %v1777 = vcombine.high %v1776, %v1776
  %1780 = vrot.lane.b32.xlu0 %v1776, 1
  %v1781 = vpop.permute.xlu0 %1780
  %1782 = vrot.lane.b32.xlu0 %v1777, 1
  %v1783 = vpop.permute.xlu0 %1782
  %v1784 = vsel %vm234, %v1781, %v1783
  %v1785 = vsel %vm234, %v1783, %v1781
  %1786 = vrot.lane.b32.xlu0 %v1776, 127
  %v1787 = vpop.permute.xlu0 %1786
  %1788 = vrot.lane.b32.xlu0 %v1777, 127
  %v1789 = vpop.permute.xlu0 %1788
  %v1790 = vsel %vm241, %v1787, %v1789
  %v1791 = vsel %vm241, %v1789, %v1787
  %v1792 = vsel %vm246, %v1790, %v1785
  %v1793 = vsel %vm247, %v1791, %v1784
  %v1794 = vsel %vm252, %v1785, %v1790
  %v1795 = vsel %vm253, %v1784, %v1791
  %v1798 = vrot.slane %v1792, 6
  %v1799 = vrot.slane %v1793, 6
  %1802 = vst [vmem:[#allocation4 + $0x20] sm:$0xc] %v1798
  %1803 = vst [vmem:[#allocation4 + $0x28] sm:$0xc] %v1799
  %v1804 = vcombine.low %v1776, %v1776
  %1806 = vst [vmem:[#allocation4 + $0x20] sm:$0x30] %v1804
  %1807 = vst [vmem:[#allocation4 + $0x28] sm:$0x30] %v1776
  %v1810 = vrot.slane %v1794, 2
  %v1811 = vrot.slane %v1795, 2
  %1814 = vst [vmem:[#allocation4 + $0x20] sm:$0xc0] %v1810
  %1815 = vst [vmem:[#allocation4 + $0x28] sm:$0xc0] %v1811
  %v1816 = vld [vmem:[#allocation2] sm:$0x3f]
  %v1818 = vcombine.high %v1816, %v1816
  %v1820 = vunpack.c.l.s4 1983009808
  %v1821 = vunpack.c.0.s8 %v1820
  %v1822 = vlaneseq
  %v1823 = vshrl.u32 %v1822, 7
  %v1824 = vsub.s32 %v1821, %v1823
  %v1825 = vrot.slane %v1816, %v1824
  %v1827 = vunpack.c.l.s4 1983009808
  %v1828 = vunpack.c.0.s8 %v1827
  %v1829 = vlaneseq
  %v1830 = vshrl.u32 %v1829, 7
  %v1831 = vsub.s32 %v1828, %v1830
  %v1832 = vrot.slane %v1818, %v1831
  %v1833 = vcombine.high %v1825, %v1825
  %1834 = vrot.lane.b32.xlu0 %v1825, 112
  %v1835 = vpop.permute.xlu0 %1834
  %1836 = vrot.lane.b32.xlu0 %v1833, 112
  %v1837 = vpop.permute.xlu0 %1836
  %1838 = vrot.lane.b32.xlu0 %v1832, 112
  %v1839 = vpop.permute.xlu0 %1838
  %v1840 = vsel %vm300, %v1835, %v1837
  %v1841 = vsel %vm300, %v1837, %v1839
  %1844 = vrot.lane.b32.xlu0 %v1840, 1
  %v1845 = vpop.permute.xlu0 %1844
  %1846 = vrot.lane.b32.xlu0 %v1841, 1
  %v1847 = vpop.permute.xlu0 %1846
  %v1848 = vsel %vm234, %v1845, %v1847
  %v1849 = vsel %vm234, %v1847, %v1845
  %1850 = vrot.lane.b32.xlu0 %v1840, 127
  %v1851 = vpop.permute.xlu0 %1850
  %1852 = vrot.lane.b32.xlu0 %v1841, 127
  %v1853 = vpop.permute.xlu0 %1852
  %v1854 = vsel %vm241, %v1851, %v1853
  %v1855 = vsel %vm241, %v1853, %v1851
  %v1856 = vsel %vm246, %v1854, %v1849
  %v1857 = vsel %vm247, %v1855, %v1848
  %v1858 = vsel %vm252, %v1849, %v1854
  %v1859 = vsel %vm253, %v1848, %v1855
  %1860 = vst [vmem:[#allocation4 + $0x30] sm:$0x3] %v1856
  %1861 = vst [vmem:[#allocation4 + $0x38] sm:$0x3] %v1857
  %v1862 = vcombine.low %v1816, %v1816
  %v1864 = vunpack.c.l.s4 1983009808
  %v1865 = vunpack.c.0.s8 %v1864
  %v1866 = vlaneseq
  %v1867 = vshrl.u32 %v1866, 7
  %v1868 = vsub.s32 %v1865, %v1867
  %v1869 = vrot.slane %v1862, %v1868
  %v1870 = vcombine.high %v1869, %v1869
  %1871 = vrot.lane.b32.xlu0 %v1869, 112
  %v1872 = vpop.permute.xlu0 %1871
  %1873 = vrot.lane.b32.xlu0 %v1870, 112
  %v1874 = vpop.permute.xlu0 %1873
  %v1875 = vsel %vm300, %v1872, %v1874
  %v1876 = vsel %vm300, %v1874, %v1835
  %1879 = vst [vmem:[#allocation4 + $0x30] sm:$0xc] %v1875
  %1880 = vst [vmem:[#allocation4 + $0x38] sm:$0xc] %v1876
  %v1883 = vrot.slane %v1858, 4
  %v1884 = vrot.slane %v1859, 4
  %1887 = vst [vmem:[#allocation4 + $0x30] sm:$0x30] %v1883
  %1888 = vst [vmem:[#allocation4 + $0x38] sm:$0x30] %v1884
  %v1889 = vld [vmem:[#allocation2] sm:$0x3f]
  %v1891 = vcombine.high %v1889, %v1889
  %v1893 = vunpack.c.l.s4 1983009808
  %v1894 = vunpack.c.0.s8 %v1893
  %v1895 = vlaneseq
  %v1896 = vshrl.u32 %v1895, 7
  %v1897 = vsub.s32 %v1894, %v1896
  %v1898 = vrot.slane %v1889, %v1897
  %v1900 = vunpack.c.l.s4 1983009808
  %v1901 = vunpack.c.0.s8 %v1900
  %v1902 = vlaneseq
  %v1903 = vshrl.u32 %v1902, 7
  %v1904 = vsub.s32 %v1901, %v1903
  %v1905 = vrot.slane %v1891, %v1904
  %v1906 = vcombine.high %v1898, %v1898
  %1907 = vrot.lane.b32.xlu0 %v1898, 96
  %v1908 = vpop.permute.xlu0 %1907
  %1909 = vrot.lane.b32.xlu0 %v1906, 96
  %v1910 = vpop.permute.xlu0 %1909
  %1911 = vrot.lane.b32.xlu0 %v1905, 96
  %v1912 = vpop.permute.xlu0 %1911
  %v1913 = vsel %vm374, %v1908, %v1910
  %v1914 = vsel %vm374, %v1910, %v1912
  %1917 = vrot.lane.b32.xlu0 %v1913, 1
  %v1918 = vpop.permute.xlu0 %1917
  %1919 = vrot.lane.b32.xlu0 %v1914, 1
  %v1920 = vpop.permute.xlu0 %1919
  %v1921 = vsel %vm234, %v1918, %v1920
  %v1922 = vsel %vm234, %v1920, %v1918
  %1923 = vrot.lane.b32.xlu0 %v1913, 127
  %v1924 = vpop.permute.xlu0 %1923
  %1925 = vrot.lane.b32.xlu0 %v1914, 127
  %v1926 = vpop.permute.xlu0 %1925
  %v1927 = vsel %vm241, %v1924, %v1926
  %v1928 = vsel %vm241, %v1926, %v1924
  %v1929 = vsel %vm246, %v1927, %v1922
  %v1930 = vsel %vm247, %v1928, %v1921
  %v1931 = vsel %vm252, %v1922, %v1927
  %v1932 = vsel %vm253, %v1921, %v1928
  %v1935 = vrot.slane %v1929, 2
  %v1936 = vrot.slane %v1930, 2
  %1939 = vst [vmem:[#allocation4 + $0x30] sm:$0xc0] %v1935
  %1940 = vst [vmem:[#allocation4 + $0x38] sm:$0xc0] %v1936
  %1941 = vst [vmem:[#allocation4 + $0x40] sm:$0x3] %v1913
  %1942 = vst [vmem:[#allocation4 + $0x48] sm:$0x3] %v1914
  %v1945 = vrot.slane %v1931, 6
  %v1946 = vrot.slane %v1932, 6
  %1949 = vst [vmem:[#allocation4 + $0x40] sm:$0xc] %v1945
  %1950 = vst [vmem:[#allocation4 + $0x48] sm:$0xc] %v1946
  %s1951 = scalar_lea.vmem %s1, 4
  %v1952 = vld [vmem:[%s1951] sm:$0xf]
  %1954 = vrot.lane.b32.xlu0 %v1952, 32
  %v1955 = vpop.permute.xlu0 %1954
  %v1956 = vrot.slane %v1955, 6
  %v1957 = vsel %vm418, %v1956, %v1955
  %1959 = vst.msk [vmem:[#allocation3] sm:$0x3f] %vm424, %v1957
  %1960 = vrot.lane.b32.xlu0 %v1952, 96
  %v1961 = vpop.permute.xlu0 %1960
  %1963 = vst.msk [vmem:[#allocation3] sm:$0x3] %vm204, %v1961
  %1964 = vst.msk [vmem:[#allocation3] sm:$0x3] %vm216, %v1952
  %1965 = vrot.lane.b32.xlu0 %v1952, 64
  %v1966 = vpop.permute.xlu0 %1965
  %v1967 = vrot.slane %v1966, 2
  %1969 = vst.msk [vmem:[#allocation3 + $0x4] sm:$0x3] %vm435, %v1967
  %v1970 = vrot.slane %v1961, 2
  %1972 = vst.msk [vmem:[#allocation3 + $0x4] sm:$0x3] %vm439, %v1970
  %v1973 = vld [vmem:[#allocation3] sm:$0xf]
  %v1976 = vunpack.c.l.s4 1983009808
  %v1977 = vunpack.c.0.s8 %v1976
  %v1978 = vlaneseq
  %v1979 = vshrl.u32 %v1978, 7
  %v1980 = vsub.s32 %v1977, %v1979
  %v1981 = vrot.slane %v1973, %v1980
  %v1982 = vcombine.high %v1981, %v1981
  %1985 = vrot.lane.b32.xlu0 %v1981, 2
  %v1986 = vpop.permute.xlu0 %1985
  %1987 = vrot.lane.b32.xlu0 %v1982, 2
  %v1988 = vpop.permute.xlu0 %1987
  %v1989 = vsel %vm457, %v1986, %v1988
  %v1990 = vsel %vm457, %v1988, %v1986
  %1991 = vrot.lane.b32.xlu0 %v1981, 126
  %v1992 = vpop.permute.xlu0 %1991
  %1993 = vrot.lane.b32.xlu0 %v1982, 126
  %v1994 = vpop.permute.xlu0 %1993
  %v1995 = vsel %vm464, %v1992, %v1994
  %v1996 = vsel %vm464, %v1994, %v1992
  %v1997 = vsel %vm469, %v1981, %v1990
  %v1998 = vsel %vm470, %v1982, %v1989
  %v1999 = vsel %vm246, %v1995, %v1997
  %v2000 = vsel %vm247, %v1996, %v1998
  %v2001 = vsel %vm477, %v1981, %v1995
  %v2002 = vsel %vm478, %v1982, %v1996
  %v2003 = vsel %vm252, %v1990, %v2001
  %v2004 = vsel %vm253, %v1989, %v2002
  %2005 = vst [vmem:[#allocation4] sm:$0x3] %v1999
  %2006 = vst [vmem:[#allocation4 + $0x8] sm:$0x3] %v2000
  %v2007 = vcombine.low %v1973, %v1973
  %v2009 = vunpack.c.l.s4 1983009808
  %v2010 = vunpack.c.0.s8 %v2009
  %v2011 = vlaneseq
  %v2012 = vshrl.u32 %v2011, 7
  %v2013 = vsub.s32 %v2010, %v2012
  %v2014 = vrot.slane %v2007, %v2013
  %v2015 = vcombine.high %v2014, %v2014
  %2018 = vst [vmem:[#allocation4] sm:$0xc] %v2014
  %2019 = vst [vmem:[#allocation4 + $0x8] sm:$0xc] %v2015
  %v2022 = vrot.slane %v2003, 4
  %v2023 = vrot.slane %v2004, 4
  %2026 = vst [vmem:[#allocation4] sm:$0x30] %v2022
  %2027 = vst [vmem:[#allocation4 + $0x8] sm:$0x30] %v2023
  %v2028 = vld [vmem:[#allocation3] sm:$0x3f]
  %v2030 = vcombine.high %v2028, %v2028
  %v2032 = vunpack.c.l.s4 1983009808
  %v2033 = vunpack.c.0.s8 %v2032
  %v2034 = vlaneseq
  %v2035 = vshrl.u32 %v2034, 7
  %v2036 = vsub.s32 %v2033, %v2035
  %v2037 = vrot.slane %v2028, %v2036
  %v2039 = vunpack.c.l.s4 1983009808
  %v2040 = vunpack.c.0.s8 %v2039
  %v2041 = vlaneseq
  %v2042 = vshrl.u32 %v2041, 7
  %v2043 = vsub.s32 %v2040, %v2042
  %v2044 = vrot.slane %v2030, %v2043
  %v2045 = vcombine.high %v2037, %v2037
  %2046 = vrot.lane.b32.xlu0 %v2037, 96
  %v2047 = vpop.permute.xlu0 %2046
  %2048 = vrot.lane.b32.xlu0 %v2045, 96
  %v2049 = vpop.permute.xlu0 %2048
  %2050 = vrot.lane.b32.xlu0 %v2044, 96
  %v2051 = vpop.permute.xlu0 %2050
  %v2052 = vsel %vm374, %v2047, %v2049
  %v2053 = vsel %vm374, %v2049, %v2051
  %2056 = vrot.lane.b32.xlu0 %v2052, 2
  %v2057 = vpop.permute.xlu0 %2056
  %2058 = vrot.lane.b32.xlu0 %v2053, 2
  %v2059 = vpop.permute.xlu0 %2058
  %v2060 = vsel %vm457, %v2057, %v2059
  %v2061 = vsel %vm457, %v2059, %v2057
  %2062 = vrot.lane.b32.xlu0 %v2052, 126
  %v2063 = vpop.permute.xlu0 %2062
  %2064 = vrot.lane.b32.xlu0 %v2053, 126
  %v2065 = vpop.permute.xlu0 %2064
  %v2066 = vsel %vm464, %v2063, %v2065
  %v2067 = vsel %vm464, %v2065, %v2063
  %v2068 = vsel %vm469, %v2052, %v2061
  %v2069 = vsel %vm470, %v2053, %v2060
  %v2070 = vsel %vm246, %v2066, %v2068
  %v2071 = vsel %vm247, %v2067, %v2069
  %v2072 = vsel %vm477, %v2052, %v2066
  %v2073 = vsel %vm478, %v2053, %v2067
  %v2074 = vsel %vm252, %v2061, %v2072
  %v2075 = vsel %vm253, %v2060, %v2073
  %v2078 = vrot.slane %v2070, 2
  %v2079 = vrot.slane %v2071, 2
  %2082 = vst [vmem:[#allocation4] sm:$0xc0] %v2078
  %2083 = vst [vmem:[#allocation4 + $0x8] sm:$0xc0] %v2079
  %2084 = vst [vmem:[#allocation4 + $0x10] sm:$0x3] %v2052
  %2085 = vst [vmem:[#allocation4 + $0x18] sm:$0x3] %v2053
  %v2088 = vrot.slane %v2074, 6
  %v2089 = vrot.slane %v2075, 6
  %2092 = vst [vmem:[#allocation4 + $0x10] sm:$0xc] %v2088
  %2093 = vst [vmem:[#allocation4 + $0x18] sm:$0xc] %v2089
  %v2094 = vld [vmem:[#allocation3] sm:$0x3f]
  %v2096 = vcombine.high %v2094, %v2094
  %v2098 = vunpack.c.l.s4 1983009808
  %v2099 = vunpack.c.0.s8 %v2098
  %v2100 = vlaneseq
  %v2101 = vshrl.u32 %v2100, 7
  %v2102 = vsub.s32 %v2099, %v2101
  %v2103 = vrot.slane %v2094, %v2102
  %v2105 = vunpack.c.l.s4 1983009808
  %v2106 = vunpack.c.0.s8 %v2105
  %v2107 = vlaneseq
  %v2108 = vshrl.u32 %v2107, 7
  %v2109 = vsub.s32 %v2106, %v2108
  %v2110 = vrot.slane %v2096, %v2109
  %v2111 = vcombine.high %v2103, %v2103
  %2112 = vrot.lane.b32.xlu0 %v2103, 64
  %v2113 = vpop.permute.xlu0 %2112
  %2114 = vrot.lane.b32.xlu0 %v2111, 64
  %v2115 = vpop.permute.xlu0 %2114
  %2116 = vrot.lane.b32.xlu0 %v2110, 64
  %v2117 = vpop.permute.xlu0 %2116
  %v2118 = vsel %vm596, %v2113, %v2115
  %v2119 = vsel %vm596, %v2115, %v2117
  %2122 = vrot.lane.b32.xlu0 %v2118, 2
  %v2123 = vpop.permute.xlu0 %2122
  %2124 = vrot.lane.b32.xlu0 %v2119, 2
  %v2125 = vpop.permute.xlu0 %2124
  %v2126 = vsel %vm457, %v2123, %v2125
  %v2127 = vsel %vm457, %v2125, %v2123
  %2128 = vrot.lane.b32.xlu0 %v2118, 126
  %v2129 = vpop.permute.xlu0 %2128
  %2130 = vrot.lane.b32.xlu0 %v2119, 126
  %v2131 = vpop.permute.xlu0 %2130
  %v2132 = vsel %vm464, %v2129, %v2131
  %v2133 = vsel %vm464, %v2131, %v2129
  %v2134 = vsel %vm469, %v2118, %v2127
  %v2135 = vsel %vm470, %v2119, %v2126
  %v2136 = vsel %vm246, %v2132, %v2134
  %v2137 = vsel %vm247, %v2133, %v2135
  %v2138 = vsel %vm477, %v2118, %v2132
  %v2139 = vsel %vm478, %v2119, %v2133
  %v2140 = vsel %vm252, %v2127, %v2138
  %v2141 = vsel %vm253, %v2126, %v2139
  %v2144 = vrot.slane %v2136, 4
  %v2145 = vrot.slane %v2137, 4
  %2148 = vst [vmem:[#allocation4 + $0x10] sm:$0x30] %v2144
  %2149 = vst [vmem:[#allocation4 + $0x18] sm:$0x30] %v2145
  %v2150 = vcombine.low %v2094, %v2094
  %v2152 = vunpack.c.l.s4 1983009808
  %v2153 = vunpack.c.0.s8 %v2152
  %v2154 = vlaneseq
  %v2155 = vshrl.u32 %v2154, 7
  %v2156 = vsub.s32 %v2153, %v2155
  %v2157 = vrot.slane %v2150, %v2156
  %v2158 = vcombine.low %v2157, %v2157
  %v2159 = vcombine.low %v2103, %v2103
  %2160 = vrot.lane.b32.xlu0 %v2158, 64
  %v2161 = vpop.permute.xlu0 %2160
  %2162 = vrot.lane.b32.xlu0 %v2157, 64
  %v2163 = vpop.permute.xlu0 %2162
  %2164 = vrot.lane.b32.xlu0 %v2159, 64
  %v2165 = vpop.permute.xlu0 %2164
  %v2166 = vsel %vm596, %v2161, %v2163
  %v2167 = vsel %vm596, %v2163, %v2165
  %2170 = vst [vmem:[#allocation4 + $0x10] sm:$0xc0] %v2166
  %2171 = vst [vmem:[#allocation4 + $0x18] sm:$0xc0] %v2167
  %2172 = vst [vmem:[#allocation4 + $0x20] sm:$0x3] %v2140
  %2173 = vst [vmem:[#allocation4 + $0x28] sm:$0x3] %v2141
  %v2174 = vld [vmem:[#allocation4] sm:$0xff]
  %v2175 = vld [vmem:[#allocation4 + $0x8] sm:$0xff]
  %v2176 = vld [vmem:[#allocation4 + $0x10] sm:$0xff]
  %v2177 = vld [vmem:[#allocation4 + $0x18] sm:$0xff]
  %v2178 = vld [vmem:[#allocation4 + $0x20] sm:$0x3]
  %v2179 = vld [vmem:[#allocation4 + $0x28] sm:$0x3]
  %v2181 = vsel %vm71, %v2178, 0
  %v2184 = vsel %vm71, %v2179, 0
  %2186 = vmatprep.subr.mxu0 %v2175
  %2187 = vmatpush1.msra.mxu0 %v2174
  %2188 = vmatprep.subr.mxu0 %v2177
  %2189 = vmatpush1.msra.mxu0 %v2176
  %2190 = vmatprep.subr.mxu0 %v2184
  %2191 = vmatpush1.msra.mxu0 %v2181
  %2192 = vmatprep.subr.mxu0 0.0
  %2193 = vmatpush1.msra.mxu0 0.0
  %2194 = vmatprep.subr.mxu0 0.0
  %2195 = vmatpush1.msra.mxu0 0.0
  %2196 = vmatprep.subr.mxu0 0.0
  %2197 = vmatpush1.msra.mxu0 0.0
  %2198 = vmatprep.subr.mxu0 0.0
  %2199 = vmatpush1.msra.mxu0 0.0
  %2200 = vmatprep.subr.mxu0 0.0
  %2201 = vmatpush1.msra.mxu0 0.0
  %2202 = vmatprep.subr.mxu0 0.0
  %2203 = vmatpush1.msra.mxu0 0.0
  %2204 = vmatprep.subr.mxu0 0.0
  %2205 = vmatpush1.msra.mxu0 0.0
  %2206 = vmatprep.subr.mxu0 0.0
  %2207 = vmatpush1.msra.mxu0 0.0
  %2208 = vmatprep.subr.mxu0 0.0
  %2209 = vmatpush1.msra.mxu0 0.0
  %2210 = vmatprep.subr.mxu0 0.0
  %2211 = vmatpush1.msra.mxu0 0.0
  %2212 = vmatprep.subr.mxu0 0.0
  %2213 = vmatpush1.msra.mxu0 0.0
  %2214 = vmatprep.subr.mxu0 0.0
  %2215 = vmatpush1.msra.mxu0 0.0
  %2216 = vmatprep.subr.mxu0 0.0
  %2217 = vmatpush1.msra.mxu0 0.0
  %2218 = vmatprep.subr.mxu0 0.0
  %2219 = vmatpush1.msra.mxu0 0.0
  %2220 = vmatprep.subr.mxu0 0.0
  %2221 = vmatpush1.msra.mxu0 0.0
  %2222 = vmatprep.subr.mxu0 0.0
  %2223 = vmatpush1.msra.mxu0 0.0
  %2224 = vmatprep.subr.mxu0 0.0
  %2225 = vmatpush1.msra.mxu0 0.0
  %2226 = vmatprep.subr.mxu0 0.0
  %2227 = vmatpush1.msra.mxu0 0.0
  %2228 = vmatprep.subr.mxu0 0.0
  %2229 = vmatpush1.msra.mxu0 0.0
  %2230 = vmatprep.subr.mxu0 0.0
  %2231 = vmatpush1.msra.mxu0 0.0
  %2232 = vmatprep.subr.mxu0 0.0
  %2233 = vmatpush1.msra.mxu0 0.0
  %2234 = vmatprep.subr.mxu0 0.0
  %2235 = vmatpush1.msra.mxu0 0.0
  %2236 = vmatprep.subr.mxu0 0.0
  %2237 = vmatpush1.msra.mxu0 0.0
  %2238 = vmatprep.subr.mxu0 0.0
  %2239 = vmatpush1.msra.mxu0 0.0
  %2240 = vmatprep.subr.mxu0 0.0
  %2241 = vmatpush1.msra.mxu0 0.0
  %2242 = vmatprep.subr.mxu0 0.0
  %2243 = vmatpush1.msra.mxu0 0.0
  %2244 = vmatprep.subr.mxu0 0.0
  %2245 = vmatpush1.msra.mxu0 0.0
  %2246 = vmatprep.subr.mxu0 0.0
  %2247 = vmatpush1.msra.mxu0 0.0
  %2248 = vmatprep.subr.mxu0 0.0
  %2249 = vmatpush1.msra.mxu0 0.0
  %2250 = vmatprep.mubr.f32.mxu0 0.0
  %2251 = vmatmul.mubr.f32.gmra.mrb[0].mxu0 %v661
  %v2252 = vpop.f32.mrb[0].mxu0
  %v2253 = vadd.f32 0.0, %v2252
  %v2254 = vpop.f32.mrb[0].mxu0
  %v2255 = vadd.f32 0.0, %v2254
  %2256 = vdwg.mxu0
  %v2257 = vsel %vm71, %v2253, 0.0
  %v2258 = vsel %vm71, %v2255, 0.0
  %v2259 = vadd.f32 %v2257, %v2258
  %2260 = vadd.xlane.f32.xlu0 %v2259
  %v2261 = vpop.xlane.xlu0 %2260
  %v2262 = vmul.f32 %v2261, 0.00390625
  %v2263 = vmul.f32 %v2253, %v2253
  %v2264 = vmul.f32 %v2255, %v2255
  %v2265 = vsel %vm71, %v2263, 0.0
  %v2266 = vsel %vm71, %v2264, 0.0
  %v2267 = vadd.f32 %v2265, %v2266
  %2268 = vadd.xlane.f32.xlu0 %v2267
  %v2269 = vpop.xlane.xlu0 %2268
  %v2270 = vmul.f32 %v2269, 0.00390625
  %v2271 = vmul.f32 %v2262, %v2262
  %v2272 = vsub.f32 %v2270, %v2271
  %v2273 = vmax.f32 %v2272, 0.0
  %v2274 = vsub.f32 %v2253, %v2262
  %v2275 = vsub.f32 %v2255, %v2262
  %v2276 = vadd.f32 %v2273, 1e-05
  %v2277 = vrsqrt.pop %v2276
  %v2278 = vmul.f32 %v2274, %v2277
  %v2279 = vmul.f32 %v2275, %v2277
  %v2280 = vmax.f32 %v2278, 0.0
  %v2281 = vmax.f32 %v2279, 0.0
  %v2284 = vcombine.low %v2280, %v2281
  %v2286 = vunpack.c.l.s4 1983009808
  %v2287 = vunpack.c.0.s8 %v2286
  %v2288 = vlaneseq
  %v2289 = vshrl.u32 %v2288, 7
  %v2290 = vsub.s32 %v2287, %v2289
  %v2291 = vrot.slane %v2284, %v2290
  %2292 = vrot.lane.b32.xlu0 %v2291, 16
  %v2293 = vpop.permute.xlu0 %2292
  %v2294 = vrot.slane %v2293, 6
  %v2295 = vsel %vm185, %v2294, %v2293
  %2297 = vst.msk [vmem:[#allocation2] sm:$0x3f] %vm192, %v2295
  %v2299 = vunpack.c.l.s4 1983009808
  %v2300 = vunpack.c.0.s8 %v2299
  %v2301 = vlaneseq
  %v2302 = vshrl.u32 %v2301, 7
  %v2303 = vsub.s32 %v2300, %v2302
  %v2304 = vrot.slane %v2280, %v2303
  %2305 = vrot.lane.b32.xlu0 %v2304, 112
  %v2306 = vpop.permute.xlu0 %2305
  %2308 = vst.msk [vmem:[#allocation2] sm:$0x3] %vm204, %v2306
  %v2310 = vunpack.c.l.s4 1983009808
  %v2311 = vunpack.c.0.s8 %v2310
  %v2312 = vlaneseq
  %v2313 = vshrl.u32 %v2312, 7
  %v2314 = vsub.s32 %v2311, %v2313
  %v2315 = vrot.slane %v2281, %v2314
  %2316 = vrot.lane.b32.xlu0 %v2315, 48
  %v2317 = vpop.permute.xlu0 %2316
  %2319 = vst.msk [vmem:[#allocation2 + $0x4] sm:$0x3] %vm216, %v2317
  %v2320 = vld [vmem:[#allocation2] sm:$0xf]
  %v2323 = vunpack.c.l.s4 1983009808
  %v2324 = vunpack.c.0.s8 %v2323
  %v2325 = vlaneseq
  %v2326 = vshrl.u32 %v2325, 7
  %v2327 = vsub.s32 %v2324, %v2326
  %v2328 = vrot.slane %v2320, %v2327
  %v2329 = vcombine.high %v2328, %v2328
  %2332 = vrot.lane.b32.xlu0 %v2328, 1
  %v2333 = vpop.permute.xlu0 %2332
  %2334 = vrot.lane.b32.xlu0 %v2329, 1
  %v2335 = vpop.permute.xlu0 %2334
  %v2336 = vsel %vm234, %v2333, %v2335
  %v2337 = vsel %vm234, %v2335, %v2333
  %2338 = vrot.lane.b32.xlu0 %v2328, 127
  %v2339 = vpop.permute.xlu0 %2338
  %2340 = vrot.lane.b32.xlu0 %v2329, 127
  %v2341 = vpop.permute.xlu0 %2340
  %v2342 = vsel %vm241, %v2339, %v2341
  %v2343 = vsel %vm241, %v2341, %v2339
  %v2344 = vsel %vm246, %v2342, %v2337
  %v2345 = vsel %vm247, %v2343, %v2336
  %v2346 = vsel %vm252, %v2337, %v2342
  %v2347 = vsel %vm253, %v2336, %v2343
  %2348 = vst [vmem:[#allocation4] sm:$0x3] %v2344
  %2349 = vst [vmem:[#allocation4 + $0x8] sm:$0x3] %v2345
  %v2350 = vcombine.low %v2320, %v2320
  %v2352 = vunpack.c.l.s4 1983009808
  %v2353 = vunpack.c.0.s8 %v2352
  %v2354 = vlaneseq
  %v2355 = vshrl.u32 %v2354, 7
  %v2356 = vsub.s32 %v2353, %v2355
  %v2357 = vrot.slane %v2350, %v2356
  %v2358 = vcombine.high %v2357, %v2357
  %2361 = vst [vmem:[#allocation4] sm:$0xc] %v2357
  %2362 = vst [vmem:[#allocation4 + $0x8] sm:$0xc] %v2358
  %v2365 = vrot.slane %v2346, 4
  %v2366 = vrot.slane %v2347, 4
  %2369 = vst [vmem:[#allocation4] sm:$0x30] %v2365
  %2370 = vst [vmem:[#allocation4 + $0x8] sm:$0x30] %v2366
  %v2371 = vld [vmem:[#allocation2] sm:$0x3f]
  %v2373 = vcombine.high %v2371, %v2371
  %v2375 = vunpack.c.l.s4 1983009808
  %v2376 = vunpack.c.0.s8 %v2375
  %v2377 = vlaneseq
  %v2378 = vshrl.u32 %v2377, 7
  %v2379 = vsub.s32 %v2376, %v2378
  %v2380 = vrot.slane %v2371, %v2379
  %v2382 = vunpack.c.l.s4 1983009808
  %v2383 = vunpack.c.0.s8 %v2382
  %v2384 = vlaneseq
  %v2385 = vshrl.u32 %v2384, 7
  %v2386 = vsub.s32 %v2383, %v2385
  %v2387 = vrot.slane %v2373, %v2386
  %v2388 = vcombine.high %v2380, %v2380
  %2389 = vrot.lane.b32.xlu0 %v2380, 112
  %v2390 = vpop.permute.xlu0 %2389
  %2391 = vrot.lane.b32.xlu0 %v2388, 112
  %v2392 = vpop.permute.xlu0 %2391
  %2393 = vrot.lane.b32.xlu0 %v2387, 112
  %v2394 = vpop.permute.xlu0 %2393
  %v2395 = vsel %vm300, %v2390, %v2392
  %v2396 = vsel %vm300, %v2392, %v2394
  %2399 = vrot.lane.b32.xlu0 %v2395, 1
  %v2400 = vpop.permute.xlu0 %2399
  %2401 = vrot.lane.b32.xlu0 %v2396, 1
  %v2402 = vpop.permute.xlu0 %2401
  %v2403 = vsel %vm234, %v2400, %v2402
  %v2404 = vsel %vm234, %v2402, %v2400
  %2405 = vrot.lane.b32.xlu0 %v2395, 127
  %v2406 = vpop.permute.xlu0 %2405
  %2407 = vrot.lane.b32.xlu0 %v2396, 127
  %v2408 = vpop.permute.xlu0 %2407
  %v2409 = vsel %vm241, %v2406, %v2408
  %v2410 = vsel %vm241, %v2408, %v2406
  %v2411 = vsel %vm246, %v2409, %v2404
  %v2412 = vsel %vm247, %v2410, %v2403
  %v2413 = vsel %vm252, %v2404, %v2409
  %v2414 = vsel %vm253, %v2403, %v2410
  %v2417 = vrot.slane %v2411, 2
  %v2418 = vrot.slane %v2412, 2
  %2421 = vst [vmem:[#allocation4] sm:$0xc0] %v2417
  %2422 = vst [vmem:[#allocation4 + $0x8] sm:$0xc0] %v2418
  %2423 = vst [vmem:[#allocation4 + $0x10] sm:$0x3] %v2395
  %2424 = vst [vmem:[#allocation4 + $0x18] sm:$0x3] %v2396
  %v2427 = vrot.slane %v2413, 6
  %v2428 = vrot.slane %v2414, 6
  %2431 = vst [vmem:[#allocation4 + $0x10] sm:$0xc] %v2427
  %2432 = vst [vmem:[#allocation4 + $0x18] sm:$0xc] %v2428
  %v2433 = vld [vmem:[#allocation2] sm:$0x3f]
  %v2435 = vcombine.high %v2433, %v2433
  %v2437 = vunpack.c.l.s4 1983009808
  %v2438 = vunpack.c.0.s8 %v2437
  %v2439 = vlaneseq
  %v2440 = vshrl.u32 %v2439, 7
  %v2441 = vsub.s32 %v2438, %v2440
  %v2442 = vrot.slane %v2433, %v2441
  %v2444 = vunpack.c.l.s4 1983009808
  %v2445 = vunpack.c.0.s8 %v2444
  %v2446 = vlaneseq
  %v2447 = vshrl.u32 %v2446, 7
  %v2448 = vsub.s32 %v2445, %v2447
  %v2449 = vrot.slane %v2435, %v2448
  %v2450 = vcombine.high %v2442, %v2442
  %2451 = vrot.lane.b32.xlu0 %v2442, 96
  %v2452 = vpop.permute.xlu0 %2451
  %2453 = vrot.lane.b32.xlu0 %v2450, 96
  %v2454 = vpop.permute.xlu0 %2453
  %2455 = vrot.lane.b32.xlu0 %v2449, 96
  %v2456 = vpop.permute.xlu0 %2455
  %v2457 = vsel %vm374, %v2452, %v2454
  %v2458 = vsel %vm374, %v2454, %v2456
  %2461 = vrot.lane.b32.xlu0 %v2457, 1
  %v2462 = vpop.permute.xlu0 %2461
  %2463 = vrot.lane.b32.xlu0 %v2458, 1
  %v2464 = vpop.permute.xlu0 %2463
  %v2465 = vsel %vm234, %v2462, %v2464
  %v2466 = vsel %vm234, %v2464, %v2462
  %2467 = vrot.lane.b32.xlu0 %v2457, 127
  %v2468 = vpop.permute.xlu0 %2467
  %2469 = vrot.lane.b32.xlu0 %v2458, 127
  %v2470 = vpop.permute.xlu0 %2469
  %v2471 = vsel %vm241, %v2468, %v2470
  %v2472 = vsel %vm241, %v2470, %v2468
  %v2473 = vsel %vm246, %v2471, %v2466
  %v2474 = vsel %vm247, %v2472, %v2465
  %v2475 = vsel %vm252, %v2466, %v2471
  %v2476 = vsel %vm253, %v2465, %v2472
  %v2479 = vrot.slane %v2473, 4
  %v2480 = vrot.slane %v2474, 4
  %2483 = vst [vmem:[#allocation4 + $0x10] sm:$0x30] %v2479
  %2484 = vst [vmem:[#allocation4 + $0x18] sm:$0x30] %v2480
  %v2485 = vcombine.low %v2433, %v2433
  %v2487 = vunpack.c.l.s4 1983009808
  %v2488 = vunpack.c.0.s8 %v2487
  %v2489 = vlaneseq
  %v2490 = vshrl.u32 %v2489, 7
  %v2491 = vsub.s32 %v2488, %v2490
  %v2492 = vrot.slane %v2485, %v2491
  %v2493 = vcombine.low %v2492, %v2492
  %v2494 = vcombine.low %v2442, %v2442
  %2495 = vrot.lane.b32.xlu0 %v2493, 96
  %v2496 = vpop.permute.xlu0 %2495
  %2497 = vrot.lane.b32.xlu0 %v2492, 96
  %v2498 = vpop.permute.xlu0 %2497
  %2499 = vrot.lane.b32.xlu0 %v2494, 96
  %v2500 = vpop.permute.xlu0 %2499
  %v2501 = vsel %vm374, %v2496, %v2498
  %v2502 = vsel %vm374, %v2498, %v2500
  %2505 = vst [vmem:[#allocation4 + $0x10] sm:$0xc0] %v2501
  %2506 = vst [vmem:[#allocation4 + $0x18] sm:$0xc0] %v2502
  %2507 = vst [vmem:[#allocation4 + $0x20] sm:$0x3] %v2475
  %2508 = vst [vmem:[#allocation4 + $0x28] sm:$0x3] %v2476
  %v2509 = vld [vmem:[#allocation4] sm:$0xff]
  %v2510 = vld [vmem:[#allocation4 + $0x8] sm:$0xff]
  %v2511 = vld [vmem:[#allocation4 + $0x10] sm:$0xff]
  %v2512 = vld [vmem:[#allocation4 + $0x18] sm:$0xff]
  %v2513 = vld [vmem:[#allocation4 + $0x20] sm:$0xff]
  %v2514 = vld [vmem:[#allocation4 + $0x28] sm:$0xff]
  %v2515 = vld [vmem:[#allocation4 + $0x30] sm:$0xff]
  %v2516 = vld [vmem:[#allocation4 + $0x38] sm:$0xff]
  %v2517 = vld [vmem:[#allocation4 + $0x40] sm:$0xf]
  %v2518 = vld [vmem:[#allocation4 + $0x48] sm:$0xf]
  %v2520 = vsel %vm1007, %v2517, 0
  %v2523 = vsel %vm1007, %v2518, 0
  %2525 = vmatprep.subr.mxu0 %v2510
  %2526 = vmatpush1.msra.mxu0 %v2509
  %2527 = vmatprep.subr.mxu0 %v2512
  %2528 = vmatpush1.msra.mxu0 %v2511
  %2529 = vmatprep.subr.mxu0 %v2514
  %2530 = vmatpush1.msra.mxu0 %v2513
  %2531 = vmatprep.subr.mxu0 %v2516
  %2532 = vmatpush1.msra.mxu0 %v2515
  %2533 = vmatprep.subr.mxu0 %v2523
  %2534 = vmatpush1.msra.mxu0 %v2520
  %2535 = vmatprep.subr.mxu0 0.0
  %2536 = vmatpush1.msra.mxu0 0.0
  %2537 = vmatprep.subr.mxu0 0.0
  %2538 = vmatpush1.msra.mxu0 0.0
  %2539 = vmatprep.subr.mxu0 0.0
  %2540 = vmatpush1.msra.mxu0 0.0
  %2541 = vmatprep.subr.mxu0 0.0
  %2542 = vmatpush1.msra.mxu0 0.0
  %2543 = vmatprep.subr.mxu0 0.0
  %2544 = vmatpush1.msra.mxu0 0.0
  %2545 = vmatprep.subr.mxu0 0.0
  %2546 = vmatpush1.msra.mxu0 0.0
  %2547 = vmatprep.subr.mxu0 0.0
  %2548 = vmatpush1.msra.mxu0 0.0
  %2549 = vmatprep.subr.mxu0 0.0
  %2550 = vmatpush1.msra.mxu0 0.0
  %2551 = vmatprep.subr.mxu0 0.0
  %2552 = vmatpush1.msra.mxu0 0.0
  %2553 = vmatprep.subr.mxu0 0.0
  %2554 = vmatpush1.msra.mxu0 0.0
  %2555 = vmatprep.subr.mxu0 0.0
  %2556 = vmatpush1.msra.mxu0 0.0
  %2557 = vmatprep.subr.mxu0 0.0
  %2558 = vmatpush1.msra.mxu0 0.0
  %2559 = vmatprep.subr.mxu0 0.0
  %2560 = vmatpush1.msra.mxu0 0.0
  %2561 = vmatprep.subr.mxu0 0.0
  %2562 = vmatpush1.msra.mxu0 0.0
  %2563 = vmatprep.subr.mxu0 0.0
  %2564 = vmatpush1.msra.mxu0 0.0
  %2565 = vmatprep.subr.mxu0 0.0
  %2566 = vmatpush1.msra.mxu0 0.0
  %2567 = vmatprep.subr.mxu0 0.0
  %2568 = vmatpush1.msra.mxu0 0.0
  %2569 = vmatprep.subr.mxu0 0.0
  %2570 = vmatpush1.msra.mxu0 0.0
  %2571 = vmatprep.subr.mxu0 0.0
  %2572 = vmatpush1.msra.mxu0 0.0
  %2573 = vmatprep.subr.mxu0 0.0
  %2574 = vmatpush1.msra.mxu0 0.0
  %2575 = vmatprep.subr.mxu0 0.0
  %2576 = vmatpush1.msra.mxu0 0.0
  %2577 = vmatprep.subr.mxu0 0.0
  %2578 = vmatpush1.msra.mxu0 0.0
  %2579 = vmatprep.subr.mxu0 0.0
  %2580 = vmatpush1.msra.mxu0 0.0
  %2581 = vmatprep.subr.mxu0 0.0
  %2582 = vmatpush1.msra.mxu0 0.0
  %2583 = vmatprep.subr.mxu0 0.0
  %2584 = vmatpush1.msra.mxu0 0.0
  %2585 = vmatprep.subr.mxu0 0.0
  %2586 = vmatpush1.msra.mxu0 0.0
  %2587 = vmatprep.subr.mxu0 0.0
  %2588 = vmatpush1.msra.mxu0 0.0
  %2589 = vmatprep.mubr.f32.mxu0 0.0
  %2590 = vmatmul.mubr.f32.gmra.mrb[0].mxu0 %v1005
  %v2591 = vpop.f32.mrb[0].mxu0
  %v2592 = vadd.f32 0.0, %v2591
  %v2593 = vpop.f32.mrb[0].mxu0
  %v2594 = vadd.f32 0.0, %v2593
  %2595 = vdwg.mxu0
  %v2596 = vsel %vm71, %v2592, 0.0
  %v2597 = vsel %vm71, %v2594, 0.0
  %v2598 = vadd.f32 %v2596, %v2597
  %2599 = vadd.xlane.f32.xlu0 %v2598
  %v2600 = vpop.xlane.xlu0 %2599
  %v2601 = vmul.f32 %v2600, 0.00390625
  %v2602 = vmul.f32 %v2592, %v2592
  %v2603 = vmul.f32 %v2594, %v2594
  %v2604 = vsel %vm71, %v2602, 0.0
  %v2605 = vsel %vm71, %v2603, 0.0
  %v2606 = vadd.f32 %v2604, %v2605
  %2607 = vadd.xlane.f32.xlu0 %v2606
  %v2608 = vpop.xlane.xlu0 %2607
  %v2609 = vmul.f32 %v2608, 0.00390625
  %v2610 = vmul.f32 %v2601, %v2601
  %v2611 = vsub.f32 %v2609, %v2610
  %v2612 = vmax.f32 %v2611, 0.0
  %v2613 = vsub.f32 %v2592, %v2601
  %v2614 = vsub.f32 %v2594, %v2601
  %v2615 = vadd.f32 %v2612, 1e-05
  %v2616 = vrsqrt.pop %v2615
  %v2617 = vmul.f32 %v2613, %v2616
  %v2618 = vmul.f32 %v2614, %v2616
  %v2619 = vmax.f32 %v2617, 0.0
  %v2620 = vmax.f32 %v2618, 0.0
  %v2623 = vcombine.low %v2619, %v2620
  %v2625 = vunpack.c.l.s4 1983009808
  %v2626 = vunpack.c.0.s8 %v2625
  %v2627 = vlaneseq
  %v2628 = vshrl.u32 %v2627, 7
  %v2629 = vsub.s32 %v2626, %v2628
  %v2630 = vrot.slane %v2623, %v2629
  %2631 = vrot.lane.b32.xlu0 %v2630, 16
  %v2632 = vpop.permute.xlu0 %2631
  %v2633 = vrot.slane %v2632, 6
  %v2634 = vsel %vm185, %v2633, %v2632
  %2636 = vst.msk [vmem:[#allocation2] sm:$0x3f] %vm192, %v2634
  %v2638 = vunpack.c.l.s4 1983009808
  %v2639 = vunpack.c.0.s8 %v2638
  %v2640 = vlaneseq
  %v2641 = vshrl.u32 %v2640, 7
  %v2642 = vsub.s32 %v2639, %v2641
  %v2643 = vrot.slane %v2619, %v2642
  %2644 = vrot.lane.b32.xlu0 %v2643, 112
  %v2645 = vpop.permute.xlu0 %2644
  %2647 = vst.msk [vmem:[#allocation2] sm:$0x3] %vm204, %v2645
  %v2649 = vunpack.c.l.s4 1983009808
  %v2650 = vunpack.c.0.s8 %v2649
  %v2651 = vlaneseq
  %v2652 = vshrl.u32 %v2651, 7
  %v2653 = vsub.s32 %v2650, %v2652
  %v2654 = vrot.slane %v2620, %v2653
  %2655 = vrot.lane.b32.xlu0 %v2654, 48
  %v2656 = vpop.permute.xlu0 %2655
  %2658 = vst.msk [vmem:[#allocation2 + $0x4] sm:$0x3] %vm216, %v2656
  %v2659 = vld [vmem:[#allocation2] sm:$0xf]
  %v2662 = vunpack.c.l.s4 1983009808
  %v2663 = vunpack.c.0.s8 %v2662
  %v2664 = vlaneseq
  %v2665 = vshrl.u32 %v2664, 7
  %v2666 = vsub.s32 %v2663, %v2665
  %v2667 = vrot.slane %v2659, %v2666
  %v2668 = vcombine.high %v2667, %v2667
  %2671 = vrot.lane.b32.xlu0 %v2667, 1
  %v2672 = vpop.permute.xlu0 %2671
  %2673 = vrot.lane.b32.xlu0 %v2668, 1
  %v2674 = vpop.permute.xlu0 %2673
  %v2675 = vsel %vm234, %v2672, %v2674
  %v2676 = vsel %vm234, %v2674, %v2672
  %2677 = vrot.lane.b32.xlu0 %v2667, 127
  %v2678 = vpop.permute.xlu0 %2677
  %2679 = vrot.lane.b32.xlu0 %v2668, 127
  %v2680 = vpop.permute.xlu0 %2679
  %v2681 = vsel %vm241, %v2678, %v2680
  %v2682 = vsel %vm241, %v2680, %v2678
  %v2683 = vsel %vm246, %v2681, %v2676
  %v2684 = vsel %vm247, %v2682, %v2675
  %v2685 = vsel %vm252, %v2676, %v2681
  %v2686 = vsel %vm253, %v2675, %v2682
  %v2689 = vrot.slane %v2683, 4
  %v2690 = vrot.slane %v2684, 4
  %2693 = vst [vmem:[#allocation4 + $0x40] sm:$0x30] %v2689
  %2694 = vst [vmem:[#allocation4 + $0x48] sm:$0x30] %v2690
  %v2695 = vcombine.low %v2659, %v2659
  %v2697 = vunpack.c.l.s4 1983009808
  %v2698 = vunpack.c.0.s8 %v2697
  %v2699 = vlaneseq
  %v2700 = vshrl.u32 %v2699, 7
  %v2701 = vsub.s32 %v2698, %v2700
  %v2702 = vrot.slane %v2695, %v2701
  %v2703 = vcombine.low %v2702, %v2702
  %2706 = vst [vmem:[#allocation4 + $0x40] sm:$0xc0] %v2703
  %2707 = vst [vmem:[#allocation4 + $0x48] sm:$0xc0] %v2702
  %2708 = vst [vmem:[#allocation4 + $0x50] sm:$0x3] %v2685
  %2709 = vst [vmem:[#allocation4 + $0x58] sm:$0x3] %v2686
  %v2710 = vld [vmem:[#allocation2] sm:$0x3f]
  %v2712 = vcombine.high %v2710, %v2710
  %v2714 = vunpack.c.l.s4 1983009808
  %v2715 = vunpack.c.0.s8 %v2714
  %v2716 = vlaneseq
  %v2717 = vshrl.u32 %v2716, 7
  %v2718 = vsub.s32 %v2715, %v2717
  %v2719 = vrot.slane %v2710, %v2718
  %v2721 = vunpack.c.l.s4 1983009808
  %v2722 = vunpack.c.0.s8 %v2721
  %v2723 = vlaneseq
  %v2724 = vshrl.u32 %v2723, 7
  %v2725 = vsub.s32 %v2722, %v2724
  %v2726 = vrot.slane %v2712, %v2725
  %v2727 = vcombine.high %v2719, %v2719
  %2728 = vrot.lane.b32.xlu0 %v2719, 112
  %v2729 = vpop.permute.xlu0 %2728
  %2730 = vrot.lane.b32.xlu0 %v2727, 112
  %v2731 = vpop.permute.xlu0 %2730
  %2732 = vrot.lane.b32.xlu0 %v2726, 112
  %v2733 = vpop.permute.xlu0 %2732
  %v2734 = vsel %vm300, %v2729, %v2731
  %v2735 = vsel %vm300, %v2731, %v2733
  %2738 = vrot.lane.b32.xlu0 %v2734, 1
  %v2739 = vpop.permute.xlu0 %2738
  %2740 = vrot.lane.b32.xlu0 %v2735, 1
  %v2741 = vpop.permute.xlu0 %2740
  %v2742 = vsel %vm234, %v2739, %v2741
  %v2743 = vsel %vm234, %v2741, %v2739
  %2744 = vrot.lane.b32.xlu0 %v2734, 127
  %v2745 = vpop.permute.xlu0 %2744
  %2746 = vrot.lane.b32.xlu0 %v2735, 127
  %v2747 = vpop.permute.xlu0 %2746
  %v2748 = vsel %vm241, %v2745, %v2747
  %v2749 = vsel %vm241, %v2747, %v2745
  %v2750 = vsel %vm246, %v2748, %v2743
  %v2751 = vsel %vm247, %v2749, %v2742
  %v2752 = vsel %vm252, %v2743, %v2748
  %v2753 = vsel %vm253, %v2742, %v2749
  %v2756 = vrot.slane %v2750, 6
  %v2757 = vrot.slane %v2751, 6
  %2760 = vst [vmem:[#allocation4 + $0x50] sm:$0xc] %v2756
  %2761 = vst [vmem:[#allocation4 + $0x58] sm:$0xc] %v2757
  %v2762 = vcombine.low %v2719, %v2719
  %v2763 = vcombine.low %v2726, %v2726
  %2764 = vrot.lane.b32.xlu0 %v2762, 112
  %v2765 = vpop.permute.xlu0 %2764
  %2766 = vrot.lane.b32.xlu0 %v2763, 112
  %v2767 = vpop.permute.xlu0 %2766
  %v2768 = vsel %vm300, %v2765, %v2729
  %v2769 = vsel %vm300, %v2729, %v2767
  %2772 = vst [vmem:[#allocation4 + $0x50] sm:$0x30] %v2768
  %2773 = vst [vmem:[#allocation4 + $0x58] sm:$0x30] %v2769
  %v2776 = vrot.slane %v2752, 2
  %v2777 = vrot.slane %v2753, 2
  %2780 = vst [vmem:[#allocation4 + $0x50] sm:$0xc0] %v2776
  %2781 = vst [vmem:[#allocation4 + $0x58] sm:$0xc0] %v2777
  %v2782 = vld [vmem:[#allocation2] sm:$0x3f]
  %v2784 = vcombine.high %v2782, %v2782
  %v2786 = vunpack.c.l.s4 1983009808
  %v2787 = vunpack.c.0.s8 %v2786
  %v2788 = vlaneseq
  %v2789 = vshrl.u32 %v2788, 7
  %v2790 = vsub.s32 %v2787, %v2789
  %v2791 = vrot.slane %v2782, %v2790
  %v2793 = vunpack.c.l.s4 1983009808
  %v2794 = vunpack.c.0.s8 %v2793
  %v2795 = vlaneseq
  %v2796 = vshrl.u32 %v2795, 7
  %v2797 = vsub.s32 %v2794, %v2796
  %v2798 = vrot.slane %v2784, %v2797
  %v2799 = vcombine.high %v2791, %v2791
  %2800 = vrot.lane.b32.xlu0 %v2791, 96
  %v2801 = vpop.permute.xlu0 %2800
  %2802 = vrot.lane.b32.xlu0 %v2799, 96
  %v2803 = vpop.permute.xlu0 %2802
  %2804 = vrot.lane.b32.xlu0 %v2798, 96
  %v2805 = vpop.permute.xlu0 %2804
  %v2806 = vsel %vm374, %v2801, %v2803
  %v2807 = vsel %vm374, %v2803, %v2805
  %2810 = vrot.lane.b32.xlu0 %v2806, 1
  %v2811 = vpop.permute.xlu0 %2810
  %2812 = vrot.lane.b32.xlu0 %v2807, 1
  %v2813 = vpop.permute.xlu0 %2812
  %v2814 = vsel %vm234, %v2811, %v2813
  %v2815 = vsel %vm234, %v2813, %v2811
  %2816 = vrot.lane.b32.xlu0 %v2806, 127
  %v2817 = vpop.permute.xlu0 %2816
  %2818 = vrot.lane.b32.xlu0 %v2807, 127
  %v2819 = vpop.permute.xlu0 %2818
  %v2820 = vsel %vm241, %v2817, %v2819
  %v2821 = vsel %vm241, %v2819, %v2817
  %v2822 = vsel %vm246, %v2820, %v2815
  %v2823 = vsel %vm247, %v2821, %v2814
  %v2824 = vsel %vm252, %v2815, %v2820
  %v2825 = vsel %vm253, %v2814, %v2821
  %2826 = vst [vmem:[#allocation4 + $0x60] sm:$0x3] %v2822
  %2827 = vst [vmem:[#allocation4 + $0x68] sm:$0x3] %v2823
  %v2828 = vcombine.low %v2782, %v2782
  %v2830 = vunpack.c.l.s4 1983009808
  %v2831 = vunpack.c.0.s8 %v2830
  %v2832 = vlaneseq
  %v2833 = vshrl.u32 %v2832, 7
  %v2834 = vsub.s32 %v2831, %v2833
  %v2835 = vrot.slane %v2828, %v2834
  %v2836 = vcombine.high %v2835, %v2835
  %2837 = vrot.lane.b32.xlu0 %v2835, 96
  %v2838 = vpop.permute.xlu0 %2837
  %2839 = vrot.lane.b32.xlu0 %v2836, 96
  %v2840 = vpop.permute.xlu0 %2839
  %v2841 = vsel %vm374, %v2838, %v2840
  %v2842 = vsel %vm374, %v2840, %v2801
  %2845 = vst [vmem:[#allocation4 + $0x60] sm:$0xc] %v2841
  %2846 = vst [vmem:[#allocation4 + $0x68] sm:$0xc] %v2842
  %v2849 = vrot.slane %v2824, 4
  %v2850 = vrot.slane %v2825, 4
  %2853 = vst [vmem:[#allocation4 + $0x60] sm:$0x30] %v2849
  %2854 = vst [vmem:[#allocation4 + $0x68] sm:$0x30] %v2850
  %v2855 = vld [vmem:[#allocation4 + $0x20] sm:$0xfc]
  %v2856 = vld [vmem:[#allocation4 + $0x28] sm:$0xfc]
  %v2857 = vld [vmem:[#allocation4 + $0x30] sm:$0xff]
  %v2858 = vld [vmem:[#allocation4 + $0x38] sm:$0xff]
  %v2859 = vld [vmem:[#allocation4 + $0x40] sm:$0xff]
  %v2860 = vld [vmem:[#allocation4 + $0x48] sm:$0xff]
  %v2861 = vld [vmem:[#allocation4 + $0x50] sm:$0xff]
  %v2862 = vld [vmem:[#allocation4 + $0x58] sm:$0xff]
  %v2863 = vld [vmem:[#allocation4 + $0x60] sm:$0x3f]
  %v2864 = vld [vmem:[#allocation4 + $0x68] sm:$0x3f]
  %v2875 = vrot.slane %v2855, 2
  %v2876 = vrot.slane %v2857, 2
  %v2877 = vsel %vm1366, %v2875, %v2876
  %v2878 = vrot.slane %v2856, 2
  %v2879 = vrot.slane %v2858, 2
  %v2880 = vsel %vm1366, %v2878, %v2879
  %v2881 = vrot.slane %v2859, 2
  %v2882 = vsel %vm1366, %v2876, %v2881
  %v2883 = vrot.slane %v2860, 2
  %v2884 = vsel %vm1366, %v2879, %v2883
  %v2885 = vrot.slane %v2861, 2
  %v2886 = vsel %vm1366, %v2881, %v2885
  %v2887 = vrot.slane %v2862, 2
  %v2888 = vsel %vm1366, %v2883, %v2887
  %v2889 = vrot.slane %v2863, 2
  %v2890 = vsel %vm1366, %v2885, %v2889
  %v2891 = vrot.slane %v2864, 2
  %v2892 = vsel %vm1366, %v2887, %v2891
  %v2901 = vsel %vm1007, %v2889, 0
  %v2903 = vsel %vm1007, %v2891, 0
  %2905 = vmatprep.subr.mxu0 %v2880
  %2906 = vmatpush1.msra.mxu0 %v2877
  %2907 = vmatprep.subr.mxu0 %v2884
  %2908 = vmatpush1.msra.mxu0 %v2882
  %2909 = vmatprep.subr.mxu0 %v2888
  %2910 = vmatpush1.msra.mxu0 %v2886
  %2911 = vmatprep.subr.mxu0 %v2892
  %2912 = vmatpush1.msra.mxu0 %v2890
  %2913 = vmatprep.subr.mxu0 %v2903
  %2914 = vmatpush1.msra.mxu0 %v2901
  %2915 = vmatprep.subr.mxu0 0.0
  %2916 = vmatpush1.msra.mxu0 0.0
  %2917 = vmatprep.subr.mxu0 0.0
  %2918 = vmatpush1.msra.mxu0 0.0
  %2919 = vmatprep.subr.mxu0 0.0
  %2920 = vmatpush1.msra.mxu0 0.0
  %2921 = vmatprep.subr.mxu0 0.0
  %2922 = vmatpush1.msra.mxu0 0.0
  %2923 = vmatprep.subr.mxu0 0.0
  %2924 = vmatpush1.msra.mxu0 0.0
  %2925 = vmatprep.subr.mxu0 0.0
  %2926 = vmatpush1.msra.mxu0 0.0
  %2927 = vmatprep.subr.mxu0 0.0
  %2928 = vmatpush1.msra.mxu0 0.0
  %2929 = vmatprep.subr.mxu0 0.0
  %2930 = vmatpush1.msra.mxu0 0.0
  %2931 = vmatprep.subr.mxu0 0.0
  %2932 = vmatpush1.msra.mxu0 0.0
  %2933 = vmatprep.subr.mxu0 0.0
  %2934 = vmatpush1.msra.mxu0 0.0
  %2935 = vmatprep.subr.mxu0 0.0
  %2936 = vmatpush1.msra.mxu0 0.0
  %2937 = vmatprep.subr.mxu0 0.0
  %2938 = vmatpush1.msra.mxu0 0.0
  %2939 = vmatprep.subr.mxu0 0.0
  %2940 = vmatpush1.msra.mxu0 0.0
  %2941 = vmatprep.subr.mxu0 0.0
  %2942 = vmatpush1.msra.mxu0 0.0
  %2943 = vmatprep.subr.mxu0 0.0
  %2944 = vmatpush1.msra.mxu0 0.0
  %2945 = vmatprep.subr.mxu0 0.0
  %2946 = vmatpush1.msra.mxu0 0.0
  %2947 = vmatprep.subr.mxu0 0.0
  %2948 = vmatpush1.msra.mxu0 0.0
  %2949 = vmatprep.subr.mxu0 0.0
  %2950 = vmatpush1.msra.mxu0 0.0
  %2951 = vmatprep.subr.mxu0 0.0
  %2952 = vmatpush1.msra.mxu0 0.0
  %2953 = vmatprep.subr.mxu0 0.0
  %2954 = vmatpush1.msra.mxu0 0.0
  %2955 = vmatprep.subr.mxu0 0.0
  %2956 = vmatpush1.msra.mxu0 0.0
  %2957 = vmatprep.subr.mxu0 0.0
  %2958 = vmatpush1.msra.mxu0 0.0
  %2959 = vmatprep.subr.mxu0 0.0
  %2960 = vmatpush1.msra.mxu0 0.0
  %2961 = vmatprep.subr.mxu0 0.0
  %2962 = vmatpush1.msra.mxu0 0.0
  %2963 = vmatprep.subr.mxu0 0.0
  %2964 = vmatpush1.msra.mxu0 0.0
  %2965 = vmatprep.subr.mxu0 0.0
  %2966 = vmatpush1.msra.mxu0 0.0
  %2967 = vmatprep.subr.mxu0 0.0
  %2968 = vmatpush1.msra.mxu0 0.0
  %2969 = vmatprep.mubr.f32.mxu0 0.0
  %2970 = vmatmul.mubr.f32.gmra.mrb[0].mxu0 %v1393
  %v2971 = vpop.f32.mrb[0].mxu0
  %v2972 = vadd.f32 0.0, %v2971
  %v2973 = vpop.f32.mrb[0].mxu0
  %v2974 = vadd.f32 0.0, %v2973
  %2975 = vdwg.mxu0
  %v2976 = vsel %vm71, %v2972, 0.0
  %v2977 = vsel %vm71, %v2974, 0.0
  %v2978 = vadd.f32 %v2976, %v2977
  %2979 = vadd.xlane.f32.xlu0 %v2978
  %v2980 = vpop.xlane.xlu0 %2979
  %v2981 = vmul.f32 %v2980, 0.00390625
  %v2982 = vmul.f32 %v2972, %v2972
  %v2983 = vmul.f32 %v2974, %v2974
  %v2984 = vsel %vm71, %v2982, 0.0
  %v2985 = vsel %vm71, %v2983, 0.0
  %v2986 = vadd.f32 %v2984, %v2985
  %2987 = vadd.xlane.f32.xlu0 %v2986
  %v2988 = vpop.xlane.xlu0 %2987
  %v2989 = vmul.f32 %v2988, 0.00390625
  %v2990 = vmul.f32 %v2981, %v2981
  %v2991 = vsub.f32 %v2989, %v2990
  %v2992 = vmax.f32 %v2991, 0.0
  %v2993 = vsub.f32 %v2972, %v2981
  %v2994 = vsub.f32 %v2974, %v2981
  %v2995 = vadd.f32 %v2992, 1e-05
  %v2996 = vrsqrt.pop %v2995
  %v2997 = vmul.f32 %v2993, %v2996
  %v2998 = vmul.f32 %v2994, %v2996
  %v2999 = vmax.f32 %v2997, 0.0
  %v3000 = vmax.f32 %v2998, 0.0
  %3001 = vst [vmem:[#allocation4] sm:$0x3] %v2999
  %3002 = vst [vmem:[#allocation4 + $0x8] sm:$0x3] %v3000
  %v3003 = vrot.slane %v1728, 6
  %v3004 = vrot.slane %v1729, 6
  %3007 = vst [vmem:[#allocation4] sm:$0xc] %v3003
  %3008 = vst [vmem:[#allocation4 + $0x8] sm:$0xc] %v3004
  %v3009 = vld [vmem:[%s4] sm:$0xf]
  %v3010 = vld [vmem:[#allocation4] sm:$0xf]
  %v3011 = vld [vmem:[#allocation4 + $0x8] sm:$0xf]
  %v3013 = vsel %vm1506, %v3009, 0
  %v3016 = vsel %vm1007, %v3010, 0
  %v3019 = vsel %vm1007, %v3011, 0
  %3021 = vmatprep.subr.mxu0 %v3019
  %3022 = vmatpush1.msra.mxu0 %v3016
  %3023 = vmatprep.subr.mxu0 0.0
  %3024 = vmatpush1.msra.mxu0 0.0
  %3025 = vmatprep.subr.mxu0 0.0
  %3026 = vmatpush1.msra.mxu0 0.0
  %3027 = vmatprep.subr.mxu0 0.0
  %3028 = vmatpush1.msra.mxu0 0.0
  %3029 = vmatprep.subr.mxu0 0.0
  %3030 = vmatpush1.msra.mxu0 0.0
  %3031 = vmatprep.subr.mxu0 0.0
  %3032 = vmatpush1.msra.mxu0 0.0
  %3033 = vmatprep.subr.mxu0 0.0
  %3034 = vmatpush1.msra.mxu0 0.0
  %3035 = vmatprep.subr.mxu0 0.0
  %3036 = vmatpush1.msra.mxu0 0.0
  %3037 = vmatprep.subr.mxu0 0.0
  %3038 = vmatpush1.msra.mxu0 0.0
  %3039 = vmatprep.subr.mxu0 0.0
  %3040 = vmatpush1.msra.mxu0 0.0
  %3041 = vmatprep.subr.mxu0 0.0
  %3042 = vmatpush1.msra.mxu0 0.0
  %3043 = vmatprep.subr.mxu0 0.0
  %3044 = vmatpush1.msra.mxu0 0.0
  %3045 = vmatprep.subr.mxu0 0.0
  %3046 = vmatpush1.msra.mxu0 0.0
  %3047 = vmatprep.subr.mxu0 0.0
  %3048 = vmatpush1.msra.mxu0 0.0
  %3049 = vmatprep.subr.mxu0 0.0
  %3050 = vmatpush1.msra.mxu0 0.0
  %3051 = vmatprep.subr.mxu0 0.0
  %3052 = vmatpush1.msra.mxu0 0.0
  %3053 = vmatprep.subr.mxu0 0.0
  %3054 = vmatpush1.msra.mxu0 0.0
  %3055 = vmatprep.subr.mxu0 0.0
  %3056 = vmatpush1.msra.mxu0 0.0
  %3057 = vmatprep.subr.mxu0 0.0
  %3058 = vmatpush1.msra.mxu0 0.0
  %3059 = vmatprep.subr.mxu0 0.0
  %3060 = vmatpush1.msra.mxu0 0.0
  %3061 = vmatprep.subr.mxu0 0.0
  %3062 = vmatpush1.msra.mxu0 0.0
  %3063 = vmatprep.subr.mxu0 0.0
  %3064 = vmatpush1.msra.mxu0 0.0
  %3065 = vmatprep.subr.mxu0 0.0
  %3066 = vmatpush1.msra.mxu0 0.0
  %3067 = vmatprep.subr.mxu0 0.0
  %3068 = vmatpush1.msra.mxu0 0.0
  %3069 = vmatprep.subr.mxu0 0.0
  %3070 = vmatpush1.msra.mxu0 0.0
  %3071 = vmatprep.subr.mxu0 0.0
  %3072 = vmatpush1.msra.mxu0 0.0
  %3073 = vmatprep.subr.mxu0 0.0
  %3074 = vmatpush1.msra.mxu0 0.0
  %3075 = vmatprep.subr.mxu0 0.0
  %3076 = vmatpush1.msra.mxu0 0.0
  %3077 = vmatprep.subr.mxu0 0.0
  %3078 = vmatpush1.msra.mxu0 0.0
  %3079 = vmatprep.subr.mxu0 0.0
  %3080 = vmatpush1.msra.mxu0 0.0
  %3081 = vmatprep.subr.mxu0 0.0
  %3082 = vmatpush1.msra.mxu0 0.0
  %3083 = vmatprep.subr.mxu0 0.0
  %3084 = vmatpush1.msra.mxu0 0.0
  %3085 = vmatprep.mubr.f32.mxu0 0.0
  %3086 = vmatmul.mubr.f32.gmra.mrb[0].mxu0 %v3013
  %v3087 = vpop.f32.mrb[0].mxu0
  %v3088 = vadd.f32 0.0, %v3087
  %v3089 = vpop.f32.mrb[0].mxu0
  %v3090 = vadd.f32 0.0, %v3089
  %3091 = vdwg.mxu0
  %v3092 = vsel %vm1007, %v3088, 0.0
  %v3093 = vsel %vm1007, %v3090, 0.0
  %v3094 = vadd.f32 %v3092, %v3093
  %3095 = vadd.xlane.f32.xlu0 %v3094
  %v3096 = vpop.xlane.xlu0 %3095
  %v3097 = vmul.f32 %v3096, 0.00390625
  %v3098 = vmul.f32 %v3088, %v3088
  %v3099 = vmul.f32 %v3090, %v3090
  %v3100 = vsel %vm1007, %v3098, 0.0
  %v3101 = vsel %vm1007, %v3099, 0.0
  %v3102 = vadd.f32 %v3100, %v3101
  %3103 = vadd.xlane.f32.xlu0 %v3102
  %v3104 = vpop.xlane.xlu0 %3103
  %v3105 = vmul.f32 %v3104, 0.00390625
  %v3106 = vmul.f32 %v3097, %v3097
  %v3107 = vsub.f32 %v3105, %v3106
  %v3108 = vmax.f32 %v3107, 0.0
  %v3109 = vsub.f32 %v3088, %v3097
  %v3110 = vsub.f32 %v3090, %v3097
  %v3111 = vadd.f32 %v3108, 1e-05
  %v3112 = vrsqrt.pop %v3111
  %v3113 = vmul.f32 %v3109, %v3112
  %v3114 = vmul.f32 %v3110, %v3112
  %v3117 = vcombine.low %v3113, %v3114
  %s3119 = scalar_lea.vmem %s5, 8
  %3120 = vst [vmem:[%s3119] sm:$0xff] %v3117
  // Predicated region
  $region22: #{msfm_forward.1} parent=0 // pred_check
    _
  $region23: #{msfm_forward.1} parent=0 // pred_check_branch
    %3122 = sbr.rel (0) target = $region25
  $region24: #{msfm_forward.1} parent=0 // pred_region
    _
  $region25: #{msfm_forward.1} parent=0 // pred_fallthru
    _
  // Predicated region
  $region26: #{msfm_forward.1} parent=0 // pred_check
    _
  $region27: #{msfm_forward.1} parent=0 // pred_check_branch
    %3124 = sbr.rel (0) target = $region29
  $region28: #{msfm_forward.1} parent=0 // pred_region
    _
  $region29: #{msfm_forward.1} parent=0 // pred_fallthru
    _

</llo_original>
